<compile_context>
chip_gen: v7x
topology: tpu7x:2x2x1
jax: 0.10.0
libtpu: 0.0.40
codegen_flags: <defaults>
</compile_context>

<pallas_src>
import math

import jax
import jax.numpy as jnp
import numpy as np
from jax import lax
from jax.experimental import pallas as pl
from jax.experimental.pallas import tpu as pltpu

BN_EPS = 1e-5
BN_SCALE = 1.0 / math.sqrt(1.0 + BN_EPS)   # eval-mode BN with default init
NORM_EPS = 1e-12                           # F.normalize default eps


# ------------------------------ fused kernel ----------------------------------
def _make_fused_kernel(B, D, Ks, O):
    L = len(Ks)

    def kernel(*refs):
        x_refs   = refs[0 * L:1 * L]      # each (B, D, N_l)   features (C major)
        cw_refs  = refs[1 * L:2 * L]      # each (D, K_l)      cluster_weights
        cw2_refs = refs[2 * L:3 * L]      # each (D, K_l)      cluster_weights2
        bns_refs = refs[3 * L:4 * L]      # each (1, K_l)      folded BN1 scale
        bnb_refs = refs[4 * L:5 * L]      # each (1, K_l)      folded BN1 bias
        w2_refs  = refs[5 * L:6 * L]      # each (D, K_l*O)    hidden-weight block
        bn2s_ref, bn2b_ref, gw_ref, gbns_ref, gbnb_ref = refs[6 * L:6 * L + 5]
        out_ref = refs[6 * L + 5]         # (B, O)

        # per-batch accumulators for  h = concat(vlads) @ hidden_weights
        h_rows = [jnp.zeros((1, O), jnp.float32) for _ in range(B)]

        for l in range(L):
            K = Ks[l]
            cw  = cw_refs[l][...]
            cw2 = cw2_refs[l][...]
            bns = bns_refs[l][...]
            bnb = bnb_refs[l][...]
            w2  = w2_refs[l][...]                                   # (D, K*O)
            for b in range(B):
                x = x_refs[l][b]                                    # (D, N)

                # activation = softmax(BN1(x^T @ cluster_weights))   -> (N, K)
                act = lax.dot_general(x, cw, (((0,), (0,)), ((), ())),
                                      preferred_element_type=jnp.float32)
                act = act * bns + bnb
                act = act - jnp.max(act, axis=-1, keepdims=True)
                act = jnp.exp(act)
                denom = jnp.sum(act, axis=-1, keepdims=True)
                act = act * pl.reciprocal(denom, approx=True)       # EUP divide

                # vlad = x @ act - a_sum * cluster_weights2          -> (D, K)
                a_sum = jnp.sum(act, axis=0, keepdims=True)          # (1, K)
                vlad = jnp.dot(x, act, preferred_element_type=jnp.float32)
                vlad = vlad - a_sum * cw2

                # F.normalize(vlad, dim=1): per-cluster L2 norm over D
                ssq = jnp.sum(vlad * vlad, axis=0, keepdims=True)    # (1, K)
                vlad = vlad * lax.rsqrt(jnp.maximum(ssq, NORM_EPS * NORM_EPS))

                # fused hidden matmul: flatten(vlad) @ W_l, with the flatten
                # folded into W_l's layout (D, K*O): h += sum_k q[k, kO:(k+1)O]
                q = lax.dot_general(vlad, w2, (((0,), (0,)), ((), ())),
                                    preferred_element_type=jnp.float32)  # (K, K*O)
                for k in range(K):
                    h_rows[b] = h_rows[b] + q[k:k + 1, k * O:(k + 1) * O]

        # ----------------- head: BN2 + context gating (once, both batches) ----
        h = jnp.concatenate(h_rows, axis=0)                          # (B, O)
        h = h * bn2s_ref[...] + bn2b_ref[...]                        # BN2 (eval)
        gates = jnp.dot(h, gw_ref[...], preferred_element_type=jnp.float32)
        gates = gates * gbns_ref[...] + gbnb_ref[...]                # gating BN
        gates = jax.nn.sigmoid(gates)
        out_ref[...] = h * gates

    return kernel


# ------------------------------ python wrapper ---------------------------------
def spatial_pyramid_netvlad(features, level_params, hidden_w,
                            bn2_scale, bn2_bias, gating_w, gbn_scale, gbn_bias):
    """features: list of NCHW maps (B, D, H, W). Returns the gated (B, O) output."""
    B, D = features[0].shape[0], features[0].shape[1]
    O = hidden_w.shape[1]
    L = len(features)
    Ks = [p[0].shape[1] for p in level_params]

    # NCHW -> (B, D, H*W): a free reshape (sample ordering is irrelevant).
    xs = [f.reshape(B, D, f.shape[2] * f.shape[3]) for f in features]

    # Hidden-weight block of level l has rows indexed by (d*K + k); reshape it
    # to (D, K*O) so the in-kernel flatten becomes a plain matmul + block sums.
    w2s, off = [], 0
    for K in Ks:
        blk = hidden_w[off:off + D * K]                  # (D*K, O)
        w2s.append(blk.reshape(D, K * O))                # [d, k*O + o]
        off += D * K

    cws  = [p[0] for p in level_params]
    cw2s = [p[1] for p in level_params]
    bnss = [p[2] for p in level_params]
    bnbs = [p[3] for p in level_params]

    args = (*xs, *cws, *cw2s, *bnss, *bnbs, *w2s,
            bn2_scale, bn2_bias, gating_w, gbn_scale, gbn_bias)
    in_specs = [pl.BlockSpec(a.shape, lambda i, nd=a.ndim: (0,) * nd) for a in args]

    kernel = _make_fused_kernel(B, D, Ks, O)
    return pl.pallas_call(
        kernel,
        out_shape=jax.ShapeDtypeStruct((B, O), jnp.float32),
        grid=(1,),                      # one step: whole problem fits in VMEM
        in_specs=in_specs,
        out_specs=pl.BlockSpec((B, O), lambda i: (0, 0)),
        compiler_params=pltpu.CompilerParams(
            dimension_semantics=("arbitrary",)),
    )(*args)


# --------------------------- pure-JAX reference ---------------------------------
def reference_forward(features, level_params, hidden_w,
                      bn2_scale, bn2_bias, gating_w, gbn_scale, gbn_bias):
    vlads = []
    for f, (cw, cw2, bns, bnb) in zip(features, level_params):
        B, D, H, W = f.shape
        x = f.reshape(B, D, H * W)
        act = jnp.einsum('bdn,dk->bnk', x, cw)
        act = act * bns + bnb
        act = jax.nn.softmax(act, axis=-1)
        a_sum = jnp.sum(act, axis=1, keepdims=True)                  # (B,1,K)
        vlad = jnp.einsum('bdn,bnk->bdk', x, act) - a_sum * cw2[None]
        norm = jnp.sqrt(jnp.sum(vlad * vlad, axis=1, keepdims=True))
        vlad = vlad / jnp.maximum(norm, NORM_EPS)
        vlads.append(vlad.reshape(B, -1))                            # d-major, k-minor
    v = jnp.concatenate(vlads, axis=-1)
    h = v @ hidden_w
    h = h * bn2_scale + bn2_bias
    gates = jax.nn.sigmoid((h @ gating_w) * gbn_scale + gbn_bias)
    return h * gates


# ----------------------------------- main ---------------------------------------
if __name__ == "__main__":
    key = jax.random.PRNGKey(0)

    B, D, O = 2, 16, 32                      # batch, feature_size, output_dim[0]
    Ks = [8, 8, 8, 8]                        # cluster_size per level
    spatial = [(8, 8), (4, 4), (2, 4), (2, 2)]   # (H, W) -> max_samples = H*W

    keys = jax.random.split(key, 32)
    ki = iter(range(32))

    level_params = []
    for K in Ks:
        cw = jax.random.normal(keys[next(ki)], (D, K), jnp.float32) / math.sqrt(D)
        cw2 = jax.random.normal(keys[next(ki)], (D, K), jnp.float32) / math.sqrt(D)
        bns = jnp.full((1, K), BN_SCALE, jnp.float32)   # folded eval-mode BN1
        bnb = jnp.zeros((1, K), jnp.float32)
        level_params.append((cw, cw2, bns, bnb))

    sum_K = sum(Ks)
    hidden_w = jax.random.normal(keys[next(ki)], (D * sum_K, O), jnp.float32) / math.sqrt(D)
    gating_w = jax.random.normal(keys[next(ki)], (O, O), jnp.float32) / math.sqrt(O)
    bn2_scale = jnp.full((1, O), BN_SCALE, jnp.float32)
    bn2_bias = jnp.zeros((1, O), jnp.float32)
    gbn_scale = jnp.full((1, O), BN_SCALE, jnp.float32)
    gbn_bias = jnp.zeros((1, O), jnp.float32)

    features = [jax.random.normal(keys[next(ki)], (B, D, H, W), jnp.float32)
                for (H, W) in spatial]

    fwd = jax.jit(spatial_pyramid_netvlad)
    out = jax.block_until_ready(fwd(features, level_params, hidden_w,
                                    bn2_scale, bn2_bias, gating_w,
                                    gbn_scale, gbn_bias))
    assert out.shape == (B, O) and out.dtype == jnp.float32

    ref = reference_forward(features, level_params, hidden_w,
                            bn2_scale, bn2_bias, gating_w, gbn_scale, gbn_bias)
    # loose tolerance: kernel uses approx EUP reciprocal for the softmax denom
    np.testing.assert_allclose(np.asarray(out), np.asarray(ref),
                               rtol=5e-2, atol=5e-2)
    print("KERNEL_OK")
</pallas_src>

<mosaic_0001>
module attributes {stable_mosaic.version = 11 : i64} {
  func.func @kernel(%arg0: i32, %arg1: memref<2x16x64xf32, #tpu.memory_space<vmem>>, %arg2: memref<2x16x16xf32, #tpu.memory_space<vmem>>, %arg3: memref<2x16x8xf32, #tpu.memory_space<vmem>>, %arg4: memref<2x16x4xf32, #tpu.memory_space<vmem>>, %arg5: memref<16x8xf32, #tpu.memory_space<vmem>>, %arg6: memref<16x8xf32, #tpu.memory_space<vmem>>, %arg7: memref<16x8xf32, #tpu.memory_space<vmem>>, %arg8: memref<16x8xf32, #tpu.memory_space<vmem>>, %arg9: memref<16x8xf32, #tpu.memory_space<vmem>>, %arg10: memref<16x8xf32, #tpu.memory_space<vmem>>, %arg11: memref<16x8xf32, #tpu.memory_space<vmem>>, %arg12: memref<16x8xf32, #tpu.memory_space<vmem>>, %arg13: memref<1x8xf32, #tpu.memory_space<vmem>>, %arg14: memref<1x8xf32, #tpu.memory_space<vmem>>, %arg15: memref<1x8xf32, #tpu.memory_space<vmem>>, %arg16: memref<1x8xf32, #tpu.memory_space<vmem>>, %arg17: memref<1x8xf32, #tpu.memory_space<vmem>>, %arg18: memref<1x8xf32, #tpu.memory_space<vmem>>, %arg19: memref<1x8xf32, #tpu.memory_space<vmem>>, %arg20: memref<1x8xf32, #tpu.memory_space<vmem>>, %arg21: memref<16x256xf32, #tpu.memory_space<vmem>>, %arg22: memref<16x256xf32, #tpu.memory_space<vmem>>, %arg23: memref<16x256xf32, #tpu.memory_space<vmem>>, %arg24: memref<16x256xf32, #tpu.memory_space<vmem>>, %arg25: memref<1x32xf32, #tpu.memory_space<vmem>>, %arg26: memref<1x32xf32, #tpu.memory_space<vmem>>, %arg27: memref<32x32xf32, #tpu.memory_space<vmem>>, %arg28: memref<1x32xf32, #tpu.memory_space<vmem>>, %arg29: memref<1x32xf32, #tpu.memory_space<vmem>>, %arg30: memref<2x32xf32, #tpu.memory_space<vmem>>) attributes {dimension_semantics = [#tpu.dimension_semantics<arbitrary>], iteration_bounds = array<i64: 1>, scalar_prefetch = 0 : i64, scratch_operands = 0 : i64, tpu.core_type = #tpu.core_type<tc>, window_params = [{pipeline_mode = #tpu.pipeline_mode<synchronous>, transform_indices = @transform_0, window_bounds = array<i64: 2, 16, 64>}, {pipeline_mode = #tpu.pipeline_mode<synchronous>, transform_indices = @transform_1, window_bounds = array<i64: 2, 16, 16>}, {pipeline_mode = #tpu.pipeline_mode<synchronous>, transform_indices = @transform_2, window_bounds = array<i64: 2, 16, 8>}, {pipeline_mode = #tpu.pipeline_mode<synchronous>, transform_indices = @transform_3, window_bounds = array<i64: 2, 16, 4>}, {pipeline_mode = #tpu.pipeline_mode<synchronous>, transform_indices = @transform_4, window_bounds = array<i64: 16, 8>}, {pipeline_mode = #tpu.pipeline_mode<synchronous>, transform_indices = @transform_5, window_bounds = array<i64: 16, 8>}, {pipeline_mode = #tpu.pipeline_mode<synchronous>, transform_indices = @transform_6, window_bounds = array<i64: 16, 8>}, {pipeline_mode = #tpu.pipeline_mode<synchronous>, transform_indices = @transform_7, window_bounds = array<i64: 16, 8>}, {pipeline_mode = #tpu.pipeline_mode<synchronous>, transform_indices = @transform_8, window_bounds = array<i64: 16, 8>}, {pipeline_mode = #tpu.pipeline_mode<synchronous>, transform_indices = @transform_9, window_bounds = array<i64: 16, 8>}, {pipeline_mode = #tpu.pipeline_mode<synchronous>, transform_indices = @transform_10, window_bounds = array<i64: 16, 8>}, {pipeline_mode = #tpu.pipeline_mode<synchronous>, transform_indices = @transform_11, window_bounds = array<i64: 16, 8>}, {pipeline_mode = #tpu.pipeline_mode<synchronous>, transform_indices = @transform_12, window_bounds = array<i64: 1, 8>}, {pipeline_mode = #tpu.pipeline_mode<synchronous>, transform_indices = @transform_13, window_bounds = array<i64: 1, 8>}, {pipeline_mode = #tpu.pipeline_mode<synchronous>, transform_indices = @transform_14, window_bounds = array<i64: 1, 8>}, {pipeline_mode = #tpu.pipeline_mode<synchronous>, transform_indices = @transform_15, window_bounds = array<i64: 1, 8>}, {pipeline_mode = #tpu.pipeline_mode<synchronous>, transform_indices = @transform_16, window_bounds = array<i64: 1, 8>}, {pipeline_mode = #tpu.pipeline_mode<synchronous>, transform_indices = @transform_17, window_bounds = array<i64: 1, 8>}, {pipeline_mode = #tpu.pipeline_mode<synchronous>, transform_indices = @transform_18, window_bounds = array<i64: 1, 8>}, {pipeline_mode = #tpu.pipeline_mode<synchronous>, transform_indices = @transform_19, window_bounds = array<i64: 1, 8>}, {pipeline_mode = #tpu.pipeline_mode<synchronous>, transform_indices = @transform_20, window_bounds = array<i64: 16, 256>}, {pipeline_mode = #tpu.pipeline_mode<synchronous>, transform_indices = @transform_21, window_bounds = array<i64: 16, 256>}, {pipeline_mode = #tpu.pipeline_mode<synchronous>, transform_indices = @transform_22, window_bounds = array<i64: 16, 256>}, {pipeline_mode = #tpu.pipeline_mode<synchronous>, transform_indices = @transform_23, window_bounds = array<i64: 16, 256>}, {pipeline_mode = #tpu.pipeline_mode<synchronous>, transform_indices = @transform_24, window_bounds = array<i64: 1, 32>}, {pipeline_mode = #tpu.pipeline_mode<synchronous>, transform_indices = @transform_25, window_bounds = array<i64: 1, 32>}, {pipeline_mode = #tpu.pipeline_mode<synchronous>, transform_indices = @transform_26, window_bounds = array<i64: 32, 32>}, {pipeline_mode = #tpu.pipeline_mode<synchronous>, transform_indices = @transform_27, window_bounds = array<i64: 1, 32>}, {pipeline_mode = #tpu.pipeline_mode<synchronous>, transform_indices = @transform_28, window_bounds = array<i64: 1, 32>}, {pipeline_mode = #tpu.pipeline_mode<synchronous>, transform_indices = @transform_29, window_bounds = array<i64: 2, 32>}]} {
    %cst = arith.constant 0.000000e+00 : f32
    %0 = vector.broadcast %cst : f32 to vector<1x32xf32>
    %cst_0 = arith.constant 0.000000e+00 : f32
    %1 = vector.broadcast %cst_0 : f32 to vector<1x32xf32>
    %c0 = arith.constant 0 : index
    %c0_1 = arith.constant 0 : index
    %2 = vector.load %arg5[%c0, %c0_1] : memref<16x8xf32, #tpu.memory_space<vmem>>, vector<16x8xf32>
    %c0_2 = arith.constant 0 : index
    %c0_3 = arith.constant 0 : index
    %3 = vector.load %arg9[%c0_2, %c0_3] : memref<16x8xf32, #tpu.memory_space<vmem>>, vector<16x8xf32>
    %c0_4 = arith.constant 0 : index
    %c0_5 = arith.constant 0 : index
    %4 = vector.load %arg13[%c0_4, %c0_5] : memref<1x8xf32, #tpu.memory_space<vmem>>, vector<1x8xf32>
    %c0_6 = arith.constant 0 : index
    %c0_7 = arith.constant 0 : index
    %5 = vector.load %arg17[%c0_6, %c0_7] : memref<1x8xf32, #tpu.memory_space<vmem>>, vector<1x8xf32>
    %c0_8 = arith.constant 0 : index
    %c0_9 = arith.constant 0 : index
    %6 = vector.load %arg21[%c0_8, %c0_9] : memref<16x256xf32, #tpu.memory_space<vmem>>, vector<16x256xf32>
    %c0_10 = arith.constant 0 : index
    %c0_11 = arith.constant 0 : index
    %c0_12 = arith.constant 0 : index
    %7 = vector.load %arg1[%c0_10, %c0_11, %c0_12] : memref<2x16x64xf32, #tpu.memory_space<vmem>>, vector<1x16x64xf32>
    %8 = vector.shape_cast %7 : vector<1x16x64xf32> to vector<16x64xf32>
    %cst_13 = arith.constant dense<0.000000e+00> : vector<64x8xf32>
    %9 = tpu.matmul %8, %2, %cst_13 {dimension_numbers = #tpu.dot_dimension_numbers<[0], [0], [1], [1], [0, 1, 1, 1], [], []>} : vector<16x64xf32>, vector<16x8xf32>, vector<64x8xf32> -> vector<64x8xf32>
    %10 = vector.broadcast %4 : vector<1x8xf32> to vector<64x8xf32>
    %11 = arith.mulf %9, %10 : vector<64x8xf32>
    %12 = vector.broadcast %5 : vector<1x8xf32> to vector<64x8xf32>
    %13 = arith.addf %11, %12 : vector<64x8xf32>
    %cst_14 = arith.constant dense<0xFF800000> : vector<64xf32>
    %14 = vector.multi_reduction <maximumf>, %13, %cst_14 [1] : vector<64x8xf32> to vector<64xf32>
    %15 = vector.shape_cast %14 : vector<64xf32> to vector<64x1xf32>
    %16 = vector.broadcast %15 : vector<64x1xf32> to vector<64x8xf32>
    %17 = arith.subf %13, %16 : vector<64x8xf32>
    %18 = math.exp %17 : vector<64x8xf32>
    %cst_15 = arith.constant dense<0.000000e+00> : vector<64xf32>
    %19 = vector.multi_reduction <add>, %18, %cst_15 [1] : vector<64x8xf32> to vector<64xf32>
    %20 = vector.shape_cast %19 : vector<64xf32> to vector<64x1xf32>
    %21 = tpu.reciprocal %20 {approx = true} : vector<64x1xf32> -> vector<64x1xf32>
    %22 = vector.broadcast %21 : vector<64x1xf32> to vector<64x8xf32>
    %23 = arith.mulf %18, %22 : vector<64x8xf32>
    %cst_16 = arith.constant dense<0.000000e+00> : vector<8xf32>
    %24 = vector.multi_reduction <add>, %23, %cst_16 [0] : vector<64x8xf32> to vector<8xf32>
    %25 = vector.shape_cast %24 : vector<8xf32> to vector<1x8xf32>
    %cst_17 = arith.constant dense<0.000000e+00> : vector<16x8xf32>
    %26 = tpu.matmul %8, %23, %cst_17 {dimension_numbers = #tpu.dot_dimension_numbers<[1], [0], [0], [1], [0, 0, 1, 1], [], []>} : vector<16x64xf32>, vector<64x8xf32>, vector<16x8xf32> -> vector<16x8xf32>
    %27 = vector.broadcast %25 : vector<1x8xf32> to vector<16x8xf32>
    %28 = arith.mulf %27, %3 : vector<16x8xf32>
    %29 = arith.subf %26, %28 : vector<16x8xf32>
    %30 = arith.mulf %29, %29 : vector<16x8xf32>
    %cst_18 = arith.constant dense<0.000000e+00> : vector<8xf32>
    %31 = vector.multi_reduction <add>, %30, %cst_18 [0] : vector<16x8xf32> to vector<8xf32>
    %32 = vector.shape_cast %31 : vector<8xf32> to vector<1x8xf32>
    %cst_19 = arith.constant 1.000000e-24 : f32
    %33 = vector.broadcast %cst_19 : f32 to vector<1x8xf32>
    %34 = arith.maximumf %32, %33 : vector<1x8xf32>
    %35 = math.rsqrt %34 : vector<1x8xf32>
    %36 = vector.broadcast %35 : vector<1x8xf32> to vector<16x8xf32>
    %37 = arith.mulf %29, %36 : vector<16x8xf32>
    %cst_20 = arith.constant dense<0.000000e+00> : vector<8x256xf32>
    %38 = tpu.matmul %37, %6, %cst_20 {dimension_numbers = #tpu.dot_dimension_numbers<[0], [0], [1], [1], [0, 1, 1, 1], [], []>} : vector<16x8xf32>, vector<16x256xf32>, vector<8x256xf32> -> vector<8x256xf32>
    %39 = vector.extract_strided_slice %38 {offsets = [0, 0], sizes = [1, 32], strides = [1, 1]} : vector<8x256xf32> to vector<1x32xf32>
    %40 = arith.addf %0, %39 : vector<1x32xf32>
    %41 = vector.extract_strided_slice %38 {offsets = [1, 32], sizes = [1, 32], strides = [1, 1]} : vector<8x256xf32> to vector<1x32xf32>
    %42 = arith.addf %40, %41 : vector<1x32xf32>
    %43 = vector.extract_strided_slice %38 {offsets = [2, 64], sizes = [1, 32], strides = [1, 1]} : vector<8x256xf32> to vector<1x32xf32>
    %44 = arith.addf %42, %43 : vector<1x32xf32>
    %45 = vector.extract_strided_slice %38 {offsets = [3, 96], sizes = [1, 32], strides = [1, 1]} : vector<8x256xf32> to vector<1x32xf32>
    %46 = arith.addf %44, %45 : vector<1x32xf32>
    %47 = vector.extract_strided_slice %38 {offsets = [4, 128], sizes = [1, 32], strides = [1, 1]} : vector<8x256xf32> to vector<1x32xf32>
    %48 = arith.addf %46, %47 : vector<1x32xf32>
    %49 = vector.extract_strided_slice %38 {offsets = [5, 160], sizes = [1, 32], strides = [1, 1]} : vector<8x256xf32> to vector<1x32xf32>
    %50 = arith.addf %48, %49 : vector<1x32xf32>
    %51 = vector.extract_strided_slice %38 {offsets = [6, 192], sizes = [1, 32], strides = [1, 1]} : vector<8x256xf32> to vector<1x32xf32>
    %52 = arith.addf %50, %51 : vector<1x32xf32>
    %53 = vector.extract_strided_slice %38 {offsets = [7, 224], sizes = [1, 32], strides = [1, 1]} : vector<8x256xf32> to vector<1x32xf32>
    %54 = arith.addf %52, %53 : vector<1x32xf32>
    %c1 = arith.constant 1 : index
    %c0_21 = arith.constant 0 : index
    %c0_22 = arith.constant 0 : index
    %55 = vector.load %arg1[%c1, %c0_21, %c0_22] : memref<2x16x64xf32, #tpu.memory_space<vmem>>, vector<1x16x64xf32>
    %56 = vector.shape_cast %55 : vector<1x16x64xf32> to vector<16x64xf32>
    %cst_23 = arith.constant dense<0.000000e+00> : vector<64x8xf32>
    %57 = tpu.matmul %56, %2, %cst_23 {dimension_numbers = #tpu.dot_dimension_numbers<[0], [0], [1], [1], [0, 1, 1, 1], [], []>} : vector<16x64xf32>, vector<16x8xf32>, vector<64x8xf32> -> vector<64x8xf32>
    %58 = vector.broadcast %4 : vector<1x8xf32> to vector<64x8xf32>
    %59 = arith.mulf %57, %58 : vector<64x8xf32>
    %60 = vector.broadcast %5 : vector<1x8xf32> to vector<64x8xf32>
    %61 = arith.addf %59, %60 : vector<64x8xf32>
    %cst_24 = arith.constant dense<0xFF800000> : vector<64xf32>
    %62 = vector.multi_reduction <maximumf>, %61, %cst_24 [1] : vector<64x8xf32> to vector<64xf32>
    %63 = vector.shape_cast %62 : vector<64xf32> to vector<64x1xf32>
    %64 = vector.broadcast %63 : vector<64x1xf32> to vector<64x8xf32>
    %65 = arith.subf %61, %64 : vector<64x8xf32>
    %66 = math.exp %65 : vector<64x8xf32>
    %cst_25 = arith.constant dense<0.000000e+00> : vector<64xf32>
    %67 = vector.multi_reduction <add>, %66, %cst_25 [1] : vector<64x8xf32> to vector<64xf32>
    %68 = vector.shape_cast %67 : vector<64xf32> to vector<64x1xf32>
    %69 = tpu.reciprocal %68 {approx = true} : vector<64x1xf32> -> vector<64x1xf32>
    %70 = vector.broadcast %69 : vector<64x1xf32> to vector<64x8xf32>
    %71 = arith.mulf %66, %70 : vector<64x8xf32>
    %cst_26 = arith.constant dense<0.000000e+00> : vector<8xf32>
    %72 = vector.multi_reduction <add>, %71, %cst_26 [0] : vector<64x8xf32> to vector<8xf32>
    %73 = vector.shape_cast %72 : vector<8xf32> to vector<1x8xf32>
    %cst_27 = arith.constant dense<0.000000e+00> : vector<16x8xf32>
    %74 = tpu.matmul %56, %71, %cst_27 {dimension_numbers = #tpu.dot_dimension_numbers<[1], [0], [0], [1], [0, 0, 1, 1], [], []>} : vector<16x64xf32>, vector<64x8xf32>, vector<16x8xf32> -> vector<16x8xf32>
    %75 = vector.broadcast %73 : vector<1x8xf32> to vector<16x8xf32>
    %76 = arith.mulf %75, %3 : vector<16x8xf32>
    %77 = arith.subf %74, %76 : vector<16x8xf32>
    %78 = arith.mulf %77, %77 : vector<16x8xf32>
    %cst_28 = arith.constant dense<0.000000e+00> : vector<8xf32>
    %79 = vector.multi_reduction <add>, %78, %cst_28 [0] : vector<16x8xf32> to vector<8xf32>
    %80 = vector.shape_cast %79 : vector<8xf32> to vector<1x8xf32>
    %cst_29 = arith.constant 1.000000e-24 : f32
    %81 = vector.broadcast %cst_29 : f32 to vector<1x8xf32>
    %82 = arith.maximumf %80, %81 : vector<1x8xf32>
    %83 = math.rsqrt %82 : vector<1x8xf32>
    %84 = vector.broadcast %83 : vector<1x8xf32> to vector<16x8xf32>
    %85 = arith.mulf %77, %84 : vector<16x8xf32>
    %cst_30 = arith.constant dense<0.000000e+00> : vector<8x256xf32>
    %86 = tpu.matmul %85, %6, %cst_30 {dimension_numbers = #tpu.dot_dimension_numbers<[0], [0], [1], [1], [0, 1, 1, 1], [], []>} : vector<16x8xf32>, vector<16x256xf32>, vector<8x256xf32> -> vector<8x256xf32>
    %87 = vector.extract_strided_slice %86 {offsets = [0, 0], sizes = [1, 32], strides = [1, 1]} : vector<8x256xf32> to vector<1x32xf32>
    %88 = arith.addf %1, %87 : vector<1x32xf32>
    %89 = vector.extract_strided_slice %86 {offsets = [1, 32], sizes = [1, 32], strides = [1, 1]} : vector<8x256xf32> to vector<1x32xf32>
    %90 = arith.addf %88, %89 : vector<1x32xf32>
    %91 = vector.extract_strided_slice %86 {offsets = [2, 64], sizes = [1, 32], strides = [1, 1]} : vector<8x256xf32> to vector<1x32xf32>
    %92 = arith.addf %90, %91 : vector<1x32xf32>
    %93 = vector.extract_strided_slice %86 {offsets = [3, 96], sizes = [1, 32], strides = [1, 1]} : vector<8x256xf32> to vector<1x32xf32>
    %94 = arith.addf %92, %93 : vector<1x32xf32>
    %95 = vector.extract_strided_slice %86 {offsets = [4, 128], sizes = [1, 32], strides = [1, 1]} : vector<8x256xf32> to vector<1x32xf32>
    %96 = arith.addf %94, %95 : vector<1x32xf32>
    %97 = vector.extract_strided_slice %86 {offsets = [5, 160], sizes = [1, 32], strides = [1, 1]} : vector<8x256xf32> to vector<1x32xf32>
    %98 = arith.addf %96, %97 : vector<1x32xf32>
    %99 = vector.extract_strided_slice %86 {offsets = [6, 192], sizes = [1, 32], strides = [1, 1]} : vector<8x256xf32> to vector<1x32xf32>
    %100 = arith.addf %98, %99 : vector<1x32xf32>
    %101 = vector.extract_strided_slice %86 {offsets = [7, 224], sizes = [1, 32], strides = [1, 1]} : vector<8x256xf32> to vector<1x32xf32>
    %102 = arith.addf %100, %101 : vector<1x32xf32>
    %c0_31 = arith.constant 0 : index
    %c0_32 = arith.constant 0 : index
    %103 = vector.load %arg6[%c0_31, %c0_32] : memref<16x8xf32, #tpu.memory_space<vmem>>, vector<16x8xf32>
    %c0_33 = arith.constant 0 : index
    %c0_34 = arith.constant 0 : index
    %104 = vector.load %arg10[%c0_33, %c0_34] : memref<16x8xf32, #tpu.memory_space<vmem>>, vector<16x8xf32>
    %c0_35 = arith.constant 0 : index
    %c0_36 = arith.constant 0 : index
    %105 = vector.load %arg14[%c0_35, %c0_36] : memref<1x8xf32, #tpu.memory_space<vmem>>, vector<1x8xf32>
    %c0_37 = arith.constant 0 : index
    %c0_38 = arith.constant 0 : index
    %106 = vector.load %arg18[%c0_37, %c0_38] : memref<1x8xf32, #tpu.memory_space<vmem>>, vector<1x8xf32>
    %c0_39 = arith.constant 0 : index
    %c0_40 = arith.constant 0 : index
    %107 = vector.load %arg22[%c0_39, %c0_40] : memref<16x256xf32, #tpu.memory_space<vmem>>, vector<16x256xf32>
    %c0_41 = arith.constant 0 : index
    %c0_42 = arith.constant 0 : index
    %c0_43 = arith.constant 0 : index
    %108 = vector.load %arg2[%c0_41, %c0_42, %c0_43] : memref<2x16x16xf32, #tpu.memory_space<vmem>>, vector<1x16x16xf32>
    %109 = vector.shape_cast %108 : vector<1x16x16xf32> to vector<16x16xf32>
    %cst_44 = arith.constant dense<0.000000e+00> : vector<16x8xf32>
    %110 = tpu.matmul %109, %103, %cst_44 {dimension_numbers = #tpu.dot_dimension_numbers<[0], [0], [1], [1], [0, 1, 1, 1], [], []>} : vector<16x16xf32>, vector<16x8xf32>, vector<16x8xf32> -> vector<16x8xf32>
    %111 = vector.broadcast %105 : vector<1x8xf32> to vector<16x8xf32>
    %112 = arith.mulf %110, %111 : vector<16x8xf32>
    %113 = vector.broadcast %106 : vector<1x8xf32> to vector<16x8xf32>
    %114 = arith.addf %112, %113 : vector<16x8xf32>
    %cst_45 = arith.constant dense<0xFF800000> : vector<16xf32>
    %115 = vector.multi_reduction <maximumf>, %114, %cst_45 [1] : vector<16x8xf32> to vector<16xf32>
    %116 = vector.shape_cast %115 : vector<16xf32> to vector<16x1xf32>
    %117 = vector.broadcast %116 : vector<16x1xf32> to vector<16x8xf32>
    %118 = arith.subf %114, %117 : vector<16x8xf32>
    %119 = math.exp %118 : vector<16x8xf32>
    %cst_46 = arith.constant dense<0.000000e+00> : vector<16xf32>
    %120 = vector.multi_reduction <add>, %119, %cst_46 [1] : vector<16x8xf32> to vector<16xf32>
    %121 = vector.shape_cast %120 : vector<16xf32> to vector<16x1xf32>
    %122 = tpu.reciprocal %121 {approx = true} : vector<16x1xf32> -> vector<16x1xf32>
    %123 = vector.broadcast %122 : vector<16x1xf32> to vector<16x8xf32>
    %124 = arith.mulf %119, %123 : vector<16x8xf32>
    %cst_47 = arith.constant dense<0.000000e+00> : vector<8xf32>
    %125 = vector.multi_reduction <add>, %124, %cst_47 [0] : vector<16x8xf32> to vector<8xf32>
    %126 = vector.shape_cast %125 : vector<8xf32> to vector<1x8xf32>
    %cst_48 = arith.constant dense<0.000000e+00> : vector<16x8xf32>
    %127 = tpu.matmul %109, %124, %cst_48 {dimension_numbers = #tpu.dot_dimension_numbers<[1], [0], [0], [1], [0, 0, 1, 1], [], []>} : vector<16x16xf32>, vector<16x8xf32>, vector<16x8xf32> -> vector<16x8xf32>
    %128 = vector.broadcast %126 : vector<1x8xf32> to vector<16x8xf32>
    %129 = arith.mulf %128, %104 : vector<16x8xf32>
    %130 = arith.subf %127, %129 : vector<16x8xf32>
    %131 = arith.mulf %130, %130 : vector<16x8xf32>
    %cst_49 = arith.constant dense<0.000000e+00> : vector<8xf32>
    %132 = vector.multi_reduction <add>, %131, %cst_49 [0] : vector<16x8xf32> to vector<8xf32>
    %133 = vector.shape_cast %132 : vector<8xf32> to vector<1x8xf32>
    %cst_50 = arith.constant 1.000000e-24 : f32
    %134 = vector.broadcast %cst_50 : f32 to vector<1x8xf32>
    %135 = arith.maximumf %133, %134 : vector<1x8xf32>
    %136 = math.rsqrt %135 : vector<1x8xf32>
    %137 = vector.broadcast %136 : vector<1x8xf32> to vector<16x8xf32>
    %138 = arith.mulf %130, %137 : vector<16x8xf32>
    %cst_51 = arith.constant dense<0.000000e+00> : vector<8x256xf32>
    %139 = tpu.matmul %138, %107, %cst_51 {dimension_numbers = #tpu.dot_dimension_numbers<[0], [0], [1], [1], [0, 1, 1, 1], [], []>} : vector<16x8xf32>, vector<16x256xf32>, vector<8x256xf32> -> vector<8x256xf32>
    %140 = vector.extract_strided_slice %139 {offsets = [0, 0], sizes = [1, 32], strides = [1, 1]} : vector<8x256xf32> to vector<1x32xf32>
    %141 = arith.addf %54, %140 : vector<1x32xf32>
    %142 = vector.extract_strided_slice %139 {offsets = [1, 32], sizes = [1, 32], strides = [1, 1]} : vector<8x256xf32> to vector<1x32xf32>
    %143 = arith.addf %141, %142 : vector<1x32xf32>
    %144 = vector.extract_strided_slice %139 {offsets = [2, 64], sizes = [1, 32], strides = [1, 1]} : vector<8x256xf32> to vector<1x32xf32>
    %145 = arith.addf %143, %144 : vector<1x32xf32>
    %146 = vector.extract_strided_slice %139 {offsets = [3, 96], sizes = [1, 32], strides = [1, 1]} : vector<8x256xf32> to vector<1x32xf32>
    %147 = arith.addf %145, %146 : vector<1x32xf32>
    %148 = vector.extract_strided_slice %139 {offsets = [4, 128], sizes = [1, 32], strides = [1, 1]} : vector<8x256xf32> to vector<1x32xf32>
    %149 = arith.addf %147, %148 : vector<1x32xf32>
    %150 = vector.extract_strided_slice %139 {offsets = [5, 160], sizes = [1, 32], strides = [1, 1]} : vector<8x256xf32> to vector<1x32xf32>
    %151 = arith.addf %149, %150 : vector<1x32xf32>
    %152 = vector.extract_strided_slice %139 {offsets = [6, 192], sizes = [1, 32], strides = [1, 1]} : vector<8x256xf32> to vector<1x32xf32>
    %153 = arith.addf %151, %152 : vector<1x32xf32>
    %154 = vector.extract_strided_slice %139 {offsets = [7, 224], sizes = [1, 32], strides = [1, 1]} : vector<8x256xf32> to vector<1x32xf32>
    %155 = arith.addf %153, %154 : vector<1x32xf32>
    %c1_52 = arith.constant 1 : index
    %c0_53 = arith.constant 0 : index
    %c0_54 = arith.constant 0 : index
    %156 = vector.load %arg2[%c1_52, %c0_53, %c0_54] : memref<2x16x16xf32, #tpu.memory_space<vmem>>, vector<1x16x16xf32>
    %157 = vector.shape_cast %156 : vector<1x16x16xf32> to vector<16x16xf32>
    %cst_55 = arith.constant dense<0.000000e+00> : vector<16x8xf32>
    %158 = tpu.matmul %157, %103, %cst_55 {dimension_numbers = #tpu.dot_dimension_numbers<[0], [0], [1], [1], [0, 1, 1, 1], [], []>} : vector<16x16xf32>, vector<16x8xf32>, vector<16x8xf32> -> vector<16x8xf32>
    %159 = vector.broadcast %105 : vector<1x8xf32> to vector<16x8xf32>
    %160 = arith.mulf %158, %159 : vector<16x8xf32>
    %161 = vector.broadcast %106 : vector<1x8xf32> to vector<16x8xf32>
    %162 = arith.addf %160, %161 : vector<16x8xf32>
    %cst_56 = arith.constant dense<0xFF800000> : vector<16xf32>
    %163 = vector.multi_reduction <maximumf>, %162, %cst_56 [1] : vector<16x8xf32> to vector<16xf32>
    %164 = vector.shape_cast %163 : vector<16xf32> to vector<16x1xf32>
    %165 = vector.broadcast %164 : vector<16x1xf32> to vector<16x8xf32>
    %166 = arith.subf %162, %165 : vector<16x8xf32>
    %167 = math.exp %166 : vector<16x8xf32>
    %cst_57 = arith.constant dense<0.000000e+00> : vector<16xf32>
    %168 = vector.multi_reduction <add>, %167, %cst_57 [1] : vector<16x8xf32> to vector<16xf32>
    %169 = vector.shape_cast %168 : vector<16xf32> to vector<16x1xf32>
    %170 = tpu.reciprocal %169 {approx = true} : vector<16x1xf32> -> vector<16x1xf32>
    %171 = vector.broadcast %170 : vector<16x1xf32> to vector<16x8xf32>
    %172 = arith.mulf %167, %171 : vector<16x8xf32>
    %cst_58 = arith.constant dense<0.000000e+00> : vector<8xf32>
    %173 = vector.multi_reduction <add>, %172, %cst_58 [0] : vector<16x8xf32> to vector<8xf32>
    %174 = vector.shape_cast %173 : vector<8xf32> to vector<1x8xf32>
    %cst_59 = arith.constant dense<0.000000e+00> : vector<16x8xf32>
    %175 = tpu.matmul %157, %172, %cst_59 {dimension_numbers = #tpu.dot_dimension_numbers<[1], [0], [0], [1], [0, 0, 1, 1], [], []>} : vector<16x16xf32>, vector<16x8xf32>, vector<16x8xf32> -> vector<16x8xf32>
    %176 = vector.broadcast %174 : vector<1x8xf32> to vector<16x8xf32>
    %177 = arith.mulf %176, %104 : vector<16x8xf32>
    %178 = arith.subf %175, %177 : vector<16x8xf32>
    %179 = arith.mulf %178, %178 : vector<16x8xf32>
    %cst_60 = arith.constant dense<0.000000e+00> : vector<8xf32>
    %180 = vector.multi_reduction <add>, %179, %cst_60 [0] : vector<16x8xf32> to vector<8xf32>
    %181 = vector.shape_cast %180 : vector<8xf32> to vector<1x8xf32>
    %cst_61 = arith.constant 1.000000e-24 : f32
    %182 = vector.broadcast %cst_61 : f32 to vector<1x8xf32>
    %183 = arith.maximumf %181, %182 : vector<1x8xf32>
    %184 = math.rsqrt %183 : vector<1x8xf32>
    %185 = vector.broadcast %184 : vector<1x8xf32> to vector<16x8xf32>
    %186 = arith.mulf %178, %185 : vector<16x8xf32>
    %cst_62 = arith.constant dense<0.000000e+00> : vector<8x256xf32>
    %187 = tpu.matmul %186, %107, %cst_62 {dimension_numbers = #tpu.dot_dimension_numbers<[0], [0], [1], [1], [0, 1, 1, 1], [], []>} : vector<16x8xf32>, vector<16x256xf32>, vector<8x256xf32> -> vector<8x256xf32>
    %188 = vector.extract_strided_slice %187 {offsets = [0, 0], sizes = [1, 32], strides = [1, 1]} : vector<8x256xf32> to vector<1x32xf32>
    %189 = arith.addf %102, %188 : vector<1x32xf32>
    %190 = vector.extract_strided_slice %187 {offsets = [1, 32], sizes = [1, 32], strides = [1, 1]} : vector<8x256xf32> to vector<1x32xf32>
    %191 = arith.addf %189, %190 : vector<1x32xf32>
    %192 = vector.extract_strided_slice %187 {offsets = [2, 64], sizes = [1, 32], strides = [1, 1]} : vector<8x256xf32> to vector<1x32xf32>
    %193 = arith.addf %191, %192 : vector<1x32xf32>
    %194 = vector.extract_strided_slice %187 {offsets = [3, 96], sizes = [1, 32], strides = [1, 1]} : vector<8x256xf32> to vector<1x32xf32>
    %195 = arith.addf %193, %194 : vector<1x32xf32>
    %196 = vector.extract_strided_slice %187 {offsets = [4, 128], sizes = [1, 32], strides = [1, 1]} : vector<8x256xf32> to vector<1x32xf32>
    %197 = arith.addf %195, %196 : vector<1x32xf32>
    %198 = vector.extract_strided_slice %187 {offsets = [5, 160], sizes = [1, 32], strides = [1, 1]} : vector<8x256xf32> to vector<1x32xf32>
    %199 = arith.addf %197, %198 : vector<1x32xf32>
    %200 = vector.extract_strided_slice %187 {offsets = [6, 192], sizes = [1, 32], strides = [1, 1]} : vector<8x256xf32> to vector<1x32xf32>
    %201 = arith.addf %199, %200 : vector<1x32xf32>
    %202 = vector.extract_strided_slice %187 {offsets = [7, 224], sizes = [1, 32], strides = [1, 1]} : vector<8x256xf32> to vector<1x32xf32>
    %203 = arith.addf %201, %202 : vector<1x32xf32>
    %c0_63 = arith.constant 0 : index
    %c0_64 = arith.constant 0 : index
    %204 = vector.load %arg7[%c0_63, %c0_64] : memref<16x8xf32, #tpu.memory_space<vmem>>, vector<16x8xf32>
    %c0_65 = arith.constant 0 : index
    %c0_66 = arith.constant 0 : index
    %205 = vector.load %arg11[%c0_65, %c0_66] : memref<16x8xf32, #tpu.memory_space<vmem>>, vector<16x8xf32>
    %c0_67 = arith.constant 0 : index
    %c0_68 = arith.constant 0 : index
    %206 = vector.load %arg15[%c0_67, %c0_68] : memref<1x8xf32, #tpu.memory_space<vmem>>, vector<1x8xf32>
    %c0_69 = arith.constant 0 : index
    %c0_70 = arith.constant 0 : index
    %207 = vector.load %arg19[%c0_69, %c0_70] : memref<1x8xf32, #tpu.memory_space<vmem>>, vector<1x8xf32>
    %c0_71 = arith.constant 0 : index
    %c0_72 = arith.constant 0 : index
    %208 = vector.load %arg23[%c0_71, %c0_72] : memref<16x256xf32, #tpu.memory_space<vmem>>, vector<16x256xf32>
    %c0_73 = arith.constant 0 : index
    %c0_74 = arith.constant 0 : index
    %c0_75 = arith.constant 0 : index
    %209 = vector.load %arg3[%c0_73, %c0_74, %c0_75] : memref<2x16x8xf32, #tpu.memory_space<vmem>>, vector<1x16x8xf32>
    %210 = vector.shape_cast %209 : vector<1x16x8xf32> to vector<16x8xf32>
    %cst_76 = arith.constant dense<0.000000e+00> : vector<8x8xf32>
    %211 = tpu.matmul %210, %204, %cst_76 {dimension_numbers = #tpu.dot_dimension_numbers<[0], [0], [1], [1], [0, 1, 1, 1], [], []>} : vector<16x8xf32>, vector<16x8xf32>, vector<8x8xf32> -> vector<8x8xf32>
    %212 = vector.broadcast %206 : vector<1x8xf32> to vector<8x8xf32>
    %213 = arith.mulf %211, %212 : vector<8x8xf32>
    %214 = vector.broadcast %207 : vector<1x8xf32> to vector<8x8xf32>
    %215 = arith.addf %213, %214 : vector<8x8xf32>
    %cst_77 = arith.constant dense<0xFF800000> : vector<8xf32>
    %216 = vector.multi_reduction <maximumf>, %215, %cst_77 [1] : vector<8x8xf32> to vector<8xf32>
    %217 = vector.shape_cast %216 : vector<8xf32> to vector<8x1xf32>
    %218 = vector.broadcast %217 : vector<8x1xf32> to vector<8x8xf32>
    %219 = arith.subf %215, %218 : vector<8x8xf32>
    %220 = math.exp %219 : vector<8x8xf32>
    %cst_78 = arith.constant dense<0.000000e+00> : vector<8xf32>
    %221 = vector.multi_reduction <add>, %220, %cst_78 [1] : vector<8x8xf32> to vector<8xf32>
    %222 = vector.shape_cast %221 : vector<8xf32> to vector<8x1xf32>
    %223 = tpu.reciprocal %222 {approx = true} : vector<8x1xf32> -> vector<8x1xf32>
    %224 = vector.broadcast %223 : vector<8x1xf32> to vector<8x8xf32>
    %225 = arith.mulf %220, %224 : vector<8x8xf32>
    %cst_79 = arith.constant dense<0.000000e+00> : vector<8xf32>
    %226 = vector.multi_reduction <add>, %225, %cst_79 [0] : vector<8x8xf32> to vector<8xf32>
    %227 = vector.shape_cast %226 : vector<8xf32> to vector<1x8xf32>
    %cst_80 = arith.constant dense<0.000000e+00> : vector<16x8xf32>
    %228 = tpu.matmul %210, %225, %cst_80 {dimension_numbers = #tpu.dot_dimension_numbers<[1], [0], [0], [1], [0, 0, 1, 1], [], []>} : vector<16x8xf32>, vector<8x8xf32>, vector<16x8xf32> -> vector<16x8xf32>
    %229 = vector.broadcast %227 : vector<1x8xf32> to vector<16x8xf32>
    %230 = arith.mulf %229, %205 : vector<16x8xf32>
    %231 = arith.subf %228, %230 : vector<16x8xf32>
    %232 = arith.mulf %231, %231 : vector<16x8xf32>
    %cst_81 = arith.constant dense<0.000000e+00> : vector<8xf32>
    %233 = vector.multi_reduction <add>, %232, %cst_81 [0] : vector<16x8xf32> to vector<8xf32>
    %234 = vector.shape_cast %233 : vector<8xf32> to vector<1x8xf32>
    %cst_82 = arith.constant 1.000000e-24 : f32
    %235 = vector.broadcast %cst_82 : f32 to vector<1x8xf32>
    %236 = arith.maximumf %234, %235 : vector<1x8xf32>
    %237 = math.rsqrt %236 : vector<1x8xf32>
    %238 = vector.broadcast %237 : vector<1x8xf32> to vector<16x8xf32>
    %239 = arith.mulf %231, %238 : vector<16x8xf32>
    %cst_83 = arith.constant dense<0.000000e+00> : vector<8x256xf32>
    %240 = tpu.matmul %239, %208, %cst_83 {dimension_numbers = #tpu.dot_dimension_numbers<[0], [0], [1], [1], [0, 1, 1, 1], [], []>} : vector<16x8xf32>, vector<16x256xf32>, vector<8x256xf32> -> vector<8x256xf32>
    %241 = vector.extract_strided_slice %240 {offsets = [0, 0], sizes = [1, 32], strides = [1, 1]} : vector<8x256xf32> to vector<1x32xf32>
    %242 = arith.addf %155, %241 : vector<1x32xf32>
    %243 = vector.extract_strided_slice %240 {offsets = [1, 32], sizes = [1, 32], strides = [1, 1]} : vector<8x256xf32> to vector<1x32xf32>
    %244 = arith.addf %242, %243 : vector<1x32xf32>
    %245 = vector.extract_strided_slice %240 {offsets = [2, 64], sizes = [1, 32], strides = [1, 1]} : vector<8x256xf32> to vector<1x32xf32>
    %246 = arith.addf %244, %245 : vector<1x32xf32>
    %247 = vector.extract_strided_slice %240 {offsets = [3, 96], sizes = [1, 32], strides = [1, 1]} : vector<8x256xf32> to vector<1x32xf32>
    %248 = arith.addf %246, %247 : vector<1x32xf32>
    %249 = vector.extract_strided_slice %240 {offsets = [4, 128], sizes = [1, 32], strides = [1, 1]} : vector<8x256xf32> to vector<1x32xf32>
    %250 = arith.addf %248, %249 : vector<1x32xf32>
    %251 = vector.extract_strided_slice %240 {offsets = [5, 160], sizes = [1, 32], strides = [1, 1]} : vector<8x256xf32> to vector<1x32xf32>
    %252 = arith.addf %250, %251 : vector<1x32xf32>
    %253 = vector.extract_strided_slice %240 {offsets = [6, 192], sizes = [1, 32], strides = [1, 1]} : vector<8x256xf32> to vector<1x32xf32>
    %254 = arith.addf %252, %253 : vector<1x32xf32>
    %255 = vector.extract_strided_slice %240 {offsets = [7, 224], sizes = [1, 32], strides = [1, 1]} : vector<8x256xf32> to vector<1x32xf32>
    %256 = arith.addf %254, %255 : vector<1x32xf32>
    %c1_84 = arith.constant 1 : index
    %c0_85 = arith.constant 0 : index
    %c0_86 = arith.constant 0 : index
    %257 = vector.load %arg3[%c1_84, %c0_85, %c0_86] : memref<2x16x8xf32, #tpu.memory_space<vmem>>, vector<1x16x8xf32>
    %258 = vector.shape_cast %257 : vector<1x16x8xf32> to vector<16x8xf32>
    %cst_87 = arith.constant dense<0.000000e+00> : vector<8x8xf32>
    %259 = tpu.matmul %258, %204, %cst_87 {dimension_numbers = #tpu.dot_dimension_numbers<[0], [0], [1], [1], [0, 1, 1, 1], [], []>} : vector<16x8xf32>, vector<16x8xf32>, vector<8x8xf32> -> vector<8x8xf32>
    %260 = vector.broadcast %206 : vector<1x8xf32> to vector<8x8xf32>
    %261 = arith.mulf %259, %260 : vector<8x8xf32>
    %262 = vector.broadcast %207 : vector<1x8xf32> to vector<8x8xf32>
    %263 = arith.addf %261, %262 : vector<8x8xf32>
    %cst_88 = arith.constant dense<0xFF800000> : vector<8xf32>
    %264 = vector.multi_reduction <maximumf>, %263, %cst_88 [1] : vector<8x8xf32> to vector<8xf32>
    %265 = vector.shape_cast %264 : vector<8xf32> to vector<8x1xf32>
    %266 = vector.broadcast %265 : vector<8x1xf32> to vector<8x8xf32>
    %267 = arith.subf %263, %266 : vector<8x8xf32>
    %268 = math.exp %267 : vector<8x8xf32>
    %cst_89 = arith.constant dense<0.000000e+00> : vector<8xf32>
    %269 = vector.multi_reduction <add>, %268, %cst_89 [1] : vector<8x8xf32> to vector<8xf32>
    %270 = vector.shape_cast %269 : vector<8xf32> to vector<8x1xf32>
    %271 = tpu.reciprocal %270 {approx = true} : vector<8x1xf32> -> vector<8x1xf32>
    %272 = vector.broadcast %271 : vector<8x1xf32> to vector<8x8xf32>
    %273 = arith.mulf %268, %272 : vector<8x8xf32>
    %cst_90 = arith.constant dense<0.000000e+00> : vector<8xf32>
    %274 = vector.multi_reduction <add>, %273, %cst_90 [0] : vector<8x8xf32> to vector<8xf32>
    %275 = vector.shape_cast %274 : vector<8xf32> to vector<1x8xf32>
    %cst_91 = arith.constant dense<0.000000e+00> : vector<16x8xf32>
    %276 = tpu.matmul %258, %273, %cst_91 {dimension_numbers = #tpu.dot_dimension_numbers<[1], [0], [0], [1], [0, 0, 1, 1], [], []>} : vector<16x8xf32>, vector<8x8xf32>, vector<16x8xf32> -> vector<16x8xf32>
    %277 = vector.broadcast %275 : vector<1x8xf32> to vector<16x8xf32>
    %278 = arith.mulf %277, %205 : vector<16x8xf32>
    %279 = arith.subf %276, %278 : vector<16x8xf32>
    %280 = arith.mulf %279, %279 : vector<16x8xf32>
    %cst_92 = arith.constant dense<0.000000e+00> : vector<8xf32>
    %281 = vector.multi_reduction <add>, %280, %cst_92 [0] : vector<16x8xf32> to vector<8xf32>
    %282 = vector.shape_cast %281 : vector<8xf32> to vector<1x8xf32>
    %cst_93 = arith.constant 1.000000e-24 : f32
    %283 = vector.broadcast %cst_93 : f32 to vector<1x8xf32>
    %284 = arith.maximumf %282, %283 : vector<1x8xf32>
    %285 = math.rsqrt %284 : vector<1x8xf32>
    %286 = vector.broadcast %285 : vector<1x8xf32> to vector<16x8xf32>
    %287 = arith.mulf %279, %286 : vector<16x8xf32>
    %cst_94 = arith.constant dense<0.000000e+00> : vector<8x256xf32>
    %288 = tpu.matmul %287, %208, %cst_94 {dimension_numbers = #tpu.dot_dimension_numbers<[0], [0], [1], [1], [0, 1, 1, 1], [], []>} : vector<16x8xf32>, vector<16x256xf32>, vector<8x256xf32> -> vector<8x256xf32>
    %289 = vector.extract_strided_slice %288 {offsets = [0, 0], sizes = [1, 32], strides = [1, 1]} : vector<8x256xf32> to vector<1x32xf32>
    %290 = arith.addf %203, %289 : vector<1x32xf32>
    %291 = vector.extract_strided_slice %288 {offsets = [1, 32], sizes = [1, 32], strides = [1, 1]} : vector<8x256xf32> to vector<1x32xf32>
    %292 = arith.addf %290, %291 : vector<1x32xf32>
    %293 = vector.extract_strided_slice %288 {offsets = [2, 64], sizes = [1, 32], strides = [1, 1]} : vector<8x256xf32> to vector<1x32xf32>
    %294 = arith.addf %292, %293 : vector<1x32xf32>
    %295 = vector.extract_strided_slice %288 {offsets = [3, 96], sizes = [1, 32], strides = [1, 1]} : vector<8x256xf32> to vector<1x32xf32>
    %296 = arith.addf %294, %295 : vector<1x32xf32>
    %297 = vector.extract_strided_slice %288 {offsets = [4, 128], sizes = [1, 32], strides = [1, 1]} : vector<8x256xf32> to vector<1x32xf32>
    %298 = arith.addf %296, %297 : vector<1x32xf32>
    %299 = vector.extract_strided_slice %288 {offsets = [5, 160], sizes = [1, 32], strides = [1, 1]} : vector<8x256xf32> to vector<1x32xf32>
    %300 = arith.addf %298, %299 : vector<1x32xf32>
    %301 = vector.extract_strided_slice %288 {offsets = [6, 192], sizes = [1, 32], strides = [1, 1]} : vector<8x256xf32> to vector<1x32xf32>
    %302 = arith.addf %300, %301 : vector<1x32xf32>
    %303 = vector.extract_strided_slice %288 {offsets = [7, 224], sizes = [1, 32], strides = [1, 1]} : vector<8x256xf32> to vector<1x32xf32>
    %304 = arith.addf %302, %303 : vector<1x32xf32>
    %c0_95 = arith.constant 0 : index
    %c0_96 = arith.constant 0 : index
    %305 = vector.load %arg8[%c0_95, %c0_96] : memref<16x8xf32, #tpu.memory_space<vmem>>, vector<16x8xf32>
    %c0_97 = arith.constant 0 : index
    %c0_98 = arith.constant 0 : index
    %306 = vector.load %arg12[%c0_97, %c0_98] : memref<16x8xf32, #tpu.memory_space<vmem>>, vector<16x8xf32>
    %c0_99 = arith.constant 0 : index
    %c0_100 = arith.constant 0 : index
    %307 = vector.load %arg16[%c0_99, %c0_100] : memref<1x8xf32, #tpu.memory_space<vmem>>, vector<1x8xf32>
    %c0_101 = arith.constant 0 : index
    %c0_102 = arith.constant 0 : index
    %308 = vector.load %arg20[%c0_101, %c0_102] : memref<1x8xf32, #tpu.memory_space<vmem>>, vector<1x8xf32>
    %c0_103 = arith.constant 0 : index
    %c0_104 = arith.constant 0 : index
    %309 = vector.load %arg24[%c0_103, %c0_104] : memref<16x256xf32, #tpu.memory_space<vmem>>, vector<16x256xf32>
    %c0_105 = arith.constant 0 : index
    %c0_106 = arith.constant 0 : index
    %c0_107 = arith.constant 0 : index
    %310 = vector.load %arg4[%c0_105, %c0_106, %c0_107] : memref<2x16x4xf32, #tpu.memory_space<vmem>>, vector<1x16x4xf32>
    %311 = vector.shape_cast %310 : vector<1x16x4xf32> to vector<16x4xf32>
    %cst_108 = arith.constant dense<0.000000e+00> : vector<4x8xf32>
    %312 = tpu.matmul %311, %305, %cst_108 {dimension_numbers = #tpu.dot_dimension_numbers<[0], [0], [1], [1], [0, 1, 1, 1], [], []>} : vector<16x4xf32>, vector<16x8xf32>, vector<4x8xf32> -> vector<4x8xf32>
    %313 = vector.broadcast %307 : vector<1x8xf32> to vector<4x8xf32>
    %314 = arith.mulf %312, %313 : vector<4x8xf32>
    %315 = vector.broadcast %308 : vector<1x8xf32> to vector<4x8xf32>
    %316 = arith.addf %314, %315 : vector<4x8xf32>
    %cst_109 = arith.constant dense<0xFF800000> : vector<4xf32>
    %317 = vector.multi_reduction <maximumf>, %316, %cst_109 [1] : vector<4x8xf32> to vector<4xf32>
    %318 = vector.shape_cast %317 : vector<4xf32> to vector<4x1xf32>
    %319 = vector.broadcast %318 : vector<4x1xf32> to vector<4x8xf32>
    %320 = arith.subf %316, %319 : vector<4x8xf32>
    %321 = math.exp %320 : vector<4x8xf32>
    %cst_110 = arith.constant dense<0.000000e+00> : vector<4xf32>
    %322 = vector.multi_reduction <add>, %321, %cst_110 [1] : vector<4x8xf32> to vector<4xf32>
    %323 = vector.shape_cast %322 : vector<4xf32> to vector<4x1xf32>
    %324 = tpu.reciprocal %323 {approx = true} : vector<4x1xf32> -> vector<4x1xf32>
    %325 = vector.broadcast %324 : vector<4x1xf32> to vector<4x8xf32>
    %326 = arith.mulf %321, %325 : vector<4x8xf32>
    %cst_111 = arith.constant dense<0.000000e+00> : vector<8xf32>
    %327 = vector.multi_reduction <add>, %326, %cst_111 [0] : vector<4x8xf32> to vector<8xf32>
    %328 = vector.shape_cast %327 : vector<8xf32> to vector<1x8xf32>
    %cst_112 = arith.constant dense<0.000000e+00> : vector<16x8xf32>
    %329 = tpu.matmul %311, %326, %cst_112 {dimension_numbers = #tpu.dot_dimension_numbers<[1], [0], [0], [1], [0, 0, 1, 1], [], []>} : vector<16x4xf32>, vector<4x8xf32>, vector<16x8xf32> -> vector<16x8xf32>
    %330 = vector.broadcast %328 : vector<1x8xf32> to vector<16x8xf32>
    %331 = arith.mulf %330, %306 : vector<16x8xf32>
    %332 = arith.subf %329, %331 : vector<16x8xf32>
    %333 = arith.mulf %332, %332 : vector<16x8xf32>
    %cst_113 = arith.constant dense<0.000000e+00> : vector<8xf32>
    %334 = vector.multi_reduction <add>, %333, %cst_113 [0] : vector<16x8xf32> to vector<8xf32>
    %335 = vector.shape_cast %334 : vector<8xf32> to vector<1x8xf32>
    %cst_114 = arith.constant 1.000000e-24 : f32
    %336 = vector.broadcast %cst_114 : f32 to vector<1x8xf32>
    %337 = arith.maximumf %335, %336 : vector<1x8xf32>
    %338 = math.rsqrt %337 : vector<1x8xf32>
    %339 = vector.broadcast %338 : vector<1x8xf32> to vector<16x8xf32>
    %340 = arith.mulf %332, %339 : vector<16x8xf32>
    %cst_115 = arith.constant dense<0.000000e+00> : vector<8x256xf32>
    %341 = tpu.matmul %340, %309, %cst_115 {dimension_numbers = #tpu.dot_dimension_numbers<[0], [0], [1], [1], [0, 1, 1, 1], [], []>} : vector<16x8xf32>, vector<16x256xf32>, vector<8x256xf32> -> vector<8x256xf32>
    %342 = vector.extract_strided_slice %341 {offsets = [0, 0], sizes = [1, 32], strides = [1, 1]} : vector<8x256xf32> to vector<1x32xf32>
    %343 = arith.addf %256, %342 : vector<1x32xf32>
    %344 = vector.extract_strided_slice %341 {offsets = [1, 32], sizes = [1, 32], strides = [1, 1]} : vector<8x256xf32> to vector<1x32xf32>
    %345 = arith.addf %343, %344 : vector<1x32xf32>
    %346 = vector.extract_strided_slice %341 {offsets = [2, 64], sizes = [1, 32], strides = [1, 1]} : vector<8x256xf32> to vector<1x32xf32>
    %347 = arith.addf %345, %346 : vector<1x32xf32>
    %348 = vector.extract_strided_slice %341 {offsets = [3, 96], sizes = [1, 32], strides = [1, 1]} : vector<8x256xf32> to vector<1x32xf32>
    %349 = arith.addf %347, %348 : vector<1x32xf32>
    %350 = vector.extract_strided_slice %341 {offsets = [4, 128], sizes = [1, 32], strides = [1, 1]} : vector<8x256xf32> to vector<1x32xf32>
    %351 = arith.addf %349, %350 : vector<1x32xf32>
    %352 = vector.extract_strided_slice %341 {offsets = [5, 160], sizes = [1, 32], strides = [1, 1]} : vector<8x256xf32> to vector<1x32xf32>
    %353 = arith.addf %351, %352 : vector<1x32xf32>
    %354 = vector.extract_strided_slice %341 {offsets = [6, 192], sizes = [1, 32], strides = [1, 1]} : vector<8x256xf32> to vector<1x32xf32>
    %355 = arith.addf %353, %354 : vector<1x32xf32>
    %356 = vector.extract_strided_slice %341 {offsets = [7, 224], sizes = [1, 32], strides = [1, 1]} : vector<8x256xf32> to vector<1x32xf32>
    %357 = arith.addf %355, %356 : vector<1x32xf32>
    %c1_116 = arith.constant 1 : index
    %c0_117 = arith.constant 0 : index
    %c0_118 = arith.constant 0 : index
    %358 = vector.load %arg4[%c1_116, %c0_117, %c0_118] : memref<2x16x4xf32, #tpu.memory_space<vmem>>, vector<1x16x4xf32>
    %359 = vector.shape_cast %358 : vector<1x16x4xf32> to vector<16x4xf32>
    %cst_119 = arith.constant dense<0.000000e+00> : vector<4x8xf32>
    %360 = tpu.matmul %359, %305, %cst_119 {dimension_numbers = #tpu.dot_dimension_numbers<[0], [0], [1], [1], [0, 1, 1, 1], [], []>} : vector<16x4xf32>, vector<16x8xf32>, vector<4x8xf32> -> vector<4x8xf32>
    %361 = vector.broadcast %307 : vector<1x8xf32> to vector<4x8xf32>
    %362 = arith.mulf %360, %361 : vector<4x8xf32>
    %363 = vector.broadcast %308 : vector<1x8xf32> to vector<4x8xf32>
    %364 = arith.addf %362, %363 : vector<4x8xf32>
    %cst_120 = arith.constant dense<0xFF800000> : vector<4xf32>
    %365 = vector.multi_reduction <maximumf>, %364, %cst_120 [1] : vector<4x8xf32> to vector<4xf32>
    %366 = vector.shape_cast %365 : vector<4xf32> to vector<4x1xf32>
    %367 = vector.broadcast %366 : vector<4x1xf32> to vector<4x8xf32>
    %368 = arith.subf %364, %367 : vector<4x8xf32>
    %369 = math.exp %368 : vector<4x8xf32>
    %cst_121 = arith.constant dense<0.000000e+00> : vector<4xf32>
    %370 = vector.multi_reduction <add>, %369, %cst_121 [1] : vector<4x8xf32> to vector<4xf32>
    %371 = vector.shape_cast %370 : vector<4xf32> to vector<4x1xf32>
    %372 = tpu.reciprocal %371 {approx = true} : vector<4x1xf32> -> vector<4x1xf32>
    %373 = vector.broadcast %372 : vector<4x1xf32> to vector<4x8xf32>
    %374 = arith.mulf %369, %373 : vector<4x8xf32>
    %cst_122 = arith.constant dense<0.000000e+00> : vector<8xf32>
    %375 = vector.multi_reduction <add>, %374, %cst_122 [0] : vector<4x8xf32> to vector<8xf32>
    %376 = vector.shape_cast %375 : vector<8xf32> to vector<1x8xf32>
    %cst_123 = arith.constant dense<0.000000e+00> : vector<16x8xf32>
    %377 = tpu.matmul %359, %374, %cst_123 {dimension_numbers = #tpu.dot_dimension_numbers<[1], [0], [0], [1], [0, 0, 1, 1], [], []>} : vector<16x4xf32>, vector<4x8xf32>, vector<16x8xf32> -> vector<16x8xf32>
    %378 = vector.broadcast %376 : vector<1x8xf32> to vector<16x8xf32>
    %379 = arith.mulf %378, %306 : vector<16x8xf32>
    %380 = arith.subf %377, %379 : vector<16x8xf32>
    %381 = arith.mulf %380, %380 : vector<16x8xf32>
    %cst_124 = arith.constant dense<0.000000e+00> : vector<8xf32>
    %382 = vector.multi_reduction <add>, %381, %cst_124 [0] : vector<16x8xf32> to vector<8xf32>
    %383 = vector.shape_cast %382 : vector<8xf32> to vector<1x8xf32>
    %cst_125 = arith.constant 1.000000e-24 : f32
    %384 = vector.broadcast %cst_125 : f32 to vector<1x8xf32>
    %385 = arith.maximumf %383, %384 : vector<1x8xf32>
    %386 = math.rsqrt %385 : vector<1x8xf32>
    %387 = vector.broadcast %386 : vector<1x8xf32> to vector<16x8xf32>
    %388 = arith.mulf %380, %387 : vector<16x8xf32>
    %cst_126 = arith.constant dense<0.000000e+00> : vector<8x256xf32>
    %389 = tpu.matmul %388, %309, %cst_126 {dimension_numbers = #tpu.dot_dimension_numbers<[0], [0], [1], [1], [0, 1, 1, 1], [], []>} : vector<16x8xf32>, vector<16x256xf32>, vector<8x256xf32> -> vector<8x256xf32>
    %390 = vector.extract_strided_slice %389 {offsets = [0, 0], sizes = [1, 32], strides = [1, 1]} : vector<8x256xf32> to vector<1x32xf32>
    %391 = arith.addf %304, %390 : vector<1x32xf32>
    %392 = vector.extract_strided_slice %389 {offsets = [1, 32], sizes = [1, 32], strides = [1, 1]} : vector<8x256xf32> to vector<1x32xf32>
    %393 = arith.addf %391, %392 : vector<1x32xf32>
    %394 = vector.extract_strided_slice %389 {offsets = [2, 64], sizes = [1, 32], strides = [1, 1]} : vector<8x256xf32> to vector<1x32xf32>
    %395 = arith.addf %393, %394 : vector<1x32xf32>
    %396 = vector.extract_strided_slice %389 {offsets = [3, 96], sizes = [1, 32], strides = [1, 1]} : vector<8x256xf32> to vector<1x32xf32>
    %397 = arith.addf %395, %396 : vector<1x32xf32>
    %398 = vector.extract_strided_slice %389 {offsets = [4, 128], sizes = [1, 32], strides = [1, 1]} : vector<8x256xf32> to vector<1x32xf32>
    %399 = arith.addf %397, %398 : vector<1x32xf32>
    %400 = vector.extract_strided_slice %389 {offsets = [5, 160], sizes = [1, 32], strides = [1, 1]} : vector<8x256xf32> to vector<1x32xf32>
    %401 = arith.addf %399, %400 : vector<1x32xf32>
    %402 = vector.extract_strided_slice %389 {offsets = [6, 192], sizes = [1, 32], strides = [1, 1]} : vector<8x256xf32> to vector<1x32xf32>
    %403 = arith.addf %401, %402 : vector<1x32xf32>
    %404 = vector.extract_strided_slice %389 {offsets = [7, 224], sizes = [1, 32], strides = [1, 1]} : vector<8x256xf32> to vector<1x32xf32>
    %405 = arith.addf %403, %404 : vector<1x32xf32>
    %406 = tpu.concatenate %357, %405 in 0 : vector<1x32xf32>, vector<1x32xf32> -> vector<2x32xf32>
    %c0_127 = arith.constant 0 : index
    %c0_128 = arith.constant 0 : index
    %407 = vector.load %arg25[%c0_127, %c0_128] : memref<1x32xf32, #tpu.memory_space<vmem>>, vector<1x32xf32>
    %408 = vector.broadcast %407 : vector<1x32xf32> to vector<2x32xf32>
    %409 = arith.mulf %406, %408 : vector<2x32xf32>
    %c0_129 = arith.constant 0 : index
    %c0_130 = arith.constant 0 : index
    %410 = vector.load %arg26[%c0_129, %c0_130] : memref<1x32xf32, #tpu.memory_space<vmem>>, vector<1x32xf32>
    %411 = vector.broadcast %410 : vector<1x32xf32> to vector<2x32xf32>
    %412 = arith.addf %409, %411 : vector<2x32xf32>
    %c0_131 = arith.constant 0 : index
    %c0_132 = arith.constant 0 : index
    %413 = vector.load %arg27[%c0_131, %c0_132] : memref<32x32xf32, #tpu.memory_space<vmem>>, vector<32x32xf32>
    %cst_133 = arith.constant dense<0.000000e+00> : vector<2x32xf32>
    %414 = tpu.matmul %412, %413, %cst_133 {dimension_numbers = #tpu.dot_dimension_numbers<[1], [0], [0], [1], [0, 0, 1, 1], [], []>} : vector<2x32xf32>, vector<32x32xf32>, vector<2x32xf32> -> vector<2x32xf32>
    %c0_134 = arith.constant 0 : index
    %c0_135 = arith.constant 0 : index
    %415 = vector.load %arg28[%c0_134, %c0_135] : memref<1x32xf32, #tpu.memory_space<vmem>>, vector<1x32xf32>
    %416 = vector.broadcast %415 : vector<1x32xf32> to vector<2x32xf32>
    %417 = arith.mulf %414, %416 : vector<2x32xf32>
    %c0_136 = arith.constant 0 : index
    %c0_137 = arith.constant 0 : index
    %418 = vector.load %arg29[%c0_136, %c0_137] : memref<1x32xf32, #tpu.memory_space<vmem>>, vector<1x32xf32>
    %419 = vector.broadcast %418 : vector<1x32xf32> to vector<2x32xf32>
    %420 = arith.addf %417, %419 : vector<2x32xf32>
    %421 = arith.negf %420 : vector<2x32xf32>
    %422 = math.exp %421 : vector<2x32xf32>
    %cst_138 = arith.constant 1.000000e+00 : f32
    %423 = vector.broadcast %cst_138 : f32 to vector<2x32xf32>
    %424 = arith.addf %423, %422 : vector<2x32xf32>
    %425 = arith.divf %423, %424 : vector<2x32xf32>
    %426 = arith.mulf %412, %425 : vector<2x32xf32>
    %c0_139 = arith.constant 0 : index
    %c0_140 = arith.constant 0 : index
    %427 = vector.load %arg30[%c0_139, %c0_140] : memref<2x32xf32, #tpu.memory_space<vmem>>, vector<2x32xf32>
    tpu.vector_store %arg30[%c0_139, %c0_140], %426 {strides = array<i32>} : memref<2x32xf32, #tpu.memory_space<vmem>>, vector<2x32xf32>,
    return
  }
  func.func @transform_0(%arg0: i32) -> (i32, i32, i32) {
    %c0_i32 = arith.constant 0 : i32
    %c0_i32_0 = arith.constant 0 : i32
    %c0_i32_1 = arith.constant 0 : i32
    %c0_i32_2 = arith.constant 0 : i32
    return %c0_i32, %c0_i32_0, %c0_i32_1 : i32, i32, i32
  }
  func.func @transform_1(%arg0: i32) -> (i32, i32, i32) {
    %c0_i32 = arith.constant 0 : i32
    %c0_i32_0 = arith.constant 0 : i32
    %c0_i32_1 = arith.constant 0 : i32
    %c0_i32_2 = arith.constant 0 : i32
    return %c0_i32, %c0_i32_0, %c0_i32_1 : i32, i32, i32
  }
  func.func @transform_2(%arg0: i32) -> (i32, i32, i32) {
    %c0_i32 = arith.constant 0 : i32
    %c0_i32_0 = arith.constant 0 : i32
    %c0_i32_1 = arith.constant 0 : i32
    %c0_i32_2 = arith.constant 0 : i32
    return %c0_i32, %c0_i32_0, %c0_i32_1 : i32, i32, i32
  }
  func.func @transform_3(%arg0: i32) -> (i32, i32, i32) {
    %c0_i32 = arith.constant 0 : i32
    %c0_i32_0 = arith.constant 0 : i32
    %c0_i32_1 = arith.constant 0 : i32
    %c0_i32_2 = arith.constant 0 : i32
    return %c0_i32, %c0_i32_0, %c0_i32_1 : i32, i32, i32
  }
  func.func @transform_4(%arg0: i32) -> (i32, i32) {
    %c0_i32 = arith.constant 0 : i32
    %c0_i32_0 = arith.constant 0 : i32
    %c0_i32_1 = arith.constant 0 : i32
    return %c0_i32, %c0_i32_0 : i32, i32
  }
  func.func @transform_5(%arg0: i32) -> (i32, i32) {
    %c0_i32 = arith.constant 0 : i32
    %c0_i32_0 = arith.constant 0 : i32
    %c0_i32_1 = arith.constant 0 : i32
    return %c0_i32, %c0_i32_0 : i32, i32
  }
  func.func @transform_6(%arg0: i32) -> (i32, i32) {
    %c0_i32 = arith.constant 0 : i32
    %c0_i32_0 = arith.constant 0 : i32
    %c0_i32_1 = arith.constant 0 : i32
    return %c0_i32, %c0_i32_0 : i32, i32
  }
  func.func @transform_7(%arg0: i32) -> (i32, i32) {
    %c0_i32 = arith.constant 0 : i32
    %c0_i32_0 = arith.constant 0 : i32
    %c0_i32_1 = arith.constant 0 : i32
    return %c0_i32, %c0_i32_0 : i32, i32
  }
  func.func @transform_8(%arg0: i32) -> (i32, i32) {
    %c0_i32 = arith.constant 0 : i32
    %c0_i32_0 = arith.constant 0 : i32
    %c0_i32_1 = arith.constant 0 : i32
    return %c0_i32, %c0_i32_0 : i32, i32
  }
  func.func @transform_9(%arg0: i32) -> (i32, i32) {
    %c0_i32 = arith.constant 0 : i32
    %c0_i32_0 = arith.constant 0 : i32
    %c0_i32_1 = arith.constant 0 : i32
    return %c0_i32, %c0_i32_0 : i32, i32
  }
  func.func @transform_10(%arg0: i32) -> (i32, i32) {
    %c0_i32 = arith.constant 0 : i32
    %c0_i32_0 = arith.constant 0 : i32
    %c0_i32_1 = arith.constant 0 : i32
    return %c0_i32, %c0_i32_0 : i32, i32
  }
  func.func @transform_11(%arg0: i32) -> (i32, i32) {
    %c0_i32 = arith.constant 0 : i32
    %c0_i32_0 = arith.constant 0 : i32
    %c0_i32_1 = arith.constant 0 : i32
    return %c0_i32, %c0_i32_0 : i32, i32
  }
  func.func @transform_12(%arg0: i32) -> (i32, i32) {
    %c0_i32 = arith.constant 0 : i32
    %c0_i32_0 = arith.constant 0 : i32
    %c0_i32_1 = arith.constant 0 : i32
    return %c0_i32, %c0_i32_0 : i32, i32
  }
  func.func @transform_13(%arg0: i32) -> (i32, i32) {
    %c0_i32 = arith.constant 0 : i32
    %c0_i32_0 = arith.constant 0 : i32
    %c0_i32_1 = arith.constant 0 : i32
    return %c0_i32, %c0_i32_0 : i32, i32
  }
  func.func @transform_14(%arg0: i32) -> (i32, i32) {
    %c0_i32 = arith.constant 0 : i32
    %c0_i32_0 = arith.constant 0 : i32
    %c0_i32_1 = arith.constant 0 : i32
    return %c0_i32, %c0_i32_0 : i32, i32
  }
  func.func @transform_15(%arg0: i32) -> (i32, i32) {
    %c0_i32 = arith.constant 0 : i32
    %c0_i32_0 = arith.constant 0 : i32
    %c0_i32_1 = arith.constant 0 : i32
    return %c0_i32, %c0_i32_0 : i32, i32
  }
  func.func @transform_16(%arg0: i32) -> (i32, i32) {
    %c0_i32 = arith.constant 0 : i32
    %c0_i32_0 = arith.constant 0 : i32
    %c0_i32_1 = arith.constant 0 : i32
    return %c0_i32, %c0_i32_0 : i32, i32
  }
  func.func @transform_17(%arg0: i32) -> (i32, i32) {
    %c0_i32 = arith.constant 0 : i32
    %c0_i32_0 = arith.constant 0 : i32
    %c0_i32_1 = arith.constant 0 : i32
    return %c0_i32, %c0_i32_0 : i32, i32
  }
  func.func @transform_18(%arg0: i32) -> (i32, i32) {
    %c0_i32 = arith.constant 0 : i32
    %c0_i32_0 = arith.constant 0 : i32
    %c0_i32_1 = arith.constant 0 : i32
    return %c0_i32, %c0_i32_0 : i32, i32
  }
  func.func @transform_19(%arg0: i32) -> (i32, i32) {
    %c0_i32 = arith.constant 0 : i32
    %c0_i32_0 = arith.constant 0 : i32
    %c0_i32_1 = arith.constant 0 : i32
    return %c0_i32, %c0_i32_0 : i32, i32
  }
  func.func @transform_20(%arg0: i32) -> (i32, i32) {
    %c0_i32 = arith.constant 0 : i32
    %c0_i32_0 = arith.constant 0 : i32
    %c0_i32_1 = arith.constant 0 : i32
    return %c0_i32, %c0_i32_0 : i32, i32
  }
  func.func @transform_21(%arg0: i32) -> (i32, i32) {
    %c0_i32 = arith.constant 0 : i32
    %c0_i32_0 = arith.constant 0 : i32
    %c0_i32_1 = arith.constant 0 : i32
    return %c0_i32, %c0_i32_0 : i32, i32
  }
  func.func @transform_22(%arg0: i32) -> (i32, i32) {
    %c0_i32 = arith.constant 0 : i32
    %c0_i32_0 = arith.constant 0 : i32
    %c0_i32_1 = arith.constant 0 : i32
    return %c0_i32, %c0_i32_0 : i32, i32
  }
  func.func @transform_23(%arg0: i32) -> (i32, i32) {
    %c0_i32 = arith.constant 0 : i32
    %c0_i32_0 = arith.constant 0 : i32
    %c0_i32_1 = arith.constant 0 : i32
    return %c0_i32, %c0_i32_0 : i32, i32
  }
  func.func @transform_24(%arg0: i32) -> (i32, i32) {
    %c0_i32 = arith.constant 0 : i32
    %c0_i32_0 = arith.constant 0 : i32
    %c0_i32_1 = arith.constant 0 : i32
    return %c0_i32, %c0_i32_0 : i32, i32
  }
  func.func @transform_25(%arg0: i32) -> (i32, i32) {
    %c0_i32 = arith.constant 0 : i32
    %c0_i32_0 = arith.constant 0 : i32
    %c0_i32_1 = arith.constant 0 : i32
    return %c0_i32, %c0_i32_0 : i32, i32
  }
  func.func @transform_26(%arg0: i32) -> (i32, i32) {
    %c0_i32 = arith.constant 0 : i32
    %c0_i32_0 = arith.constant 0 : i32
    %c0_i32_1 = arith.constant 0 : i32
    return %c0_i32, %c0_i32_0 : i32, i32
  }
  func.func @transform_27(%arg0: i32) -> (i32, i32) {
    %c0_i32 = arith.constant 0 : i32
    %c0_i32_0 = arith.constant 0 : i32
    %c0_i32_1 = arith.constant 0 : i32
    return %c0_i32, %c0_i32_0 : i32, i32
  }
  func.func @transform_28(%arg0: i32) -> (i32, i32) {
    %c0_i32 = arith.constant 0 : i32
    %c0_i32_0 = arith.constant 0 : i32
    %c0_i32_1 = arith.constant 0 : i32
    return %c0_i32, %c0_i32_0 : i32, i32
  }
  func.func @transform_29(%arg0: i32) -> (i32, i32) {
    %c0_i32 = arith.constant 0 : i32
    %c0_i32_0 = arith.constant 0 : i32
    %c0_i32_1 = arith.constant 0 : i32
    return %c0_i32, %c0_i32_0 : i32, i32
  }
}

</mosaic_0001>

<llo_original>
// kernel: spatial_pyramid_netvlad.1
$region0: #{spatial_pyramid_netvlad.1}
  #allocation0 [shape = 'u32[]', space=smem, size = 0x4, offset = 0x4, fixed_abs, tag = 'smem constant byte address 0x4 - core index']
  #allocation1 [shape = 'u32[144,128]{1,0:T(1,128)}', space=vmem, size = 0x12000, scoped, tag = 'internal scratch']
  %s0 = inlined_call_operand.smem [shape: u32[30], index: -1, kind: input, shape index: {}]
  %s1 = sld [smem:[%s0]]
  %s2 = scalar_lea.smem %s0, 1
  %s3 = sld [smem:[%s2]]
  %s4 = scalar_lea.smem %s0, 2
  %s5 = sld [smem:[%s4]]
  %s6 = scalar_lea.smem %s0, 3
  %s7 = sld [smem:[%s6]]
  %s8 = scalar_lea.smem %s0, 4
  %s9 = sld [smem:[%s8]]
  %s10 = scalar_lea.smem %s0, 5
  %s11 = sld [smem:[%s10]]
  %s12 = scalar_lea.smem %s0, 6
  %s13 = sld [smem:[%s12]]
  %s14 = scalar_lea.smem %s0, 7
  %s15 = sld [smem:[%s14]]
  %s16 = scalar_lea.smem %s0, 8
  %s17 = sld [smem:[%s16]]
  %s18 = scalar_lea.smem %s0, 9
  %s19 = sld [smem:[%s18]]
  %s20 = scalar_lea.smem %s0, 10
  %s21 = sld [smem:[%s20]]
  %s22 = scalar_lea.smem %s0, 11
  %s23 = sld [smem:[%s22]]
  %s24 = scalar_lea.smem %s0, 12
  %s25 = sld [smem:[%s24]]
  %s26 = scalar_lea.smem %s0, 13
  %s27 = sld [smem:[%s26]]
  %s28 = scalar_lea.smem %s0, 14
  %s29 = sld [smem:[%s28]]
  %s30 = scalar_lea.smem %s0, 15
  %s31 = sld [smem:[%s30]]
  %s32 = scalar_lea.smem %s0, 16
  %s33 = sld [smem:[%s32]]
  %s34 = scalar_lea.smem %s0, 17
  %s35 = sld [smem:[%s34]]
  %s36 = scalar_lea.smem %s0, 18
  %s37 = sld [smem:[%s36]]
  %s38 = scalar_lea.smem %s0, 19
  %s39 = sld [smem:[%s38]]
  %s40 = scalar_lea.smem %s0, 20
  %s41 = sld [smem:[%s40]]
  %s42 = scalar_lea.smem %s0, 21
  %s43 = sld [smem:[%s42]]
  %s44 = scalar_lea.smem %s0, 22
  %s45 = sld [smem:[%s44]]
  %s46 = scalar_lea.smem %s0, 23
  %s47 = sld [smem:[%s46]]
  %s48 = scalar_lea.smem %s0, 24
  %s49 = sld [smem:[%s48]]
  %s50 = scalar_lea.smem %s0, 25
  %s51 = sld [smem:[%s50]]
  %s52 = scalar_lea.smem %s0, 26
  %s53 = sld [smem:[%s52]]
  %s54 = scalar_lea.smem %s0, 27
  %s55 = sld [smem:[%s54]]
  %s56 = scalar_lea.smem %s0, 28
  %s57 = sld [smem:[%s56]]
  %s58 = scalar_lea.smem %s0, 29
  %s59 = sld [smem:[%s58]]
  %s60 = sld [smem:[#allocation0]]
  $region126: #{spatial_pyramid_netvlad.1} parent=0
    _
  %s62 = ssub.s32 1, %s60
  %s63 = scalar_select 0, %s62, %s60
  $region1: #{spatial_pyramid_netvlad.1} parent=0
    #allocation2 [shape = 'u8[1024]{0}', space=vmem, size = 0x400, scoped, tag = 'output window, operand 0, single buffered']
    #allocation3 [shape = 's32[1]{0}', space=sflag, size = 0x4, scoped, tag = 'scoped memory for spatial_pyramid_netvlad.1']
    %64 = vsyncpa [#allocation3], 0
    // Predicated region
    $region2: #{spatial_pyramid_netvlad.1} parent=1 // pred_check
      _
    $region3: #{spatial_pyramid_netvlad.1} parent=1 // pred_check_branch
      %66 = sbr.rel (0) target = $region5
    $region4: #{spatial_pyramid_netvlad.1} parent=1 // pred_region
      _
    $region5: #{spatial_pyramid_netvlad.1} parent=1 // pred_fallthru
      _
    // Predicated region
    $region6: #{spatial_pyramid_netvlad.1} parent=1 // pred_check
      _
    $region7: #{spatial_pyramid_netvlad.1} parent=1 // pred_check_branch
      %68 = sbr.rel (0) target = $region9
    $region8: #{spatial_pyramid_netvlad.1} parent=1 // pred_region
      _
    $region9: #{spatial_pyramid_netvlad.1} parent=1 // pred_fallthru
      _
    // Predicated region
    $region10: #{spatial_pyramid_netvlad.1} parent=1 // pred_check
      _
    $region11: #{spatial_pyramid_netvlad.1} parent=1 // pred_check_branch
      %70 = sbr.rel (0) target = $region13
    $region12: #{spatial_pyramid_netvlad.1} parent=1 // pred_region
      _
    $region13: #{spatial_pyramid_netvlad.1} parent=1 // pred_fallthru
      _
    // Predicated region
    $region14: #{spatial_pyramid_netvlad.1} parent=1 // pred_check
      _
    $region15: #{spatial_pyramid_netvlad.1} parent=1 // pred_check_branch
      %72 = sbr.rel (0) target = $region17
    $region16: #{spatial_pyramid_netvlad.1} parent=1 // pred_region
      _
    $region17: #{spatial_pyramid_netvlad.1} parent=1 // pred_fallthru
      _
    // Predicated region
    $region18: #{spatial_pyramid_netvlad.1} parent=1 // pred_check
      _
    $region19: #{spatial_pyramid_netvlad.1} parent=1 // pred_check_branch
      %74 = sbr.rel (0) target = $region21
    $region20: #{spatial_pyramid_netvlad.1} parent=1 // pred_region
      _
    $region21: #{spatial_pyramid_netvlad.1} parent=1 // pred_fallthru
      _
    // Predicated region
    $region22: #{spatial_pyramid_netvlad.1} parent=1 // pred_check
      _
    $region23: #{spatial_pyramid_netvlad.1} parent=1 // pred_check_branch
      %76 = sbr.rel (0) target = $region25
    $region24: #{spatial_pyramid_netvlad.1} parent=1 // pred_region
      _
    $region25: #{spatial_pyramid_netvlad.1} parent=1 // pred_fallthru
      _
    // Predicated region
    $region26: #{spatial_pyramid_netvlad.1} parent=1 // pred_check
      _
    $region27: #{spatial_pyramid_netvlad.1} parent=1 // pred_check_branch
      %78 = sbr.rel (0) target = $region29
    $region28: #{spatial_pyramid_netvlad.1} parent=1 // pred_region
      _
    $region29: #{spatial_pyramid_netvlad.1} parent=1 // pred_fallthru
      _
    // Predicated region
    $region30: #{spatial_pyramid_netvlad.1} parent=1 // pred_check
      _
    $region31: #{spatial_pyramid_netvlad.1} parent=1 // pred_check_branch
      %80 = sbr.rel (0) target = $region33
    $region32: #{spatial_pyramid_netvlad.1} parent=1 // pred_region
      _
    $region33: #{spatial_pyramid_netvlad.1} parent=1 // pred_fallthru
      _
    // Predicated region
    $region34: #{spatial_pyramid_netvlad.1} parent=1 // pred_check
      _
    $region35: #{spatial_pyramid_netvlad.1} parent=1 // pred_check_branch
      %82 = sbr.rel (0) target = $region37
    $region36: #{spatial_pyramid_netvlad.1} parent=1 // pred_region
      _
    $region37: #{spatial_pyramid_netvlad.1} parent=1 // pred_fallthru
      _
    // Predicated region
    $region38: #{spatial_pyramid_netvlad.1} parent=1 // pred_check
      _
    $region39: #{spatial_pyramid_netvlad.1} parent=1 // pred_check_branch
      %84 = sbr.rel (0) target = $region41
    $region40: #{spatial_pyramid_netvlad.1} parent=1 // pred_region
      _
    $region41: #{spatial_pyramid_netvlad.1} parent=1 // pred_fallthru
      _
    // Predicated region
    $region42: #{spatial_pyramid_netvlad.1} parent=1 // pred_check
      _
    $region43: #{spatial_pyramid_netvlad.1} parent=1 // pred_check_branch
      %86 = sbr.rel (0) target = $region45
    $region44: #{spatial_pyramid_netvlad.1} parent=1 // pred_region
      _
    $region45: #{spatial_pyramid_netvlad.1} parent=1 // pred_fallthru
      _
    // Predicated region
    $region46: #{spatial_pyramid_netvlad.1} parent=1 // pred_check
      _
    $region47: #{spatial_pyramid_netvlad.1} parent=1 // pred_check_branch
      %88 = sbr.rel (0) target = $region49
    $region48: #{spatial_pyramid_netvlad.1} parent=1 // pred_region
      _
    $region49: #{spatial_pyramid_netvlad.1} parent=1 // pred_fallthru
      _
    // Predicated region
    $region50: #{spatial_pyramid_netvlad.1} parent=1 // pred_check
      _
    $region51: #{spatial_pyramid_netvlad.1} parent=1 // pred_check_branch
      %90 = sbr.rel (0) target = $region53
    $region52: #{spatial_pyramid_netvlad.1} parent=1 // pred_region
      _
    $region53: #{spatial_pyramid_netvlad.1} parent=1 // pred_fallthru
      _
    // Predicated region
    $region54: #{spatial_pyramid_netvlad.1} parent=1 // pred_check
      _
    $region55: #{spatial_pyramid_netvlad.1} parent=1 // pred_check_branch
      %92 = sbr.rel (0) target = $region57
    $region56: #{spatial_pyramid_netvlad.1} parent=1 // pred_region
      _
    $region57: #{spatial_pyramid_netvlad.1} parent=1 // pred_fallthru
      _
    // Predicated region
    $region58: #{spatial_pyramid_netvlad.1} parent=1 // pred_check
      _
    $region59: #{spatial_pyramid_netvlad.1} parent=1 // pred_check_branch
      %94 = sbr.rel (0) target = $region61
    $region60: #{spatial_pyramid_netvlad.1} parent=1 // pred_region
      _
    $region61: #{spatial_pyramid_netvlad.1} parent=1 // pred_fallthru
      _
    // Predicated region
    $region62: #{spatial_pyramid_netvlad.1} parent=1 // pred_check
      _
    $region63: #{spatial_pyramid_netvlad.1} parent=1 // pred_check_branch
      %96 = sbr.rel (0) target = $region65
    $region64: #{spatial_pyramid_netvlad.1} parent=1 // pred_region
      _
    $region65: #{spatial_pyramid_netvlad.1} parent=1 // pred_fallthru
      _
    // Predicated region
    $region66: #{spatial_pyramid_netvlad.1} parent=1 // pred_check
      _
    $region67: #{spatial_pyramid_netvlad.1} parent=1 // pred_check_branch
      %98 = sbr.rel (0) target = $region69
    $region68: #{spatial_pyramid_netvlad.1} parent=1 // pred_region
      _
    $region69: #{spatial_pyramid_netvlad.1} parent=1 // pred_fallthru
      _
    // Predicated region
    $region70: #{spatial_pyramid_netvlad.1} parent=1 // pred_check
      _
    $region71: #{spatial_pyramid_netvlad.1} parent=1 // pred_check_branch
      %100 = sbr.rel (0) target = $region73
    $region72: #{spatial_pyramid_netvlad.1} parent=1 // pred_region
      _
    $region73: #{spatial_pyramid_netvlad.1} parent=1 // pred_fallthru
      _
    // Predicated region
    $region74: #{spatial_pyramid_netvlad.1} parent=1 // pred_check
      _
    $region75: #{spatial_pyramid_netvlad.1} parent=1 // pred_check_branch
      %102 = sbr.rel (0) target = $region77
    $region76: #{spatial_pyramid_netvlad.1} parent=1 // pred_region
      _
    $region77: #{spatial_pyramid_netvlad.1} parent=1 // pred_fallthru
      _
    // Predicated region
    $region78: #{spatial_pyramid_netvlad.1} parent=1 // pred_check
      _
    $region79: #{spatial_pyramid_netvlad.1} parent=1 // pred_check_branch
      %104 = sbr.rel (0) target = $region81
    $region80: #{spatial_pyramid_netvlad.1} parent=1 // pred_region
      _
    $region81: #{spatial_pyramid_netvlad.1} parent=1 // pred_fallthru
      _
    // Predicated region
    $region82: #{spatial_pyramid_netvlad.1} parent=1 // pred_check
      _
    $region83: #{spatial_pyramid_netvlad.1} parent=1 // pred_check_branch
      %106 = sbr.rel (0) target = $region85
    $region84: #{spatial_pyramid_netvlad.1} parent=1 // pred_region
      _
    $region85: #{spatial_pyramid_netvlad.1} parent=1 // pred_fallthru
      _
    // Predicated region
    $region86: #{spatial_pyramid_netvlad.1} parent=1 // pred_check
      _
    $region87: #{spatial_pyramid_netvlad.1} parent=1 // pred_check_branch
      %108 = sbr.rel (0) target = $region89
    $region88: #{spatial_pyramid_netvlad.1} parent=1 // pred_region
      _
    $region89: #{spatial_pyramid_netvlad.1} parent=1 // pred_fallthru
      _
    // Predicated region
    $region90: #{spatial_pyramid_netvlad.1} parent=1 // pred_check
      _
    $region91: #{spatial_pyramid_netvlad.1} parent=1 // pred_check_branch
      %110 = sbr.rel (0) target = $region93
    $region92: #{spatial_pyramid_netvlad.1} parent=1 // pred_region
      _
    $region93: #{spatial_pyramid_netvlad.1} parent=1 // pred_fallthru
      _
    // Predicated region
    $region94: #{spatial_pyramid_netvlad.1} parent=1 // pred_check
      _
    $region95: #{spatial_pyramid_netvlad.1} parent=1 // pred_check_branch
      %112 = sbr.rel (0) target = $region97
    $region96: #{spatial_pyramid_netvlad.1} parent=1 // pred_region
      _
    $region97: #{spatial_pyramid_netvlad.1} parent=1 // pred_fallthru
      _
    // Predicated region
    $region98: #{spatial_pyramid_netvlad.1} parent=1 // pred_check
      _
    $region99: #{spatial_pyramid_netvlad.1} parent=1 // pred_check_branch
      %114 = sbr.rel (0) target = $region101
    $region100: #{spatial_pyramid_netvlad.1} parent=1 // pred_region
      _
    $region101: #{spatial_pyramid_netvlad.1} parent=1 // pred_fallthru
      _
    // Predicated region
    $region102: #{spatial_pyramid_netvlad.1} parent=1 // pred_check
      _
    $region103: #{spatial_pyramid_netvlad.1} parent=1 // pred_check_branch
      %116 = sbr.rel (0) target = $region105
    $region104: #{spatial_pyramid_netvlad.1} parent=1 // pred_region
      _
    $region105: #{spatial_pyramid_netvlad.1} parent=1 // pred_fallthru
      _
    // Predicated region
    $region106: #{spatial_pyramid_netvlad.1} parent=1 // pred_check
      _
    $region107: #{spatial_pyramid_netvlad.1} parent=1 // pred_check_branch
      %118 = sbr.rel (0) target = $region109
    $region108: #{spatial_pyramid_netvlad.1} parent=1 // pred_region
      _
    $region109: #{spatial_pyramid_netvlad.1} parent=1 // pred_fallthru
      _
    // Predicated region
    $region110: #{spatial_pyramid_netvlad.1} parent=1 // pred_check
      _
    $region111: #{spatial_pyramid_netvlad.1} parent=1 // pred_check_branch
      %120 = sbr.rel (0) target = $region113
    $region112: #{spatial_pyramid_netvlad.1} parent=1 // pred_region
      _
    $region113: #{spatial_pyramid_netvlad.1} parent=1 // pred_fallthru
      _
    // Predicated region
    $region114: #{spatial_pyramid_netvlad.1} parent=1 // pred_check
      _
    $region115: #{spatial_pyramid_netvlad.1} parent=1 // pred_check_branch
      %122 = sbr.rel (0) target = $region117
    $region116: #{spatial_pyramid_netvlad.1} parent=1 // pred_region
      _
    $region117: #{spatial_pyramid_netvlad.1} parent=1 // pred_fallthru
      _
    %v123 = vld [vmem:[%s9] sm:$0xff]
    %v124 = vld [vmem:[%s9 + $0x8] sm:$0xff]
    %v125 = vld [vmem:[%s17] sm:$0xff]
    %v126 = vld [vmem:[%s17 + $0x8] sm:$0xff]
    %v127 = vld [vmem:[%s25] sm:$0x1]
    %v128 = vld [vmem:[%s33] sm:$0x1]
    %v129 = vld [vmem:[%s41] sm:$0xff]
    %v130 = vld [vmem:[%s41 + $0x8] sm:$0xff]
    %v131 = vld [vmem:[%s41 + $0x10] sm:$0xff]
    %v132 = vld [vmem:[%s41 + $0x18] sm:$0xff]
    %v133 = vld [vmem:[%s1] sm:$0xff]
    %v134 = vld [vmem:[%s1 + $0x8] sm:$0xff]
    %135 = vxpose.xlu0.b32.start [1/16] %v133, 128
    %136 = vxpose.xlu0.b32.cont [2/16] %v134, 128
    %137 = vxpose.xlu0.b32.cont [3/16] 0.0, 128
    %138 = vxpose.xlu0.b32.cont [4/16] 0.0, 128
    %139 = vxpose.xlu0.b32.cont [5/16] 0.0, 128
    %140 = vxpose.xlu0.b32.cont [6/16] 0.0, 128
    %141 = vxpose.xlu0.b32.cont [7/16] 0.0, 128
    %142 = vxpose.xlu0.b32.cont [8/16] 0.0, 128
    %143 = vxpose.xlu0.b32.cont [9/16] 0.0, 128
    %144 = vxpose.xlu0.b32.cont [10/16] 0.0, 128
    %145 = vxpose.xlu0.b32.cont [11/16] 0.0, 128
    %146 = vxpose.xlu0.b32.cont [12/16] 0.0, 128
    %147 = vxpose.xlu0.b32.cont [13/16] 0.0, 128
    %148 = vxpose.xlu0.b32.cont [14/16] 0.0, 128
    %149 = vxpose.xlu0.b32.cont [15/16] 0.0, 128
    %150 = vxpose.xlu0.b32.end [16/16] 0.0, 128
    %v151 = vpop.trf.xlu0
    %v152 = vpop.trf.xlu0
    %v153 = vpop.trf.xlu0
    %v154 = vpop.trf.xlu0
    %v155 = vpop.trf.xlu0
    %v156 = vpop.trf.xlu0
    %v157 = vpop.trf.xlu0
    %v158 = vpop.trf.xlu0
    %v159 = vpop.trf.xlu0
    %v160 = vpop.trf.xlu0
    %v161 = vpop.trf.xlu0
    %v162 = vpop.trf.xlu0
    %v163 = vpop.trf.xlu0
    %v164 = vpop.trf.xlu0
    %v165 = vpop.trf.xlu0
    %v166 = vpop.trf.xlu0
    %vm167 = vcmask 130048
    %v169 = vsel %vm167, %v151, 0
    %v172 = vsel %vm167, %v152, 0
    %v175 = vsel %vm167, %v153, 0
    %v178 = vsel %vm167, %v154, 0
    %v181 = vsel %vm167, %v155, 0
    %v184 = vsel %vm167, %v156, 0
    %v187 = vsel %vm167, %v157, 0
    %v190 = vsel %vm167, %v158, 0
    %192 = vmatprep.subr.mxu0 0.0
    %193 = vmatpush1.msra.mxu0 %v123
    %194 = vmatprep.subr.mxu0 0.0
    %195 = vmatpush1.msra.mxu0 %v124
    %196 = vmatprep.subr.mxu0 0.0
    %197 = vmatpush1.msra.mxu0 0.0
    %198 = vmatprep.subr.mxu0 0.0
    %199 = vmatpush1.msra.mxu0 0.0
    %200 = vmatprep.subr.mxu0 0.0
    %201 = vmatpush1.msra.mxu0 0.0
    %202 = vmatprep.subr.mxu0 0.0
    %203 = vmatpush1.msra.mxu0 0.0
    %204 = vmatprep.subr.mxu0 0.0
    %205 = vmatpush1.msra.mxu0 0.0
    %206 = vmatprep.subr.mxu0 0.0
    %207 = vmatpush1.msra.mxu0 0.0
    %208 = vmatprep.subr.mxu0 0.0
    %209 = vmatpush1.msra.mxu0 0.0
    %210 = vmatprep.subr.mxu0 0.0
    %211 = vmatpush1.msra.mxu0 0.0
    %212 = vmatprep.subr.mxu0 0.0
    %213 = vmatpush1.msra.mxu0 0.0
    %214 = vmatprep.subr.mxu0 0.0
    %215 = vmatpush1.msra.mxu0 0.0
    %216 = vmatprep.subr.mxu0 0.0
    %217 = vmatpush1.msra.mxu0 0.0
    %218 = vmatprep.subr.mxu0 0.0
    %219 = vmatpush1.msra.mxu0 0.0
    %220 = vmatprep.subr.mxu0 0.0
    %221 = vmatpush1.msra.mxu0 0.0
    %222 = vmatprep.subr.mxu0 0.0
    %223 = vmatpush1.msra.mxu0 0.0
    %224 = vmatprep.subr.mxu0 0.0
    %225 = vmatpush1.msra.mxu0 0.0
    %226 = vmatprep.subr.mxu0 0.0
    %227 = vmatpush1.msra.mxu0 0.0
    %228 = vmatprep.subr.mxu0 0.0
    %229 = vmatpush1.msra.mxu0 0.0
    %230 = vmatprep.subr.mxu0 0.0
    %231 = vmatpush1.msra.mxu0 0.0
    %232 = vmatprep.subr.mxu0 0.0
    %233 = vmatpush1.msra.mxu0 0.0
    %234 = vmatprep.subr.mxu0 0.0
    %235 = vmatpush1.msra.mxu0 0.0
    %236 = vmatprep.subr.mxu0 0.0
    %237 = vmatpush1.msra.mxu0 0.0
    %238 = vmatprep.subr.mxu0 0.0
    %239 = vmatpush1.msra.mxu0 0.0
    %240 = vmatprep.subr.mxu0 0.0
    %241 = vmatpush1.msra.mxu0 0.0
    %242 = vmatprep.subr.mxu0 0.0
    %243 = vmatpush1.msra.mxu0 0.0
    %244 = vmatprep.subr.mxu0 0.0
    %245 = vmatpush1.msra.mxu0 0.0
    %246 = vmatprep.subr.mxu0 0.0
    %247 = vmatpush1.msra.mxu0 0.0
    %248 = vmatprep.subr.mxu0 0.0
    %249 = vmatpush1.msra.mxu0 0.0
    %250 = vmatprep.subr.mxu0 0.0
    %251 = vmatpush1.msra.mxu0 0.0
    %252 = vmatprep.subr.mxu0 0.0
    %253 = vmatpush1.msra.mxu0 0.0
    %254 = vmatprep.subr.mxu0 0.0
    %255 = vmatpush1.msra.mxu0 0.0
    %256 = vmatprep.mubr.f32.mxu0 0.0
    %257 = vmatmul.mubr.f32.gmra.mrb[0].mxu0 %v169
    %v258 = vpop.f32.mrb[0].mxu0
    %v259 = vadd.f32 0.0, %v258
    %v260 = vpop.f32.mrb[0].mxu0
    %261 = vmatprep.mubr.f32.mxu0 0.0
    %262 = vmatmul.mubr.f32.gmra.mrb[0].mxu0 %v172
    %v263 = vpop.f32.mrb[0].mxu0
    %v264 = vadd.f32 0.0, %v263
    %v265 = vpop.f32.mrb[0].mxu0
    %266 = vmatprep.mubr.f32.mxu0 0.0
    %267 = vmatmul.mubr.f32.gmra.mrb[0].mxu0 %v175
    %v268 = vpop.f32.mrb[0].mxu0
    %v269 = vadd.f32 0.0, %v268
    %v270 = vpop.f32.mrb[0].mxu0
    %271 = vmatprep.mubr.f32.mxu0 0.0
    %272 = vmatmul.mubr.f32.gmra.mrb[0].mxu0 %v178
    %v273 = vpop.f32.mrb[0].mxu0
    %v274 = vadd.f32 0.0, %v273
    %v275 = vpop.f32.mrb[0].mxu0
    %276 = vmatprep.mubr.f32.mxu0 0.0
    %277 = vmatmul.mubr.f32.gmra.mrb[0].mxu0 %v181
    %v278 = vpop.f32.mrb[0].mxu0
    %v279 = vadd.f32 0.0, %v278
    %v280 = vpop.f32.mrb[0].mxu0
    %281 = vmatprep.mubr.f32.mxu0 0.0
    %282 = vmatmul.mubr.f32.gmra.mrb[0].mxu0 %v184
    %v283 = vpop.f32.mrb[0].mxu0
    %v284 = vadd.f32 0.0, %v283
    %v285 = vpop.f32.mrb[0].mxu0
    %286 = vmatprep.mubr.f32.mxu0 0.0
    %287 = vmatmul.mubr.f32.gmra.mrb[0].mxu0 %v187
    %v288 = vpop.f32.mrb[0].mxu0
    %v289 = vadd.f32 0.0, %v288
    %v290 = vpop.f32.mrb[0].mxu0
    %291 = vmatprep.mubr.f32.mxu0 0.0
    %292 = vmatmul.mubr.f32.gmra.mrb[0].mxu0 %v190
    %v293 = vpop.f32.mrb[0].mxu0
    %v294 = vadd.f32 0.0, %v293
    %v295 = vpop.f32.mrb[0].mxu0
    %296 = vdwg.mxu0
    %v298 = vlaneseq
    %v299 = vshrl.u32 %v298, 7
    %v300 = vsub.s32 0, %v299
    %v301 = vrot.slane %v127, %v300
    %v303 = vmul.f32 %v259, %v301
    %v304 = vmul.f32 %v264, %v301
    %v305 = vmul.f32 %v269, %v301
    %v306 = vmul.f32 %v274, %v301
    %v307 = vmul.f32 %v279, %v301
    %v308 = vmul.f32 %v284, %v301
    %v309 = vmul.f32 %v289, %v301
    %v310 = vmul.f32 %v294, %v301
    %v312 = vlaneseq
    %v313 = vshrl.u32 %v312, 7
    %v314 = vsub.s32 0, %v313
    %v315 = vrot.slane %v128, %v314
    %v317 = vadd.f32 %v303, %v315
    %v318 = vadd.f32 %v304, %v315
    %v319 = vadd.f32 %v305, %v315
    %v320 = vadd.f32 %v306, %v315
    %v321 = vadd.f32 %v307, %v315
    %v322 = vadd.f32 %v308, %v315
    %v323 = vadd.f32 %v309, %v315
    %v324 = vadd.f32 %v310, %v315
    %vm325 = vcmask 64512
    %v326 = vsel %vm325, %v317, -inf
    %327 = vmax.xlane.f32.xlu0 %v326
    %v328 = vpop.xlane.xlu0 %327
    %v329 = vsel %vm325, %v318, -inf
    %330 = vmax.xlane.f32.xlu0 %v329
    %v331 = vpop.xlane.xlu0 %330
    %v332 = vsel %vm325, %v319, -inf
    %333 = vmax.xlane.f32.xlu0 %v332
    %v334 = vpop.xlane.xlu0 %333
    %v335 = vsel %vm325, %v320, -inf
    %336 = vmax.xlane.f32.xlu0 %v335
    %v337 = vpop.xlane.xlu0 %336
    %v338 = vsel %vm325, %v321, -inf
    %339 = vmax.xlane.f32.xlu0 %v338
    %v340 = vpop.xlane.xlu0 %339
    %v341 = vsel %vm325, %v322, -inf
    %342 = vmax.xlane.f32.xlu0 %v341
    %v343 = vpop.xlane.xlu0 %342
    %v344 = vsel %vm325, %v323, -inf
    %345 = vmax.xlane.f32.xlu0 %v344
    %v346 = vpop.xlane.xlu0 %345
    %v347 = vsel %vm325, %v324, -inf
    %348 = vmax.xlane.f32.xlu0 %v347
    %v349 = vpop.xlane.xlu0 %348
    %v350 = vsub.f32 %v317, %v328
    %v351 = vsub.f32 %v318, %v331
    %v352 = vsub.f32 %v319, %v334
    %v353 = vsub.f32 %v320, %v337
    %v354 = vsub.f32 %v321, %v340
    %v355 = vsub.f32 %v322, %v343
    %v356 = vsub.f32 %v323, %v346
    %v357 = vsub.f32 %v324, %v349
    %v358 = vmul.f32 %v350, 1.442695
    %v359 = vpow.pop %v358
    %v360 = vmul.f32 %v351, 1.442695
    %v361 = vpow.pop %v360
    %v362 = vmul.f32 %v352, 1.442695
    %v363 = vpow.pop %v362
    %v364 = vmul.f32 %v353, 1.442695
    %v365 = vpow.pop %v364
    %v366 = vmul.f32 %v354, 1.442695
    %v367 = vpow.pop %v366
    %v368 = vmul.f32 %v355, 1.442695
    %v369 = vpow.pop %v368
    %v370 = vmul.f32 %v356, 1.442695
    %v371 = vpow.pop %v370
    %v372 = vmul.f32 %v357, 1.442695
    %v373 = vpow.pop %v372
    %v374 = vsel %vm325, %v359, 0.0
    %375 = vadd.xlane.f32.xlu0 %v374
    %v376 = vpop.xlane.xlu0 %375
    %v377 = vsel %vm325, %v361, 0.0
    %378 = vadd.xlane.f32.xlu0 %v377
    %v379 = vpop.xlane.xlu0 %378
    %v380 = vsel %vm325, %v363, 0.0
    %381 = vadd.xlane.f32.xlu0 %v380
    %v382 = vpop.xlane.xlu0 %381
    %v383 = vsel %vm325, %v365, 0.0
    %384 = vadd.xlane.f32.xlu0 %v383
    %v385 = vpop.xlane.xlu0 %384
    %v386 = vsel %vm325, %v367, 0.0
    %387 = vadd.xlane.f32.xlu0 %v386
    %v388 = vpop.xlane.xlu0 %387
    %v389 = vsel %vm325, %v369, 0.0
    %390 = vadd.xlane.f32.xlu0 %v389
    %v391 = vpop.xlane.xlu0 %390
    %v392 = vsel %vm325, %v371, 0.0
    %393 = vadd.xlane.f32.xlu0 %v392
    %v394 = vpop.xlane.xlu0 %393
    %v395 = vsel %vm325, %v373, 0.0
    %396 = vadd.xlane.f32.xlu0 %v395
    %v397 = vpop.xlane.xlu0 %396
    %v398 = vrcp.pop %v376
    %v399 = vrcp.pop %v379
    %v400 = vrcp.pop %v382
    %v401 = vrcp.pop %v385
    %v402 = vrcp.pop %v388
    %v403 = vrcp.pop %v391
    %v404 = vrcp.pop %v394
    %v405 = vrcp.pop %v397
    %v406 = vmul.f32 %v359, %v398
    %v407 = vmul.f32 %v361, %v399
    %v408 = vmul.f32 %v363, %v400
    %v409 = vmul.f32 %v365, %v401
    %v410 = vmul.f32 %v367, %v402
    %v411 = vmul.f32 %v369, %v403
    %v412 = vmul.f32 %v371, %v404
    %v413 = vmul.f32 %v373, %v405
    %v414 = vsel %vm325, %v406, 0.0
    %v415 = vsel %vm325, %v407, 0.0
    %v416 = vadd.f32 %v414, %v415
    %v417 = vsel %vm325, %v408, 0.0
    %v418 = vadd.f32 %v416, %v417
    %v419 = vsel %vm325, %v409, 0.0
    %v420 = vadd.f32 %v418, %v419
    %v421 = vsel %vm325, %v410, 0.0
    %v422 = vadd.f32 %v420, %v421
    %v423 = vsel %vm325, %v411, 0.0
    %v424 = vadd.f32 %v422, %v423
    %v425 = vsel %vm325, %v412, 0.0
    %v426 = vadd.f32 %v424, %v425
    %v427 = vsel %vm325, %v413, 0.0
    %v428 = vadd.f32 %v426, %v427
    %v429 = vrot.slane %v428, 4
    %v430 = vadd.f32 %v428, %v429
    %v431 = vrot.slane %v430, 2
    %v432 = vadd.f32 %v430, %v431
    %v433 = vrot.slane %v432, 1
    %v434 = vadd.f32 %v432, %v433
    %vm435 = vcmask 523264
    %v437 = vsel %vm435, %v133, 0
    %v440 = vsel %vm435, %v134, 0
    %442 = vmatprep.subr.mxu0 0.0
    %443 = vmatpush1.msra.mxu0 %v406
    %444 = vmatprep.subr.mxu0 0.0
    %445 = vmatpush1.msra.mxu0 %v407
    %446 = vmatprep.subr.mxu0 0.0
    %447 = vmatpush1.msra.mxu0 %v408
    %448 = vmatprep.subr.mxu0 0.0
    %449 = vmatpush1.msra.mxu0 %v409
    %450 = vmatprep.subr.mxu0 0.0
    %451 = vmatpush1.msra.mxu0 %v410
    %452 = vmatprep.subr.mxu0 0.0
    %453 = vmatpush1.msra.mxu0 %v411
    %454 = vmatprep.subr.mxu0 0.0
    %455 = vmatpush1.msra.mxu0 %v412
    %456 = vmatprep.subr.mxu0 0.0
    %457 = vmatpush1.msra.mxu0 %v413
    %458 = vmatprep.subr.mxu0 0.0
    %459 = vmatpush1.msra.mxu0 0.0
    %460 = vmatprep.subr.mxu0 0.0
    %461 = vmatpush1.msra.mxu0 0.0
    %462 = vmatprep.subr.mxu0 0.0
    %463 = vmatpush1.msra.mxu0 0.0
    %464 = vmatprep.subr.mxu0 0.0
    %465 = vmatpush1.msra.mxu0 0.0
    %466 = vmatprep.subr.mxu0 0.0
    %467 = vmatpush1.msra.mxu0 0.0
    %468 = vmatprep.subr.mxu0 0.0
    %469 = vmatpush1.msra.mxu0 0.0
    %470 = vmatprep.subr.mxu0 0.0
    %471 = vmatpush1.msra.mxu0 0.0
    %472 = vmatprep.subr.mxu0 0.0
    %473 = vmatpush1.msra.mxu0 0.0
    %474 = vmatprep.subr.mxu0 0.0
    %475 = vmatpush1.msra.mxu0 0.0
    %476 = vmatprep.subr.mxu0 0.0
    %477 = vmatpush1.msra.mxu0 0.0
    %478 = vmatprep.subr.mxu0 0.0
    %479 = vmatpush1.msra.mxu0 0.0
    %480 = vmatprep.subr.mxu0 0.0
    %481 = vmatpush1.msra.mxu0 0.0
    %482 = vmatprep.subr.mxu0 0.0
    %483 = vmatpush1.msra.mxu0 0.0
    %484 = vmatprep.subr.mxu0 0.0
    %485 = vmatpush1.msra.mxu0 0.0
    %486 = vmatprep.subr.mxu0 0.0
    %487 = vmatpush1.msra.mxu0 0.0
    %488 = vmatprep.subr.mxu0 0.0
    %489 = vmatpush1.msra.mxu0 0.0
    %490 = vmatprep.subr.mxu0 0.0
    %491 = vmatpush1.msra.mxu0 0.0
    %492 = vmatprep.subr.mxu0 0.0
    %493 = vmatpush1.msra.mxu0 0.0
    %494 = vmatprep.subr.mxu0 0.0
    %495 = vmatpush1.msra.mxu0 0.0
    %496 = vmatprep.subr.mxu0 0.0
    %497 = vmatpush1.msra.mxu0 0.0
    %498 = vmatprep.subr.mxu0 0.0
    %499 = vmatpush1.msra.mxu0 0.0
    %500 = vmatprep.subr.mxu0 0.0
    %501 = vmatpush1.msra.mxu0 0.0
    %502 = vmatprep.subr.mxu0 0.0
    %503 = vmatpush1.msra.mxu0 0.0
    %504 = vmatprep.subr.mxu0 0.0
    %505 = vmatpush1.msra.mxu0 0.0
    %506 = vmatprep.mubr.f32.mxu0 0.0
    %507 = vmatmul.mubr.f32.gmra.mrb[0].mxu0 %v437
    %v508 = vpop.f32.mrb[0].mxu0
    %v509 = vadd.f32 0.0, %v508
    %v510 = vpop.f32.mrb[0].mxu0
    %511 = vmatprep.mubr.f32.mxu0 0.0
    %512 = vmatmul.mubr.f32.gmra.mrb[0].mxu0 %v440
    %v513 = vpop.f32.mrb[0].mxu0
    %v514 = vadd.f32 0.0, %v513
    %v515 = vpop.f32.mrb[0].mxu0
    %516 = vdwg.mxu0
    %v517 = vmul.f32 %v434, %v125
    %v518 = vmul.f32 %v434, %v126
    %v519 = vsub.f32 %v509, %v517
    %v520 = vsub.f32 %v514, %v518
    %v521 = vmul.f32 %v519, %v519
    %v522 = vmul.f32 %v520, %v520
    %v523 = vsel %vm325, %v521, 0.0
    %v524 = vsel %vm325, %v522, 0.0
    %v525 = vadd.f32 %v523, %v524
    %v526 = vrot.slane %v525, 4
    %v527 = vadd.f32 %v525, %v526
    %v528 = vrot.slane %v527, 2
    %v529 = vadd.f32 %v527, %v528
    %v530 = vrot.slane %v529, 1
    %v531 = vadd.f32 %v529, %v530
    %v532 = vmax.f32 %v531, 1e-24
    %v533 = vrsqrt.pop %v532
    %v534 = vmul.f32 %v519, %v533
    %v535 = vmul.f32 %v520, %v533
    %536 = vxpose.xlu0.b32.start [1/16] %v534, 128
    %537 = vxpose.xlu0.b32.cont [2/16] %v535, 128
    %538 = vxpose.xlu0.b32.cont [3/16] 0.0, 128
    %539 = vxpose.xlu0.b32.cont [4/16] 0.0, 128
    %540 = vxpose.xlu0.b32.cont [5/16] 0.0, 128
    %541 = vxpose.xlu0.b32.cont [6/16] 0.0, 128
    %542 = vxpose.xlu0.b32.cont [7/16] 0.0, 128
    %543 = vxpose.xlu0.b32.cont [8/16] 0.0, 128
    %544 = vxpose.xlu0.b32.cont [9/16] 0.0, 128
    %545 = vxpose.xlu0.b32.cont [10/16] 0.0, 128
    %546 = vxpose.xlu0.b32.cont [11/16] 0.0, 128
    %547 = vxpose.xlu0.b32.cont [12/16] 0.0, 128
    %548 = vxpose.xlu0.b32.cont [13/16] 0.0, 128
    %549 = vxpose.xlu0.b32.cont [14/16] 0.0, 128
    %550 = vxpose.xlu0.b32.cont [15/16] 0.0, 128
    %551 = vxpose.xlu0.b32.end [16/16] 0.0, 128
    %v552 = vpop.trf.xlu0
    %v553 = vpop.trf.xlu0
    %v554 = vpop.trf.xlu0
    %v555 = vpop.trf.xlu0
    %v556 = vpop.trf.xlu0
    %v557 = vpop.trf.xlu0
    %v558 = vpop.trf.xlu0
    %v559 = vpop.trf.xlu0
    %v560 = vpop.trf.xlu0
    %v561 = vpop.trf.xlu0
    %v562 = vpop.trf.xlu0
    %v563 = vpop.trf.xlu0
    %v564 = vpop.trf.xlu0
    %v565 = vpop.trf.xlu0
    %v566 = vpop.trf.xlu0
    %v567 = vpop.trf.xlu0
    %v569 = vsel %vm167, %v552, 0
    %571 = vmatprep.subr.mxu0 %v130
    %572 = vmatpush1.msra.mxu0 %v129
    %573 = vmatprep.subr.mxu0 %v132
    %574 = vmatpush1.msra.mxu0 %v131
    %575 = vmatprep.subr.mxu0 0.0
    %576 = vmatpush1.msra.mxu0 0.0
    %577 = vmatprep.subr.mxu0 0.0
    %578 = vmatpush1.msra.mxu0 0.0
    %579 = vmatprep.subr.mxu0 0.0
    %580 = vmatpush1.msra.mxu0 0.0
    %581 = vmatprep.subr.mxu0 0.0
    %582 = vmatpush1.msra.mxu0 0.0
    %583 = vmatprep.subr.mxu0 0.0
    %584 = vmatpush1.msra.mxu0 0.0
    %585 = vmatprep.subr.mxu0 0.0
    %586 = vmatpush1.msra.mxu0 0.0
    %587 = vmatprep.subr.mxu0 0.0
    %588 = vmatpush1.msra.mxu0 0.0
    %589 = vmatprep.subr.mxu0 0.0
    %590 = vmatpush1.msra.mxu0 0.0
    %591 = vmatprep.subr.mxu0 0.0
    %592 = vmatpush1.msra.mxu0 0.0
    %593 = vmatprep.subr.mxu0 0.0
    %594 = vmatpush1.msra.mxu0 0.0
    %595 = vmatprep.subr.mxu0 0.0
    %596 = vmatpush1.msra.mxu0 0.0
    %597 = vmatprep.subr.mxu0 0.0
    %598 = vmatpush1.msra.mxu0 0.0
    %599 = vmatprep.subr.mxu0 0.0
    %600 = vmatpush1.msra.mxu0 0.0
    %601 = vmatprep.subr.mxu0 0.0
    %602 = vmatpush1.msra.mxu0 0.0
    %603 = vmatprep.subr.mxu0 0.0
    %604 = vmatpush1.msra.mxu0 0.0
    %605 = vmatprep.subr.mxu0 0.0
    %606 = vmatpush1.msra.mxu0 0.0
    %607 = vmatprep.subr.mxu0 0.0
    %608 = vmatpush1.msra.mxu0 0.0
    %609 = vmatprep.subr.mxu0 0.0
    %610 = vmatpush1.msra.mxu0 0.0
    %611 = vmatprep.subr.mxu0 0.0
    %612 = vmatpush1.msra.mxu0 0.0
    %613 = vmatprep.subr.mxu0 0.0
    %614 = vmatpush1.msra.mxu0 0.0
    %615 = vmatprep.subr.mxu0 0.0
    %616 = vmatpush1.msra.mxu0 0.0
    %617 = vmatprep.subr.mxu0 0.0
    %618 = vmatpush1.msra.mxu0 0.0
    %619 = vmatprep.subr.mxu0 0.0
    %620 = vmatpush1.msra.mxu0 0.0
    %621 = vmatprep.subr.mxu0 0.0
    %622 = vmatpush1.msra.mxu0 0.0
    %623 = vmatprep.subr.mxu0 0.0
    %624 = vmatpush1.msra.mxu0 0.0
    %625 = vmatprep.subr.mxu0 0.0
    %626 = vmatpush1.msra.mxu0 0.0
    %627 = vmatprep.subr.mxu0 0.0
    %628 = vmatpush1.msra.mxu0 0.0
    %629 = vmatprep.subr.mxu0 0.0
    %630 = vmatpush1.msra.mxu0 0.0
    %631 = vmatprep.subr.mxu0 0.0
    %632 = vmatpush1.msra.mxu0 0.0
    %633 = vmatprep.subr.mxu0 0.0
    %634 = vmatpush1.msra.mxu0 0.0
    %635 = vmatprep.mubr.f32.mxu0 0.0
    %636 = vmatmul.mubr.f32.gmra.mrb[0].mxu0 %v569
    %v637 = vpop.f32.mrb[0].mxu0
    %v638 = vadd.f32 0.0, %v637
    %v639 = vpop.f32.mrb[0].mxu0
    %v640 = vadd.f32 0.0, %v639
    %641 = vdwg.mxu0
    %v642 = vadd.f32 %v638, 0.0
    %v644 = vrot.slane %v638, 1
    %645 = vrot.lane.b32.xlu0 %v644, 96
    %v646 = vpop.permute.xlu0 %645
    %v648 = vadd.f32 %v642, %v646
    %v649 = vrot.slane %v638, 2
    %650 = vrot.lane.b32.xlu0 %v649, 64
    %v651 = vpop.permute.xlu0 %650
    %v653 = vadd.f32 %v648, %v651
    %v654 = vrot.slane %v638, 3
    %655 = vrot.lane.b32.xlu0 %v654, 32
    %v656 = vpop.permute.xlu0 %655
    %v658 = vadd.f32 %v653, %v656
    %v660 = vrot.slane %v640, 4
    %v662 = vadd.f32 %v658, %v660
    %v663 = vrot.slane %v640, 5
    %664 = vrot.lane.b32.xlu0 %v663, 96
    %v665 = vpop.permute.xlu0 %664
    %v667 = vadd.f32 %v662, %v665
    %v668 = vrot.slane %v640, 6
    %669 = vrot.lane.b32.xlu0 %v668, 64
    %v670 = vpop.permute.xlu0 %669
    %v672 = vadd.f32 %v667, %v670
    %v673 = vrot.slane %v640, 7
    %674 = vrot.lane.b32.xlu0 %v673, 32
    %v675 = vpop.permute.xlu0 %674
    %v677 = vadd.f32 %v672, %v675
    %s678 = scalar_lea.vmem %s1, 16
    %v679 = vld [vmem:[%s678] sm:$0xff]
    %v680 = vld [vmem:[%s678 + $0x8] sm:$0xff]
    %681 = vxpose.xlu0.b32.start [1/16] %v679, 128
    %682 = vxpose.xlu0.b32.cont [2/16] %v680, 128
    %683 = vxpose.xlu0.b32.cont [3/16] 0.0, 128
    %684 = vxpose.xlu0.b32.cont [4/16] 0.0, 128
    %685 = vxpose.xlu0.b32.cont [5/16] 0.0, 128
    %686 = vxpose.xlu0.b32.cont [6/16] 0.0, 128
    %687 = vxpose.xlu0.b32.cont [7/16] 0.0, 128
    %688 = vxpose.xlu0.b32.cont [8/16] 0.0, 128
    %689 = vxpose.xlu0.b32.cont [9/16] 0.0, 128
    %690 = vxpose.xlu0.b32.cont [10/16] 0.0, 128
    %691 = vxpose.xlu0.b32.cont [11/16] 0.0, 128
    %692 = vxpose.xlu0.b32.cont [12/16] 0.0, 128
    %693 = vxpose.xlu0.b32.cont [13/16] 0.0, 128
    %694 = vxpose.xlu0.b32.cont [14/16] 0.0, 128
    %695 = vxpose.xlu0.b32.cont [15/16] 0.0, 128
    %696 = vxpose.xlu0.b32.end [16/16] 0.0, 128
    %v697 = vpop.trf.xlu0
    %v698 = vpop.trf.xlu0
    %v699 = vpop.trf.xlu0
    %v700 = vpop.trf.xlu0
    %v701 = vpop.trf.xlu0
    %v702 = vpop.trf.xlu0
    %v703 = vpop.trf.xlu0
    %v704 = vpop.trf.xlu0
    %v705 = vpop.trf.xlu0
    %v706 = vpop.trf.xlu0
    %v707 = vpop.trf.xlu0
    %v708 = vpop.trf.xlu0
    %v709 = vpop.trf.xlu0
    %v710 = vpop.trf.xlu0
    %v711 = vpop.trf.xlu0
    %v712 = vpop.trf.xlu0
    %v714 = vsel %vm167, %v697, 0
    %v717 = vsel %vm167, %v698, 0
    %v720 = vsel %vm167, %v699, 0
    %v723 = vsel %vm167, %v700, 0
    %v726 = vsel %vm167, %v701, 0
    %v729 = vsel %vm167, %v702, 0
    %v732 = vsel %vm167, %v703, 0
    %v735 = vsel %vm167, %v704, 0
    %737 = vmatprep.subr.mxu0 0.0
    %738 = vmatpush1.msra.mxu0 %v123
    %739 = vmatprep.subr.mxu0 0.0
    %740 = vmatpush1.msra.mxu0 %v124
    %741 = vmatprep.subr.mxu0 0.0
    %742 = vmatpush1.msra.mxu0 0.0
    %743 = vmatprep.subr.mxu0 0.0
    %744 = vmatpush1.msra.mxu0 0.0
    %745 = vmatprep.subr.mxu0 0.0
    %746 = vmatpush1.msra.mxu0 0.0
    %747 = vmatprep.subr.mxu0 0.0
    %748 = vmatpush1.msra.mxu0 0.0
    %749 = vmatprep.subr.mxu0 0.0
    %750 = vmatpush1.msra.mxu0 0.0
    %751 = vmatprep.subr.mxu0 0.0
    %752 = vmatpush1.msra.mxu0 0.0
    %753 = vmatprep.subr.mxu0 0.0
    %754 = vmatpush1.msra.mxu0 0.0
    %755 = vmatprep.subr.mxu0 0.0
    %756 = vmatpush1.msra.mxu0 0.0
    %757 = vmatprep.subr.mxu0 0.0
    %758 = vmatpush1.msra.mxu0 0.0
    %759 = vmatprep.subr.mxu0 0.0
    %760 = vmatpush1.msra.mxu0 0.0
    %761 = vmatprep.subr.mxu0 0.0
    %762 = vmatpush1.msra.mxu0 0.0
    %763 = vmatprep.subr.mxu0 0.0
    %764 = vmatpush1.msra.mxu0 0.0
    %765 = vmatprep.subr.mxu0 0.0
    %766 = vmatpush1.msra.mxu0 0.0
    %767 = vmatprep.subr.mxu0 0.0
    %768 = vmatpush1.msra.mxu0 0.0
    %769 = vmatprep.subr.mxu0 0.0
    %770 = vmatpush1.msra.mxu0 0.0
    %771 = vmatprep.subr.mxu0 0.0
    %772 = vmatpush1.msra.mxu0 0.0
    %773 = vmatprep.subr.mxu0 0.0
    %774 = vmatpush1.msra.mxu0 0.0
    %775 = vmatprep.subr.mxu0 0.0
    %776 = vmatpush1.msra.mxu0 0.0
    %777 = vmatprep.subr.mxu0 0.0
    %778 = vmatpush1.msra.mxu0 0.0
    %779 = vmatprep.subr.mxu0 0.0
    %780 = vmatpush1.msra.mxu0 0.0
    %781 = vmatprep.subr.mxu0 0.0
    %782 = vmatpush1.msra.mxu0 0.0
    %783 = vmatprep.subr.mxu0 0.0
    %784 = vmatpush1.msra.mxu0 0.0
    %785 = vmatprep.subr.mxu0 0.0
    %786 = vmatpush1.msra.mxu0 0.0
    %787 = vmatprep.subr.mxu0 0.0
    %788 = vmatpush1.msra.mxu0 0.0
    %789 = vmatprep.subr.mxu0 0.0
    %790 = vmatpush1.msra.mxu0 0.0
    %791 = vmatprep.subr.mxu0 0.0
    %792 = vmatpush1.msra.mxu0 0.0
    %793 = vmatprep.subr.mxu0 0.0
    %794 = vmatpush1.msra.mxu0 0.0
    %795 = vmatprep.subr.mxu0 0.0
    %796 = vmatpush1.msra.mxu0 0.0
    %797 = vmatprep.subr.mxu0 0.0
    %798 = vmatpush1.msra.mxu0 0.0
    %799 = vmatprep.subr.mxu0 0.0
    %800 = vmatpush1.msra.mxu0 0.0
    %801 = vmatprep.mubr.f32.mxu0 0.0
    %802 = vmatmul.mubr.f32.gmra.mrb[0].mxu0 %v714
    %v803 = vpop.f32.mrb[0].mxu0
    %v804 = vadd.f32 0.0, %v803
    %v805 = vpop.f32.mrb[0].mxu0
    %806 = vmatprep.mubr.f32.mxu0 0.0
    %807 = vmatmul.mubr.f32.gmra.mrb[0].mxu0 %v717
    %v808 = vpop.f32.mrb[0].mxu0
    %v809 = vadd.f32 0.0, %v808
    %v810 = vpop.f32.mrb[0].mxu0
    %811 = vmatprep.mubr.f32.mxu0 0.0
    %812 = vmatmul.mubr.f32.gmra.mrb[0].mxu0 %v720
    %v813 = vpop.f32.mrb[0].mxu0
    %v814 = vadd.f32 0.0, %v813
    %v815 = vpop.f32.mrb[0].mxu0
    %816 = vmatprep.mubr.f32.mxu0 0.0
    %817 = vmatmul.mubr.f32.gmra.mrb[0].mxu0 %v723
    %v818 = vpop.f32.mrb[0].mxu0
    %v819 = vadd.f32 0.0, %v818
    %v820 = vpop.f32.mrb[0].mxu0
    %821 = vmatprep.mubr.f32.mxu0 0.0
    %822 = vmatmul.mubr.f32.gmra.mrb[0].mxu0 %v726
    %v823 = vpop.f32.mrb[0].mxu0
    %v824 = vadd.f32 0.0, %v823
    %v825 = vpop.f32.mrb[0].mxu0
    %826 = vmatprep.mubr.f32.mxu0 0.0
    %827 = vmatmul.mubr.f32.gmra.mrb[0].mxu0 %v729
    %v828 = vpop.f32.mrb[0].mxu0
    %v829 = vadd.f32 0.0, %v828
    %v830 = vpop.f32.mrb[0].mxu0
    %831 = vmatprep.mubr.f32.mxu0 0.0
    %832 = vmatmul.mubr.f32.gmra.mrb[0].mxu0 %v732
    %v833 = vpop.f32.mrb[0].mxu0
    %v834 = vadd.f32 0.0, %v833
    %v835 = vpop.f32.mrb[0].mxu0
    %836 = vmatprep.mubr.f32.mxu0 0.0
    %837 = vmatmul.mubr.f32.gmra.mrb[0].mxu0 %v735
    %v838 = vpop.f32.mrb[0].mxu0
    %v839 = vadd.f32 0.0, %v838
    %v840 = vpop.f32.mrb[0].mxu0
    %841 = vdwg.mxu0
    %v842 = vmul.f32 %v804, %v301
    %v843 = vmul.f32 %v809, %v301
    %v844 = vmul.f32 %v814, %v301
    %v845 = vmul.f32 %v819, %v301
    %v846 = vmul.f32 %v824, %v301
    %v847 = vmul.f32 %v829, %v301
    %v848 = vmul.f32 %v834, %v301
    %v849 = vmul.f32 %v839, %v301
    %v850 = vadd.f32 %v842, %v315
    %v851 = vadd.f32 %v843, %v315
    %v852 = vadd.f32 %v844, %v315
    %v853 = vadd.f32 %v845, %v315
    %v854 = vadd.f32 %v846, %v315
    %v855 = vadd.f32 %v847, %v315
    %v856 = vadd.f32 %v848, %v315
    %v857 = vadd.f32 %v849, %v315
    %v858 = vsel %vm325, %v850, -inf
    %859 = vmax.xlane.f32.xlu0 %v858
    %v860 = vpop.xlane.xlu0 %859
    %v861 = vsel %vm325, %v851, -inf
    %862 = vmax.xlane.f32.xlu0 %v861
    %v863 = vpop.xlane.xlu0 %862
    %v864 = vsel %vm325, %v852, -inf
    %865 = vmax.xlane.f32.xlu0 %v864
    %v866 = vpop.xlane.xlu0 %865
    %v867 = vsel %vm325, %v853, -inf
    %868 = vmax.xlane.f32.xlu0 %v867
    %v869 = vpop.xlane.xlu0 %868
    %v870 = vsel %vm325, %v854, -inf
    %871 = vmax.xlane.f32.xlu0 %v870
    %v872 = vpop.xlane.xlu0 %871
    %v873 = vsel %vm325, %v855, -inf
    %874 = vmax.xlane.f32.xlu0 %v873
    %v875 = vpop.xlane.xlu0 %874
    %v876 = vsel %vm325, %v856, -inf
    %877 = vmax.xlane.f32.xlu0 %v876
    %v878 = vpop.xlane.xlu0 %877
    %v879 = vsel %vm325, %v857, -inf
    %880 = vmax.xlane.f32.xlu0 %v879
    %v881 = vpop.xlane.xlu0 %880
    %v882 = vsub.f32 %v850, %v860
    %v883 = vsub.f32 %v851, %v863
    %v884 = vsub.f32 %v852, %v866
    %v885 = vsub.f32 %v853, %v869
    %v886 = vsub.f32 %v854, %v872
    %v887 = vsub.f32 %v855, %v875
    %v888 = vsub.f32 %v856, %v878
    %v889 = vsub.f32 %v857, %v881
    %v890 = vmul.f32 %v882, 1.442695
    %v891 = vpow.pop %v890
    %v892 = vmul.f32 %v883, 1.442695
    %v893 = vpow.pop %v892
    %v894 = vmul.f32 %v884, 1.442695
    %v895 = vpow.pop %v894
    %v896 = vmul.f32 %v885, 1.442695
    %v897 = vpow.pop %v896
    %v898 = vmul.f32 %v886, 1.442695
    %v899 = vpow.pop %v898
    %v900 = vmul.f32 %v887, 1.442695
    %v901 = vpow.pop %v900
    %v902 = vmul.f32 %v888, 1.442695
    %v903 = vpow.pop %v902
    %v904 = vmul.f32 %v889, 1.442695
    %v905 = vpow.pop %v904
    %v906 = vsel %vm325, %v891, 0.0
    %907 = vadd.xlane.f32.xlu0 %v906
    %v908 = vpop.xlane.xlu0 %907
    %v909 = vsel %vm325, %v893, 0.0
    %910 = vadd.xlane.f32.xlu0 %v909
    %v911 = vpop.xlane.xlu0 %910
    %v912 = vsel %vm325, %v895, 0.0
    %913 = vadd.xlane.f32.xlu0 %v912
    %v914 = vpop.xlane.xlu0 %913
    %v915 = vsel %vm325, %v897, 0.0
    %916 = vadd.xlane.f32.xlu0 %v915
    %v917 = vpop.xlane.xlu0 %916
    %v918 = vsel %vm325, %v899, 0.0
    %919 = vadd.xlane.f32.xlu0 %v918
    %v920 = vpop.xlane.xlu0 %919
    %v921 = vsel %vm325, %v901, 0.0
    %922 = vadd.xlane.f32.xlu0 %v921
    %v923 = vpop.xlane.xlu0 %922
    %v924 = vsel %vm325, %v903, 0.0
    %925 = vadd.xlane.f32.xlu0 %v924
    %v926 = vpop.xlane.xlu0 %925
    %v927 = vsel %vm325, %v905, 0.0
    %928 = vadd.xlane.f32.xlu0 %v927
    %v929 = vpop.xlane.xlu0 %928
    %v930 = vrcp.pop %v908
    %v931 = vrcp.pop %v911
    %v932 = vrcp.pop %v914
    %v933 = vrcp.pop %v917
    %v934 = vrcp.pop %v920
    %v935 = vrcp.pop %v923
    %v936 = vrcp.pop %v926
    %v937 = vrcp.pop %v929
    %v938 = vmul.f32 %v891, %v930
    %v939 = vmul.f32 %v893, %v931
    %v940 = vmul.f32 %v895, %v932
    %v941 = vmul.f32 %v897, %v933
    %v942 = vmul.f32 %v899, %v934
    %v943 = vmul.f32 %v901, %v935
    %v944 = vmul.f32 %v903, %v936
    %v945 = vmul.f32 %v905, %v937
    %v946 = vsel %vm325, %v938, 0.0
    %v947 = vsel %vm325, %v939, 0.0
    %v948 = vadd.f32 %v946, %v947
    %v949 = vsel %vm325, %v940, 0.0
    %v950 = vadd.f32 %v948, %v949
    %v951 = vsel %vm325, %v941, 0.0
    %v952 = vadd.f32 %v950, %v951
    %v953 = vsel %vm325, %v942, 0.0
    %v954 = vadd.f32 %v952, %v953
    %v955 = vsel %vm325, %v943, 0.0
    %v956 = vadd.f32 %v954, %v955
    %v957 = vsel %vm325, %v944, 0.0
    %v958 = vadd.f32 %v956, %v957
    %v959 = vsel %vm325, %v945, 0.0
    %v960 = vadd.f32 %v958, %v959
    %v961 = vrot.slane %v960, 4
    %v962 = vadd.f32 %v960, %v961
    %v963 = vrot.slane %v962, 2
    %v964 = vadd.f32 %v962, %v963
    %v965 = vrot.slane %v964, 1
    %v966 = vadd.f32 %v964, %v965
    %v968 = vsel %vm435, %v679, 0
    %v971 = vsel %vm435, %v680, 0
    %973 = vmatprep.subr.mxu0 0.0
    %974 = vmatpush1.msra.mxu0 %v938
    %975 = vmatprep.subr.mxu0 0.0
    %976 = vmatpush1.msra.mxu0 %v939
    %977 = vmatprep.subr.mxu0 0.0
    %978 = vmatpush1.msra.mxu0 %v940
    %979 = vmatprep.subr.mxu0 0.0
    %980 = vmatpush1.msra.mxu0 %v941
    %981 = vmatprep.subr.mxu0 0.0
    %982 = vmatpush1.msra.mxu0 %v942
    %983 = vmatprep.subr.mxu0 0.0
    %984 = vmatpush1.msra.mxu0 %v943
    %985 = vmatprep.subr.mxu0 0.0
    %986 = vmatpush1.msra.mxu0 %v944
    %987 = vmatprep.subr.mxu0 0.0
    %988 = vmatpush1.msra.mxu0 %v945
    %989 = vmatprep.subr.mxu0 0.0
    %990 = vmatpush1.msra.mxu0 0.0
    %991 = vmatprep.subr.mxu0 0.0
    %992 = vmatpush1.msra.mxu0 0.0
    %993 = vmatprep.subr.mxu0 0.0
    %994 = vmatpush1.msra.mxu0 0.0
    %995 = vmatprep.subr.mxu0 0.0
    %996 = vmatpush1.msra.mxu0 0.0
    %997 = vmatprep.subr.mxu0 0.0
    %998 = vmatpush1.msra.mxu0 0.0
    %999 = vmatprep.subr.mxu0 0.0
    %1000 = vmatpush1.msra.mxu0 0.0
    %1001 = vmatprep.subr.mxu0 0.0
    %1002 = vmatpush1.msra.mxu0 0.0
    %1003 = vmatprep.subr.mxu0 0.0
    %1004 = vmatpush1.msra.mxu0 0.0
    %1005 = vmatprep.subr.mxu0 0.0
    %1006 = vmatpush1.msra.mxu0 0.0
    %1007 = vmatprep.subr.mxu0 0.0
    %1008 = vmatpush1.msra.mxu0 0.0
    %1009 = vmatprep.subr.mxu0 0.0
    %1010 = vmatpush1.msra.mxu0 0.0
    %1011 = vmatprep.subr.mxu0 0.0
    %1012 = vmatpush1.msra.mxu0 0.0
    %1013 = vmatprep.subr.mxu0 0.0
    %1014 = vmatpush1.msra.mxu0 0.0
    %1015 = vmatprep.subr.mxu0 0.0
    %1016 = vmatpush1.msra.mxu0 0.0
    %1017 = vmatprep.subr.mxu0 0.0
    %1018 = vmatpush1.msra.mxu0 0.0
    %1019 = vmatprep.subr.mxu0 0.0
    %1020 = vmatpush1.msra.mxu0 0.0
    %1021 = vmatprep.subr.mxu0 0.0
    %1022 = vmatpush1.msra.mxu0 0.0
    %1023 = vmatprep.subr.mxu0 0.0
    %1024 = vmatpush1.msra.mxu0 0.0
    %1025 = vmatprep.subr.mxu0 0.0
    %1026 = vmatpush1.msra.mxu0 0.0
    %1027 = vmatprep.subr.mxu0 0.0
    %1028 = vmatpush1.msra.mxu0 0.0
    %1029 = vmatprep.subr.mxu0 0.0
    %1030 = vmatpush1.msra.mxu0 0.0
    %1031 = vmatprep.subr.mxu0 0.0
    %1032 = vmatpush1.msra.mxu0 0.0
    %1033 = vmatprep.subr.mxu0 0.0
    %1034 = vmatpush1.msra.mxu0 0.0
    %1035 = vmatprep.subr.mxu0 0.0
    %1036 = vmatpush1.msra.mxu0 0.0
    %1037 = vmatprep.mubr.f32.mxu0 0.0
    %1038 = vmatmul.mubr.f32.gmra.mrb[0].mxu0 %v968
    %v1039 = vpop.f32.mrb[0].mxu0
    %v1040 = vadd.f32 0.0, %v1039
    %v1041 = vpop.f32.mrb[0].mxu0
    %1042 = vmatprep.mubr.f32.mxu0 0.0
    %1043 = vmatmul.mubr.f32.gmra.mrb[0].mxu0 %v971
    %v1044 = vpop.f32.mrb[0].mxu0
    %v1045 = vadd.f32 0.0, %v1044
    %v1046 = vpop.f32.mrb[0].mxu0
    %1047 = vdwg.mxu0
    %v1048 = vmul.f32 %v966, %v125
    %v1049 = vmul.f32 %v966, %v126
    %v1050 = vsub.f32 %v1040, %v1048
    %v1051 = vsub.f32 %v1045, %v1049
    %v1052 = vmul.f32 %v1050, %v1050
    %v1053 = vmul.f32 %v1051, %v1051
    %v1054 = vsel %vm325, %v1052, 0.0
    %v1055 = vsel %vm325, %v1053, 0.0
    %v1056 = vadd.f32 %v1054, %v1055
    %v1057 = vrot.slane %v1056, 4
    %v1058 = vadd.f32 %v1056, %v1057
    %v1059 = vrot.slane %v1058, 2
    %v1060 = vadd.f32 %v1058, %v1059
    %v1061 = vrot.slane %v1060, 1
    %v1062 = vadd.f32 %v1060, %v1061
    %v1063 = vmax.f32 %v1062, 1e-24
    %v1064 = vrsqrt.pop %v1063
    %v1065 = vmul.f32 %v1050, %v1064
    %v1066 = vmul.f32 %v1051, %v1064
    %1067 = vxpose.xlu0.b32.start [1/16] %v1065, 128
    %1068 = vxpose.xlu0.b32.cont [2/16] %v1066, 128
    %1069 = vxpose.xlu0.b32.cont [3/16] 0.0, 128
    %1070 = vxpose.xlu0.b32.cont [4/16] 0.0, 128
    %1071 = vxpose.xlu0.b32.cont [5/16] 0.0, 128
    %1072 = vxpose.xlu0.b32.cont [6/16] 0.0, 128
    %1073 = vxpose.xlu0.b32.cont [7/16] 0.0, 128
    %1074 = vxpose.xlu0.b32.cont [8/16] 0.0, 128
    %1075 = vxpose.xlu0.b32.cont [9/16] 0.0, 128
    %1076 = vxpose.xlu0.b32.cont [10/16] 0.0, 128
    %1077 = vxpose.xlu0.b32.cont [11/16] 0.0, 128
    %1078 = vxpose.xlu0.b32.cont [12/16] 0.0, 128
    %1079 = vxpose.xlu0.b32.cont [13/16] 0.0, 128
    %1080 = vxpose.xlu0.b32.cont [14/16] 0.0, 128
    %1081 = vxpose.xlu0.b32.cont [15/16] 0.0, 128
    %1082 = vxpose.xlu0.b32.end [16/16] 0.0, 128
    %v1083 = vpop.trf.xlu0
    %v1084 = vpop.trf.xlu0
    %v1085 = vpop.trf.xlu0
    %v1086 = vpop.trf.xlu0
    %v1087 = vpop.trf.xlu0
    %v1088 = vpop.trf.xlu0
    %v1089 = vpop.trf.xlu0
    %v1090 = vpop.trf.xlu0
    %v1091 = vpop.trf.xlu0
    %v1092 = vpop.trf.xlu0
    %v1093 = vpop.trf.xlu0
    %v1094 = vpop.trf.xlu0
    %v1095 = vpop.trf.xlu0
    %v1096 = vpop.trf.xlu0
    %v1097 = vpop.trf.xlu0
    %v1098 = vpop.trf.xlu0
    %v1100 = vsel %vm167, %v1083, 0
    %1102 = vmatprep.subr.mxu0 %v130
    %1103 = vmatpush1.msra.mxu0 %v129
    %1104 = vmatprep.subr.mxu0 %v132
    %1105 = vmatpush1.msra.mxu0 %v131
    %1106 = vmatprep.subr.mxu0 0.0
    %1107 = vmatpush1.msra.mxu0 0.0
    %1108 = vmatprep.subr.mxu0 0.0
    %1109 = vmatpush1.msra.mxu0 0.0
    %1110 = vmatprep.subr.mxu0 0.0
    %1111 = vmatpush1.msra.mxu0 0.0
    %1112 = vmatprep.subr.mxu0 0.0
    %1113 = vmatpush1.msra.mxu0 0.0
    %1114 = vmatprep.subr.mxu0 0.0
    %1115 = vmatpush1.msra.mxu0 0.0
    %1116 = vmatprep.subr.mxu0 0.0
    %1117 = vmatpush1.msra.mxu0 0.0
    %1118 = vmatprep.subr.mxu0 0.0
    %1119 = vmatpush1.msra.mxu0 0.0
    %1120 = vmatprep.subr.mxu0 0.0
    %1121 = vmatpush1.msra.mxu0 0.0
    %1122 = vmatprep.subr.mxu0 0.0
    %1123 = vmatpush1.msra.mxu0 0.0
    %1124 = vmatprep.subr.mxu0 0.0
    %1125 = vmatpush1.msra.mxu0 0.0
    %1126 = vmatprep.subr.mxu0 0.0
    %1127 = vmatpush1.msra.mxu0 0.0
    %1128 = vmatprep.subr.mxu0 0.0
    %1129 = vmatpush1.msra.mxu0 0.0
    %1130 = vmatprep.subr.mxu0 0.0
    %1131 = vmatpush1.msra.mxu0 0.0
    %1132 = vmatprep.subr.mxu0 0.0
    %1133 = vmatpush1.msra.mxu0 0.0
    %1134 = vmatprep.subr.mxu0 0.0
    %1135 = vmatpush1.msra.mxu0 0.0
    %1136 = vmatprep.subr.mxu0 0.0
    %1137 = vmatpush1.msra.mxu0 0.0
    %1138 = vmatprep.subr.mxu0 0.0
    %1139 = vmatpush1.msra.mxu0 0.0
    %1140 = vmatprep.subr.mxu0 0.0
    %1141 = vmatpush1.msra.mxu0 0.0
    %1142 = vmatprep.subr.mxu0 0.0
    %1143 = vmatpush1.msra.mxu0 0.0
    %1144 = vmatprep.subr.mxu0 0.0
    %1145 = vmatpush1.msra.mxu0 0.0
    %1146 = vmatprep.subr.mxu0 0.0
    %1147 = vmatpush1.msra.mxu0 0.0
    %1148 = vmatprep.subr.mxu0 0.0
    %1149 = vmatpush1.msra.mxu0 0.0
    %1150 = vmatprep.subr.mxu0 0.0
    %1151 = vmatpush1.msra.mxu0 0.0
    %1152 = vmatprep.subr.mxu0 0.0
    %1153 = vmatpush1.msra.mxu0 0.0
    %1154 = vmatprep.subr.mxu0 0.0
    %1155 = vmatpush1.msra.mxu0 0.0
    %1156 = vmatprep.subr.mxu0 0.0
    %1157 = vmatpush1.msra.mxu0 0.0
    %1158 = vmatprep.subr.mxu0 0.0
    %1159 = vmatpush1.msra.mxu0 0.0
    %1160 = vmatprep.subr.mxu0 0.0
    %1161 = vmatpush1.msra.mxu0 0.0
    %1162 = vmatprep.subr.mxu0 0.0
    %1163 = vmatpush1.msra.mxu0 0.0
    %1164 = vmatprep.subr.mxu0 0.0
    %1165 = vmatpush1.msra.mxu0 0.0
    %1166 = vmatprep.mubr.f32.mxu0 0.0
    %1167 = vmatmul.mubr.f32.gmra.mrb[0].mxu0 %v1100
    %v1168 = vpop.f32.mrb[0].mxu0
    %v1169 = vadd.f32 0.0, %v1168
    %v1170 = vpop.f32.mrb[0].mxu0
    %v1171 = vadd.f32 0.0, %v1170
    %1172 = vdwg.mxu0
    %v1173 = vadd.f32 %v1169, 0.0
    %v1175 = vrot.slane %v1169, 1
    %1176 = vrot.lane.b32.xlu0 %v1175, 96
    %v1177 = vpop.permute.xlu0 %1176
    %v1179 = vadd.f32 %v1173, %v1177
    %v1180 = vrot.slane %v1169, 2
    %1181 = vrot.lane.b32.xlu0 %v1180, 64
    %v1182 = vpop.permute.xlu0 %1181
    %v1184 = vadd.f32 %v1179, %v1182
    %v1185 = vrot.slane %v1169, 3
    %1186 = vrot.lane.b32.xlu0 %v1185, 32
    %v1187 = vpop.permute.xlu0 %1186
    %v1189 = vadd.f32 %v1184, %v1187
    %v1191 = vrot.slane %v1171, 4
    %v1193 = vadd.f32 %v1189, %v1191
    %v1194 = vrot.slane %v1171, 5
    %1195 = vrot.lane.b32.xlu0 %v1194, 96
    %v1196 = vpop.permute.xlu0 %1195
    %v1198 = vadd.f32 %v1193, %v1196
    %v1199 = vrot.slane %v1171, 6
    %1200 = vrot.lane.b32.xlu0 %v1199, 64
    %v1201 = vpop.permute.xlu0 %1200
    %v1203 = vadd.f32 %v1198, %v1201
    %v1204 = vrot.slane %v1171, 7
    %1205 = vrot.lane.b32.xlu0 %v1204, 32
    %v1206 = vpop.permute.xlu0 %1205
    %v1208 = vadd.f32 %v1203, %v1206
    %v1209 = vld [vmem:[%s11] sm:$0xff]
    %v1210 = vld [vmem:[%s11 + $0x8] sm:$0xff]
    %v1211 = vld [vmem:[%s19] sm:$0xff]
    %v1212 = vld [vmem:[%s19 + $0x8] sm:$0xff]
    %v1213 = vld [vmem:[%s27] sm:$0x1]
    %v1214 = vld [vmem:[%s35] sm:$0x1]
    %v1215 = vld [vmem:[%s43] sm:$0xff]
    %v1216 = vld [vmem:[%s43 + $0x8] sm:$0xff]
    %v1217 = vld [vmem:[%s43 + $0x10] sm:$0xff]
    %v1218 = vld [vmem:[%s43 + $0x18] sm:$0xff]
    %v1219 = vld [vmem:[%s3] sm:$0xff]
    %v1220 = vld [vmem:[%s3 + $0x8] sm:$0xff]
    %1221 = vxpose.xlu0.b32.start [1/16] %v1219, 128
    %1222 = vxpose.xlu0.b32.cont [2/16] %v1220, 128
    %1223 = vxpose.xlu0.b32.cont [3/16] 0.0, 128
    %1224 = vxpose.xlu0.b32.cont [4/16] 0.0, 128
    %1225 = vxpose.xlu0.b32.cont [5/16] 0.0, 128
    %1226 = vxpose.xlu0.b32.cont [6/16] 0.0, 128
    %1227 = vxpose.xlu0.b32.cont [7/16] 0.0, 128
    %1228 = vxpose.xlu0.b32.cont [8/16] 0.0, 128
    %1229 = vxpose.xlu0.b32.cont [9/16] 0.0, 128
    %1230 = vxpose.xlu0.b32.cont [10/16] 0.0, 128
    %1231 = vxpose.xlu0.b32.cont [11/16] 0.0, 128
    %1232 = vxpose.xlu0.b32.cont [12/16] 0.0, 128
    %1233 = vxpose.xlu0.b32.cont [13/16] 0.0, 128
    %1234 = vxpose.xlu0.b32.cont [14/16] 0.0, 128
    %1235 = vxpose.xlu0.b32.cont [15/16] 0.0, 128
    %1236 = vxpose.xlu0.b32.end [16/16] 0.0, 128
    %v1237 = vpop.trf.xlu0
    %v1238 = vpop.trf.xlu0
    %v1239 = vpop.trf.xlu0
    %v1240 = vpop.trf.xlu0
    %v1241 = vpop.trf.xlu0
    %v1242 = vpop.trf.xlu0
    %v1243 = vpop.trf.xlu0
    %v1244 = vpop.trf.xlu0
    %v1245 = vpop.trf.xlu0
    %v1246 = vpop.trf.xlu0
    %v1247 = vpop.trf.xlu0
    %v1248 = vpop.trf.xlu0
    %v1249 = vpop.trf.xlu0
    %v1250 = vpop.trf.xlu0
    %v1251 = vpop.trf.xlu0
    %v1252 = vpop.trf.xlu0
    %v1254 = vsel %vm167, %v1237, 0
    %v1257 = vsel %vm167, %v1238, 0
    %1259 = vmatprep.subr.mxu0 0.0
    %1260 = vmatpush1.msra.mxu0 %v1209
    %1261 = vmatprep.subr.mxu0 0.0
    %1262 = vmatpush1.msra.mxu0 %v1210
    %1263 = vmatprep.subr.mxu0 0.0
    %1264 = vmatpush1.msra.mxu0 0.0
    %1265 = vmatprep.subr.mxu0 0.0
    %1266 = vmatpush1.msra.mxu0 0.0
    %1267 = vmatprep.subr.mxu0 0.0
    %1268 = vmatpush1.msra.mxu0 0.0
    %1269 = vmatprep.subr.mxu0 0.0
    %1270 = vmatpush1.msra.mxu0 0.0
    %1271 = vmatprep.subr.mxu0 0.0
    %1272 = vmatpush1.msra.mxu0 0.0
    %1273 = vmatprep.subr.mxu0 0.0
    %1274 = vmatpush1.msra.mxu0 0.0
    %1275 = vmatprep.subr.mxu0 0.0
    %1276 = vmatpush1.msra.mxu0 0.0
    %1277 = vmatprep.subr.mxu0 0.0
    %1278 = vmatpush1.msra.mxu0 0.0
    %1279 = vmatprep.subr.mxu0 0.0
    %1280 = vmatpush1.msra.mxu0 0.0
    %1281 = vmatprep.subr.mxu0 0.0
    %1282 = vmatpush1.msra.mxu0 0.0
    %1283 = vmatprep.subr.mxu0 0.0
    %1284 = vmatpush1.msra.mxu0 0.0
    %1285 = vmatprep.subr.mxu0 0.0
    %1286 = vmatpush1.msra.mxu0 0.0
    %1287 = vmatprep.subr.mxu0 0.0
    %1288 = vmatpush1.msra.mxu0 0.0
    %1289 = vmatprep.subr.mxu0 0.0
    %1290 = vmatpush1.msra.mxu0 0.0
    %1291 = vmatprep.subr.mxu0 0.0
    %1292 = vmatpush1.msra.mxu0 0.0
    %1293 = vmatprep.subr.mxu0 0.0
    %1294 = vmatpush1.msra.mxu0 0.0
    %1295 = vmatprep.subr.mxu0 0.0
    %1296 = vmatpush1.msra.mxu0 0.0
    %1297 = vmatprep.subr.mxu0 0.0
    %1298 = vmatpush1.msra.mxu0 0.0
    %1299 = vmatprep.subr.mxu0 0.0
    %1300 = vmatpush1.msra.mxu0 0.0
    %1301 = vmatprep.subr.mxu0 0.0
    %1302 = vmatpush1.msra.mxu0 0.0
    %1303 = vmatprep.subr.mxu0 0.0
    %1304 = vmatpush1.msra.mxu0 0.0
    %1305 = vmatprep.subr.mxu0 0.0
    %1306 = vmatpush1.msra.mxu0 0.0
    %1307 = vmatprep.subr.mxu0 0.0
    %1308 = vmatpush1.msra.mxu0 0.0
    %1309 = vmatprep.subr.mxu0 0.0
    %1310 = vmatpush1.msra.mxu0 0.0
    %1311 = vmatprep.subr.mxu0 0.0
    %1312 = vmatpush1.msra.mxu0 0.0
    %1313 = vmatprep.subr.mxu0 0.0
    %1314 = vmatpush1.msra.mxu0 0.0
    %1315 = vmatprep.subr.mxu0 0.0
    %1316 = vmatpush1.msra.mxu0 0.0
    %1317 = vmatprep.subr.mxu0 0.0
    %1318 = vmatpush1.msra.mxu0 0.0
    %1319 = vmatprep.subr.mxu0 0.0
    %1320 = vmatpush1.msra.mxu0 0.0
    %1321 = vmatprep.subr.mxu0 0.0
    %1322 = vmatpush1.msra.mxu0 0.0
    %1323 = vmatprep.mubr.f32.mxu0 0.0
    %1324 = vmatmul.mubr.f32.gmra.mrb[0].mxu0 %v1254
    %v1325 = vpop.f32.mrb[0].mxu0
    %v1326 = vadd.f32 0.0, %v1325
    %v1327 = vpop.f32.mrb[0].mxu0
    %1328 = vmatprep.mubr.f32.mxu0 0.0
    %1329 = vmatmul.mubr.f32.gmra.mrb[0].mxu0 %v1257
    %v1330 = vpop.f32.mrb[0].mxu0
    %v1331 = vadd.f32 0.0, %v1330
    %v1332 = vpop.f32.mrb[0].mxu0
    %1333 = vdwg.mxu0
    %v1335 = vlaneseq
    %v1336 = vshrl.u32 %v1335, 7
    %v1337 = vsub.s32 0, %v1336
    %v1338 = vrot.slane %v1213, %v1337
    %v1340 = vmul.f32 %v1326, %v1338
    %v1341 = vmul.f32 %v1331, %v1338
    %v1343 = vlaneseq
    %v1344 = vshrl.u32 %v1343, 7
    %v1345 = vsub.s32 0, %v1344
    %v1346 = vrot.slane %v1214, %v1345
    %v1348 = vadd.f32 %v1340, %v1346
    %v1349 = vadd.f32 %v1341, %v1346
    %v1350 = vsel %vm325, %v1348, -inf
    %1351 = vmax.xlane.f32.xlu0 %v1350
    %v1352 = vpop.xlane.xlu0 %1351
    %v1353 = vsel %vm325, %v1349, -inf
    %1354 = vmax.xlane.f32.xlu0 %v1353
    %v1355 = vpop.xlane.xlu0 %1354
    %v1356 = vsub.f32 %v1348, %v1352
    %v1357 = vsub.f32 %v1349, %v1355
    %v1358 = vmul.f32 %v1356, 1.442695
    %v1359 = vpow.pop %v1358
    %v1360 = vmul.f32 %v1357, 1.442695
    %v1361 = vpow.pop %v1360
    %v1362 = vsel %vm325, %v1359, 0.0
    %1363 = vadd.xlane.f32.xlu0 %v1362
    %v1364 = vpop.xlane.xlu0 %1363
    %v1365 = vsel %vm325, %v1361, 0.0
    %1366 = vadd.xlane.f32.xlu0 %v1365
    %v1367 = vpop.xlane.xlu0 %1366
    %v1368 = vrcp.pop %v1364
    %v1369 = vrcp.pop %v1367
    %v1370 = vmul.f32 %v1359, %v1368
    %v1371 = vmul.f32 %v1361, %v1369
    %v1372 = vsel %vm325, %v1370, 0.0
    %v1373 = vsel %vm325, %v1371, 0.0
    %v1374 = vadd.f32 %v1372, %v1373
    %v1375 = vrot.slane %v1374, 4
    %v1376 = vadd.f32 %v1374, %v1375
    %v1377 = vrot.slane %v1376, 2
    %v1378 = vadd.f32 %v1376, %v1377
    %v1379 = vrot.slane %v1378, 1
    %v1380 = vadd.f32 %v1378, %v1379
    %v1382 = vsel %vm167, %v1219, 0
    %v1385 = vsel %vm167, %v1220, 0
    %1387 = vmatprep.subr.mxu0 0.0
    %1388 = vmatpush1.msra.mxu0 %v1370
    %1389 = vmatprep.subr.mxu0 0.0
    %1390 = vmatpush1.msra.mxu0 %v1371
    %1391 = vmatprep.subr.mxu0 0.0
    %1392 = vmatpush1.msra.mxu0 0.0
    %1393 = vmatprep.subr.mxu0 0.0
    %1394 = vmatpush1.msra.mxu0 0.0
    %1395 = vmatprep.subr.mxu0 0.0
    %1396 = vmatpush1.msra.mxu0 0.0
    %1397 = vmatprep.subr.mxu0 0.0
    %1398 = vmatpush1.msra.mxu0 0.0
    %1399 = vmatprep.subr.mxu0 0.0
    %1400 = vmatpush1.msra.mxu0 0.0
    %1401 = vmatprep.subr.mxu0 0.0
    %1402 = vmatpush1.msra.mxu0 0.0
    %1403 = vmatprep.subr.mxu0 0.0
    %1404 = vmatpush1.msra.mxu0 0.0
    %1405 = vmatprep.subr.mxu0 0.0
    %1406 = vmatpush1.msra.mxu0 0.0
    %1407 = vmatprep.subr.mxu0 0.0
    %1408 = vmatpush1.msra.mxu0 0.0
    %1409 = vmatprep.subr.mxu0 0.0
    %1410 = vmatpush1.msra.mxu0 0.0
    %1411 = vmatprep.subr.mxu0 0.0
    %1412 = vmatpush1.msra.mxu0 0.0
    %1413 = vmatprep.subr.mxu0 0.0
    %1414 = vmatpush1.msra.mxu0 0.0
    %1415 = vmatprep.subr.mxu0 0.0
    %1416 = vmatpush1.msra.mxu0 0.0
    %1417 = vmatprep.subr.mxu0 0.0
    %1418 = vmatpush1.msra.mxu0 0.0
    %1419 = vmatprep.subr.mxu0 0.0
    %1420 = vmatpush1.msra.mxu0 0.0
    %1421 = vmatprep.subr.mxu0 0.0
    %1422 = vmatpush1.msra.mxu0 0.0
    %1423 = vmatprep.subr.mxu0 0.0
    %1424 = vmatpush1.msra.mxu0 0.0
    %1425 = vmatprep.subr.mxu0 0.0
    %1426 = vmatpush1.msra.mxu0 0.0
    %1427 = vmatprep.subr.mxu0 0.0
    %1428 = vmatpush1.msra.mxu0 0.0
    %1429 = vmatprep.subr.mxu0 0.0
    %1430 = vmatpush1.msra.mxu0 0.0
    %1431 = vmatprep.subr.mxu0 0.0
    %1432 = vmatpush1.msra.mxu0 0.0
    %1433 = vmatprep.subr.mxu0 0.0
    %1434 = vmatpush1.msra.mxu0 0.0
    %1435 = vmatprep.subr.mxu0 0.0
    %1436 = vmatpush1.msra.mxu0 0.0
    %1437 = vmatprep.subr.mxu0 0.0
    %1438 = vmatpush1.msra.mxu0 0.0
    %1439 = vmatprep.subr.mxu0 0.0
    %1440 = vmatpush1.msra.mxu0 0.0
    %1441 = vmatprep.subr.mxu0 0.0
    %1442 = vmatpush1.msra.mxu0 0.0
    %1443 = vmatprep.subr.mxu0 0.0
    %1444 = vmatpush1.msra.mxu0 0.0
    %1445 = vmatprep.subr.mxu0 0.0
    %1446 = vmatpush1.msra.mxu0 0.0
    %1447 = vmatprep.subr.mxu0 0.0
    %1448 = vmatpush1.msra.mxu0 0.0
    %1449 = vmatprep.subr.mxu0 0.0
    %1450 = vmatpush1.msra.mxu0 0.0
    %1451 = vmatprep.mubr.f32.mxu0 0.0
    %1452 = vmatmul.mubr.f32.gmra.mrb[0].mxu0 %v1382
    %v1453 = vpop.f32.mrb[0].mxu0
    %v1454 = vadd.f32 0.0, %v1453
    %v1455 = vpop.f32.mrb[0].mxu0
    %1456 = vmatprep.mubr.f32.mxu0 0.0
    %1457 = vmatmul.mubr.f32.gmra.mrb[0].mxu0 %v1385
    %v1458 = vpop.f32.mrb[0].mxu0
    %v1459 = vadd.f32 0.0, %v1458
    %v1460 = vpop.f32.mrb[0].mxu0
    %1461 = vdwg.mxu0
    %v1462 = vmul.f32 %v1380, %v1211
    %v1463 = vmul.f32 %v1380, %v1212
    %v1464 = vsub.f32 %v1454, %v1462
    %v1465 = vsub.f32 %v1459, %v1463
    %v1466 = vmul.f32 %v1464, %v1464
    %v1467 = vmul.f32 %v1465, %v1465
    %v1468 = vsel %vm325, %v1466, 0.0
    %v1469 = vsel %vm325, %v1467, 0.0
    %v1470 = vadd.f32 %v1468, %v1469
    %v1471 = vrot.slane %v1470, 4
    %v1472 = vadd.f32 %v1470, %v1471
    %v1473 = vrot.slane %v1472, 2
    %v1474 = vadd.f32 %v1472, %v1473
    %v1475 = vrot.slane %v1474, 1
    %v1476 = vadd.f32 %v1474, %v1475
    %v1477 = vmax.f32 %v1476, 1e-24
    %v1478 = vrsqrt.pop %v1477
    %v1479 = vmul.f32 %v1464, %v1478
    %v1480 = vmul.f32 %v1465, %v1478
    %1481 = vxpose.xlu0.b32.start [1/16] %v1479, 128
    %1482 = vxpose.xlu0.b32.cont [2/16] %v1480, 128
    %1483 = vxpose.xlu0.b32.cont [3/16] 0.0, 128
    %1484 = vxpose.xlu0.b32.cont [4/16] 0.0, 128
    %1485 = vxpose.xlu0.b32.cont [5/16] 0.0, 128
    %1486 = vxpose.xlu0.b32.cont [6/16] 0.0, 128
    %1487 = vxpose.xlu0.b32.cont [7/16] 0.0, 128
    %1488 = vxpose.xlu0.b32.cont [8/16] 0.0, 128
    %1489 = vxpose.xlu0.b32.cont [9/16] 0.0, 128
    %1490 = vxpose.xlu0.b32.cont [10/16] 0.0, 128
    %1491 = vxpose.xlu0.b32.cont [11/16] 0.0, 128
    %1492 = vxpose.xlu0.b32.cont [12/16] 0.0, 128
    %1493 = vxpose.xlu0.b32.cont [13/16] 0.0, 128
    %1494 = vxpose.xlu0.b32.cont [14/16] 0.0, 128
    %1495 = vxpose.xlu0.b32.cont [15/16] 0.0, 128
    %1496 = vxpose.xlu0.b32.end [16/16] 0.0, 128
    %v1497 = vpop.trf.xlu0
    %v1498 = vpop.trf.xlu0
    %v1499 = vpop.trf.xlu0
    %v1500 = vpop.trf.xlu0
    %v1501 = vpop.trf.xlu0
    %v1502 = vpop.trf.xlu0
    %v1503 = vpop.trf.xlu0
    %v1504 = vpop.trf.xlu0
    %v1505 = vpop.trf.xlu0
    %v1506 = vpop.trf.xlu0
    %v1507 = vpop.trf.xlu0
    %v1508 = vpop.trf.xlu0
    %v1509 = vpop.trf.xlu0
    %v1510 = vpop.trf.xlu0
    %v1511 = vpop.trf.xlu0
    %v1512 = vpop.trf.xlu0
    %v1514 = vsel %vm167, %v1497, 0
    %1516 = vmatprep.subr.mxu0 %v1216
    %1517 = vmatpush1.msra.mxu0 %v1215
    %1518 = vmatprep.subr.mxu0 %v1218
    %1519 = vmatpush1.msra.mxu0 %v1217
    %1520 = vmatprep.subr.mxu0 0.0
    %1521 = vmatpush1.msra.mxu0 0.0
    %1522 = vmatprep.subr.mxu0 0.0
    %1523 = vmatpush1.msra.mxu0 0.0
    %1524 = vmatprep.subr.mxu0 0.0
    %1525 = vmatpush1.msra.mxu0 0.0
    %1526 = vmatprep.subr.mxu0 0.0
    %1527 = vmatpush1.msra.mxu0 0.0
    %1528 = vmatprep.subr.mxu0 0.0
    %1529 = vmatpush1.msra.mxu0 0.0
    %1530 = vmatprep.subr.mxu0 0.0
    %1531 = vmatpush1.msra.mxu0 0.0
    %1532 = vmatprep.subr.mxu0 0.0
    %1533 = vmatpush1.msra.mxu0 0.0
    %1534 = vmatprep.subr.mxu0 0.0
    %1535 = vmatpush1.msra.mxu0 0.0
    %1536 = vmatprep.subr.mxu0 0.0
    %1537 = vmatpush1.msra.mxu0 0.0
    %1538 = vmatprep.subr.mxu0 0.0
    %1539 = vmatpush1.msra.mxu0 0.0
    %1540 = vmatprep.subr.mxu0 0.0
    %1541 = vmatpush1.msra.mxu0 0.0
    %1542 = vmatprep.subr.mxu0 0.0
    %1543 = vmatpush1.msra.mxu0 0.0
    %1544 = vmatprep.subr.mxu0 0.0
    %1545 = vmatpush1.msra.mxu0 0.0
    %1546 = vmatprep.subr.mxu0 0.0
    %1547 = vmatpush1.msra.mxu0 0.0
    %1548 = vmatprep.subr.mxu0 0.0
    %1549 = vmatpush1.msra.mxu0 0.0
    %1550 = vmatprep.subr.mxu0 0.0
    %1551 = vmatpush1.msra.mxu0 0.0
    %1552 = vmatprep.subr.mxu0 0.0
    %1553 = vmatpush1.msra.mxu0 0.0
    %1554 = vmatprep.subr.mxu0 0.0
    %1555 = vmatpush1.msra.mxu0 0.0
    %1556 = vmatprep.subr.mxu0 0.0
    %1557 = vmatpush1.msra.mxu0 0.0
    %1558 = vmatprep.subr.mxu0 0.0
    %1559 = vmatpush1.msra.mxu0 0.0
    %1560 = vmatprep.subr.mxu0 0.0
    %1561 = vmatpush1.msra.mxu0 0.0
    %1562 = vmatprep.subr.mxu0 0.0
    %1563 = vmatpush1.msra.mxu0 0.0
    %1564 = vmatprep.subr.mxu0 0.0
    %1565 = vmatpush1.msra.mxu0 0.0
    %1566 = vmatprep.subr.mxu0 0.0
    %1567 = vmatpush1.msra.mxu0 0.0
    %1568 = vmatprep.subr.mxu0 0.0
    %1569 = vmatpush1.msra.mxu0 0.0
    %1570 = vmatprep.subr.mxu0 0.0
    %1571 = vmatpush1.msra.mxu0 0.0
    %1572 = vmatprep.subr.mxu0 0.0
    %1573 = vmatpush1.msra.mxu0 0.0
    %1574 = vmatprep.subr.mxu0 0.0
    %1575 = vmatpush1.msra.mxu0 0.0
    %1576 = vmatprep.subr.mxu0 0.0
    %1577 = vmatpush1.msra.mxu0 0.0
    %1578 = vmatprep.subr.mxu0 0.0
    %1579 = vmatpush1.msra.mxu0 0.0
    %1580 = vmatprep.mubr.f32.mxu0 0.0
    %1581 = vmatmul.mubr.f32.gmra.mrb[0].mxu0 %v1514
    %v1582 = vpop.f32.mrb[0].mxu0
    %v1583 = vadd.f32 0.0, %v1582
    %v1584 = vpop.f32.mrb[0].mxu0
    %v1585 = vadd.f32 0.0, %v1584
    %1586 = vdwg.mxu0
    %v1587 = vadd.f32 %v677, %v1583
    %v1589 = vrot.slane %v1583, 1
    %1590 = vrot.lane.b32.xlu0 %v1589, 96
    %v1591 = vpop.permute.xlu0 %1590
    %v1593 = vadd.f32 %v1587, %v1591
    %v1594 = vrot.slane %v1583, 2
    %1595 = vrot.lane.b32.xlu0 %v1594, 64
    %v1596 = vpop.permute.xlu0 %1595
    %v1598 = vadd.f32 %v1593, %v1596
    %v1599 = vrot.slane %v1583, 3
    %1600 = vrot.lane.b32.xlu0 %v1599, 32
    %v1601 = vpop.permute.xlu0 %1600
    %v1603 = vadd.f32 %v1598, %v1601
    %v1605 = vrot.slane %v1585, 4
    %v1607 = vadd.f32 %v1603, %v1605
    %v1608 = vrot.slane %v1585, 5
    %1609 = vrot.lane.b32.xlu0 %v1608, 96
    %v1610 = vpop.permute.xlu0 %1609
    %v1612 = vadd.f32 %v1607, %v1610
    %v1613 = vrot.slane %v1585, 6
    %1614 = vrot.lane.b32.xlu0 %v1613, 64
    %v1615 = vpop.permute.xlu0 %1614
    %v1617 = vadd.f32 %v1612, %v1615
    %v1618 = vrot.slane %v1585, 7
    %1619 = vrot.lane.b32.xlu0 %v1618, 32
    %v1620 = vpop.permute.xlu0 %1619
    %v1622 = vadd.f32 %v1617, %v1620
    %s1623 = scalar_lea.vmem %s3, 16
    %v1624 = vld [vmem:[%s1623] sm:$0xff]
    %v1625 = vld [vmem:[%s1623 + $0x8] sm:$0xff]
    %1626 = vxpose.xlu0.b32.start [1/16] %v1624, 128
    %1627 = vxpose.xlu0.b32.cont [2/16] %v1625, 128
    %1628 = vxpose.xlu0.b32.cont [3/16] 0.0, 128
    %1629 = vxpose.xlu0.b32.cont [4/16] 0.0, 128
    %1630 = vxpose.xlu0.b32.cont [5/16] 0.0, 128
    %1631 = vxpose.xlu0.b32.cont [6/16] 0.0, 128
    %1632 = vxpose.xlu0.b32.cont [7/16] 0.0, 128
    %1633 = vxpose.xlu0.b32.cont [8/16] 0.0, 128
    %1634 = vxpose.xlu0.b32.cont [9/16] 0.0, 128
    %1635 = vxpose.xlu0.b32.cont [10/16] 0.0, 128
    %1636 = vxpose.xlu0.b32.cont [11/16] 0.0, 128
    %1637 = vxpose.xlu0.b32.cont [12/16] 0.0, 128
    %1638 = vxpose.xlu0.b32.cont [13/16] 0.0, 128
    %1639 = vxpose.xlu0.b32.cont [14/16] 0.0, 128
    %1640 = vxpose.xlu0.b32.cont [15/16] 0.0, 128
    %1641 = vxpose.xlu0.b32.end [16/16] 0.0, 128
    %v1642 = vpop.trf.xlu0
    %v1643 = vpop.trf.xlu0
    %v1644 = vpop.trf.xlu0
    %v1645 = vpop.trf.xlu0
    %v1646 = vpop.trf.xlu0
    %v1647 = vpop.trf.xlu0
    %v1648 = vpop.trf.xlu0
    %v1649 = vpop.trf.xlu0
    %v1650 = vpop.trf.xlu0
    %v1651 = vpop.trf.xlu0
    %v1652 = vpop.trf.xlu0
    %v1653 = vpop.trf.xlu0
    %v1654 = vpop.trf.xlu0
    %v1655 = vpop.trf.xlu0
    %v1656 = vpop.trf.xlu0
    %v1657 = vpop.trf.xlu0
    %v1659 = vsel %vm167, %v1642, 0
    %v1662 = vsel %vm167, %v1643, 0
    %1664 = vmatprep.subr.mxu0 0.0
    %1665 = vmatpush1.msra.mxu0 %v1209
    %1666 = vmatprep.subr.mxu0 0.0
    %1667 = vmatpush1.msra.mxu0 %v1210
    %1668 = vmatprep.subr.mxu0 0.0
    %1669 = vmatpush1.msra.mxu0 0.0
    %1670 = vmatprep.subr.mxu0 0.0
    %1671 = vmatpush1.msra.mxu0 0.0
    %1672 = vmatprep.subr.mxu0 0.0
    %1673 = vmatpush1.msra.mxu0 0.0
    %1674 = vmatprep.subr.mxu0 0.0
    %1675 = vmatpush1.msra.mxu0 0.0
    %1676 = vmatprep.subr.mxu0 0.0
    %1677 = vmatpush1.msra.mxu0 0.0
    %1678 = vmatprep.subr.mxu0 0.0
    %1679 = vmatpush1.msra.mxu0 0.0
    %1680 = vmatprep.subr.mxu0 0.0
    %1681 = vmatpush1.msra.mxu0 0.0
    %1682 = vmatprep.subr.mxu0 0.0
    %1683 = vmatpush1.msra.mxu0 0.0
    %1684 = vmatprep.subr.mxu0 0.0
    %1685 = vmatpush1.msra.mxu0 0.0
    %1686 = vmatprep.subr.mxu0 0.0
    %1687 = vmatpush1.msra.mxu0 0.0
    %1688 = vmatprep.subr.mxu0 0.0
    %1689 = vmatpush1.msra.mxu0 0.0
    %1690 = vmatprep.subr.mxu0 0.0
    %1691 = vmatpush1.msra.mxu0 0.0
    %1692 = vmatprep.subr.mxu0 0.0
    %1693 = vmatpush1.msra.mxu0 0.0
    %1694 = vmatprep.subr.mxu0 0.0
    %1695 = vmatpush1.msra.mxu0 0.0
    %1696 = vmatprep.subr.mxu0 0.0
    %1697 = vmatpush1.msra.mxu0 0.0
    %1698 = vmatprep.subr.mxu0 0.0
    %1699 = vmatpush1.msra.mxu0 0.0
    %1700 = vmatprep.subr.mxu0 0.0
    %1701 = vmatpush1.msra.mxu0 0.0
    %1702 = vmatprep.subr.mxu0 0.0
    %1703 = vmatpush1.msra.mxu0 0.0
    %1704 = vmatprep.subr.mxu0 0.0
    %1705 = vmatpush1.msra.mxu0 0.0
    %1706 = vmatprep.subr.mxu0 0.0
    %1707 = vmatpush1.msra.mxu0 0.0
    %1708 = vmatprep.subr.mxu0 0.0
    %1709 = vmatpush1.msra.mxu0 0.0
    %1710 = vmatprep.subr.mxu0 0.0
    %1711 = vmatpush1.msra.mxu0 0.0
    %1712 = vmatprep.subr.mxu0 0.0
    %1713 = vmatpush1.msra.mxu0 0.0
    %1714 = vmatprep.subr.mxu0 0.0
    %1715 = vmatpush1.msra.mxu0 0.0
    %1716 = vmatprep.subr.mxu0 0.0
    %1717 = vmatpush1.msra.mxu0 0.0
    %1718 = vmatprep.subr.mxu0 0.0
    %1719 = vmatpush1.msra.mxu0 0.0
    %1720 = vmatprep.subr.mxu0 0.0
    %1721 = vmatpush1.msra.mxu0 0.0
    %1722 = vmatprep.subr.mxu0 0.0
    %1723 = vmatpush1.msra.mxu0 0.0
    %1724 = vmatprep.subr.mxu0 0.0
    %1725 = vmatpush1.msra.mxu0 0.0
    %1726 = vmatprep.subr.mxu0 0.0
    %1727 = vmatpush1.msra.mxu0 0.0
    %1728 = vmatprep.mubr.f32.mxu0 0.0
    %1729 = vmatmul.mubr.f32.gmra.mrb[0].mxu0 %v1659
    %v1730 = vpop.f32.mrb[0].mxu0
    %v1731 = vadd.f32 0.0, %v1730
    %v1732 = vpop.f32.mrb[0].mxu0
    %1733 = vmatprep.mubr.f32.mxu0 0.0
    %1734 = vmatmul.mubr.f32.gmra.mrb[0].mxu0 %v1662
    %v1735 = vpop.f32.mrb[0].mxu0
    %v1736 = vadd.f32 0.0, %v1735
    %v1737 = vpop.f32.mrb[0].mxu0
    %1738 = vdwg.mxu0
    %v1739 = vmul.f32 %v1731, %v1338
    %v1740 = vmul.f32 %v1736, %v1338
    %v1741 = vadd.f32 %v1739, %v1346
    %v1742 = vadd.f32 %v1740, %v1346
    %v1743 = vsel %vm325, %v1741, -inf
    %1744 = vmax.xlane.f32.xlu0 %v1743
    %v1745 = vpop.xlane.xlu0 %1744
    %v1746 = vsel %vm325, %v1742, -inf
    %1747 = vmax.xlane.f32.xlu0 %v1746
    %v1748 = vpop.xlane.xlu0 %1747
    %v1749 = vsub.f32 %v1741, %v1745
    %v1750 = vsub.f32 %v1742, %v1748
    %v1751 = vmul.f32 %v1749, 1.442695
    %v1752 = vpow.pop %v1751
    %v1753 = vmul.f32 %v1750, 1.442695
    %v1754 = vpow.pop %v1753
    %v1755 = vsel %vm325, %v1752, 0.0
    %1756 = vadd.xlane.f32.xlu0 %v1755
    %v1757 = vpop.xlane.xlu0 %1756
    %v1758 = vsel %vm325, %v1754, 0.0
    %1759 = vadd.xlane.f32.xlu0 %v1758
    %v1760 = vpop.xlane.xlu0 %1759
    %v1761 = vrcp.pop %v1757
    %v1762 = vrcp.pop %v1760
    %v1763 = vmul.f32 %v1752, %v1761
    %v1764 = vmul.f32 %v1754, %v1762
    %v1765 = vsel %vm325, %v1763, 0.0
    %v1766 = vsel %vm325, %v1764, 0.0
    %v1767 = vadd.f32 %v1765, %v1766
    %v1768 = vrot.slane %v1767, 4
    %v1769 = vadd.f32 %v1767, %v1768
    %v1770 = vrot.slane %v1769, 2
    %v1771 = vadd.f32 %v1769, %v1770
    %v1772 = vrot.slane %v1771, 1
    %v1773 = vadd.f32 %v1771, %v1772
    %v1775 = vsel %vm167, %v1624, 0
    %v1778 = vsel %vm167, %v1625, 0
    %1780 = vmatprep.subr.mxu0 0.0
    %1781 = vmatpush1.msra.mxu0 %v1763
    %1782 = vmatprep.subr.mxu0 0.0
    %1783 = vmatpush1.msra.mxu0 %v1764
    %1784 = vmatprep.subr.mxu0 0.0
    %1785 = vmatpush1.msra.mxu0 0.0
    %1786 = vmatprep.subr.mxu0 0.0
    %1787 = vmatpush1.msra.mxu0 0.0
    %1788 = vmatprep.subr.mxu0 0.0
    %1789 = vmatpush1.msra.mxu0 0.0
    %1790 = vmatprep.subr.mxu0 0.0
    %1791 = vmatpush1.msra.mxu0 0.0
    %1792 = vmatprep.subr.mxu0 0.0
    %1793 = vmatpush1.msra.mxu0 0.0
    %1794 = vmatprep.subr.mxu0 0.0
    %1795 = vmatpush1.msra.mxu0 0.0
    %1796 = vmatprep.subr.mxu0 0.0
    %1797 = vmatpush1.msra.mxu0 0.0
    %1798 = vmatprep.subr.mxu0 0.0
    %1799 = vmatpush1.msra.mxu0 0.0
    %1800 = vmatprep.subr.mxu0 0.0
    %1801 = vmatpush1.msra.mxu0 0.0
    %1802 = vmatprep.subr.mxu0 0.0
    %1803 = vmatpush1.msra.mxu0 0.0
    %1804 = vmatprep.subr.mxu0 0.0
    %1805 = vmatpush1.msra.mxu0 0.0
    %1806 = vmatprep.subr.mxu0 0.0
    %1807 = vmatpush1.msra.mxu0 0.0
    %1808 = vmatprep.subr.mxu0 0.0
    %1809 = vmatpush1.msra.mxu0 0.0
    %1810 = vmatprep.subr.mxu0 0.0
    %1811 = vmatpush1.msra.mxu0 0.0
    %1812 = vmatprep.subr.mxu0 0.0
    %1813 = vmatpush1.msra.mxu0 0.0
    %1814 = vmatprep.subr.mxu0 0.0
    %1815 = vmatpush1.msra.mxu0 0.0
    %1816 = vmatprep.subr.mxu0 0.0
    %1817 = vmatpush1.msra.mxu0 0.0
    %1818 = vmatprep.subr.mxu0 0.0
    %1819 = vmatpush1.msra.mxu0 0.0
    %1820 = vmatprep.subr.mxu0 0.0
    %1821 = vmatpush1.msra.mxu0 0.0
    %1822 = vmatprep.subr.mxu0 0.0
    %1823 = vmatpush1.msra.mxu0 0.0
    %1824 = vmatprep.subr.mxu0 0.0
    %1825 = vmatpush1.msra.mxu0 0.0
    %1826 = vmatprep.subr.mxu0 0.0
    %1827 = vmatpush1.msra.mxu0 0.0
    %1828 = vmatprep.subr.mxu0 0.0
    %1829 = vmatpush1.msra.mxu0 0.0
    %1830 = vmatprep.subr.mxu0 0.0
    %1831 = vmatpush1.msra.mxu0 0.0
    %1832 = vmatprep.subr.mxu0 0.0
    %1833 = vmatpush1.msra.mxu0 0.0
    %1834 = vmatprep.subr.mxu0 0.0
    %1835 = vmatpush1.msra.mxu0 0.0
    %1836 = vmatprep.subr.mxu0 0.0
    %1837 = vmatpush1.msra.mxu0 0.0
    %1838 = vmatprep.subr.mxu0 0.0
    %1839 = vmatpush1.msra.mxu0 0.0
    %1840 = vmatprep.subr.mxu0 0.0
    %1841 = vmatpush1.msra.mxu0 0.0
    %1842 = vmatprep.subr.mxu0 0.0
    %1843 = vmatpush1.msra.mxu0 0.0
    %1844 = vmatprep.mubr.f32.mxu0 0.0
    %1845 = vmatmul.mubr.f32.gmra.mrb[0].mxu0 %v1775
    %v1846 = vpop.f32.mrb[0].mxu0
    %v1847 = vadd.f32 0.0, %v1846
    %v1848 = vpop.f32.mrb[0].mxu0
    %1849 = vmatprep.mubr.f32.mxu0 0.0
    %1850 = vmatmul.mubr.f32.gmra.mrb[0].mxu0 %v1778
    %v1851 = vpop.f32.mrb[0].mxu0
    %v1852 = vadd.f32 0.0, %v1851
    %v1853 = vpop.f32.mrb[0].mxu0
    %1854 = vdwg.mxu0
    %v1855 = vmul.f32 %v1773, %v1211
    %v1856 = vmul.f32 %v1773, %v1212
    %v1857 = vsub.f32 %v1847, %v1855
    %v1858 = vsub.f32 %v1852, %v1856
    %v1859 = vmul.f32 %v1857, %v1857
    %v1860 = vmul.f32 %v1858, %v1858
    %v1861 = vsel %vm325, %v1859, 0.0
    %v1862 = vsel %vm325, %v1860, 0.0
    %v1863 = vadd.f32 %v1861, %v1862
    %v1864 = vrot.slane %v1863, 4
    %v1865 = vadd.f32 %v1863, %v1864
    %v1866 = vrot.slane %v1865, 2
    %v1867 = vadd.f32 %v1865, %v1866
    %v1868 = vrot.slane %v1867, 1
    %v1869 = vadd.f32 %v1867, %v1868
    %v1870 = vmax.f32 %v1869, 1e-24
    %v1871 = vrsqrt.pop %v1870
    %v1872 = vmul.f32 %v1857, %v1871
    %v1873 = vmul.f32 %v1858, %v1871
    %1874 = vxpose.xlu0.b32.start [1/16] %v1872, 128
    %1875 = vxpose.xlu0.b32.cont [2/16] %v1873, 128
    %1876 = vxpose.xlu0.b32.cont [3/16] 0.0, 128
    %1877 = vxpose.xlu0.b32.cont [4/16] 0.0, 128
    %1878 = vxpose.xlu0.b32.cont [5/16] 0.0, 128
    %1879 = vxpose.xlu0.b32.cont [6/16] 0.0, 128
    %1880 = vxpose.xlu0.b32.cont [7/16] 0.0, 128
    %1881 = vxpose.xlu0.b32.cont [8/16] 0.0, 128
    %1882 = vxpose.xlu0.b32.cont [9/16] 0.0, 128
    %1883 = vxpose.xlu0.b32.cont [10/16] 0.0, 128
    %1884 = vxpose.xlu0.b32.cont [11/16] 0.0, 128
    %1885 = vxpose.xlu0.b32.cont [12/16] 0.0, 128
    %1886 = vxpose.xlu0.b32.cont [13/16] 0.0, 128
    %1887 = vxpose.xlu0.b32.cont [14/16] 0.0, 128
    %1888 = vxpose.xlu0.b32.cont [15/16] 0.0, 128
    %1889 = vxpose.xlu0.b32.end [16/16] 0.0, 128
    %v1890 = vpop.trf.xlu0
    %v1891 = vpop.trf.xlu0
    %v1892 = vpop.trf.xlu0
    %v1893 = vpop.trf.xlu0
    %v1894 = vpop.trf.xlu0
    %v1895 = vpop.trf.xlu0
    %v1896 = vpop.trf.xlu0
    %v1897 = vpop.trf.xlu0
    %v1898 = vpop.trf.xlu0
    %v1899 = vpop.trf.xlu0
    %v1900 = vpop.trf.xlu0
    %v1901 = vpop.trf.xlu0
    %v1902 = vpop.trf.xlu0
    %v1903 = vpop.trf.xlu0
    %v1904 = vpop.trf.xlu0
    %v1905 = vpop.trf.xlu0
    %v1907 = vsel %vm167, %v1890, 0
    %1909 = vmatprep.subr.mxu0 %v1216
    %1910 = vmatpush1.msra.mxu0 %v1215
    %1911 = vmatprep.subr.mxu0 %v1218
    %1912 = vmatpush1.msra.mxu0 %v1217
    %1913 = vmatprep.subr.mxu0 0.0
    %1914 = vmatpush1.msra.mxu0 0.0
    %1915 = vmatprep.subr.mxu0 0.0
    %1916 = vmatpush1.msra.mxu0 0.0
    %1917 = vmatprep.subr.mxu0 0.0
    %1918 = vmatpush1.msra.mxu0 0.0
    %1919 = vmatprep.subr.mxu0 0.0
    %1920 = vmatpush1.msra.mxu0 0.0
    %1921 = vmatprep.subr.mxu0 0.0
    %1922 = vmatpush1.msra.mxu0 0.0
    %1923 = vmatprep.subr.mxu0 0.0
    %1924 = vmatpush1.msra.mxu0 0.0
    %1925 = vmatprep.subr.mxu0 0.0
    %1926 = vmatpush1.msra.mxu0 0.0
    %1927 = vmatprep.subr.mxu0 0.0
    %1928 = vmatpush1.msra.mxu0 0.0
    %1929 = vmatprep.subr.mxu0 0.0
    %1930 = vmatpush1.msra.mxu0 0.0
    %1931 = vmatprep.subr.mxu0 0.0
    %1932 = vmatpush1.msra.mxu0 0.0
    %1933 = vmatprep.subr.mxu0 0.0
    %1934 = vmatpush1.msra.mxu0 0.0
    %1935 = vmatprep.subr.mxu0 0.0
    %1936 = vmatpush1.msra.mxu0 0.0
    %1937 = vmatprep.subr.mxu0 0.0
    %1938 = vmatpush1.msra.mxu0 0.0
    %1939 = vmatprep.subr.mxu0 0.0
    %1940 = vmatpush1.msra.mxu0 0.0
    %1941 = vmatprep.subr.mxu0 0.0
    %1942 = vmatpush1.msra.mxu0 0.0
    %1943 = vmatprep.subr.mxu0 0.0
    %1944 = vmatpush1.msra.mxu0 0.0
    %1945 = vmatprep.subr.mxu0 0.0
    %1946 = vmatpush1.msra.mxu0 0.0
    %1947 = vmatprep.subr.mxu0 0.0
    %1948 = vmatpush1.msra.mxu0 0.0
    %1949 = vmatprep.subr.mxu0 0.0
    %1950 = vmatpush1.msra.mxu0 0.0
    %1951 = vmatprep.subr.mxu0 0.0
    %1952 = vmatpush1.msra.mxu0 0.0
    %1953 = vmatprep.subr.mxu0 0.0
    %1954 = vmatpush1.msra.mxu0 0.0
    %1955 = vmatprep.subr.mxu0 0.0
    %1956 = vmatpush1.msra.mxu0 0.0
    %1957 = vmatprep.subr.mxu0 0.0
    %1958 = vmatpush1.msra.mxu0 0.0
    %1959 = vmatprep.subr.mxu0 0.0
    %1960 = vmatpush1.msra.mxu0 0.0
    %1961 = vmatprep.subr.mxu0 0.0
    %1962 = vmatpush1.msra.mxu0 0.0
    %1963 = vmatprep.subr.mxu0 0.0
    %1964 = vmatpush1.msra.mxu0 0.0
    %1965 = vmatprep.subr.mxu0 0.0
    %1966 = vmatpush1.msra.mxu0 0.0
    %1967 = vmatprep.subr.mxu0 0.0
    %1968 = vmatpush1.msra.mxu0 0.0
    %1969 = vmatprep.subr.mxu0 0.0
    %1970 = vmatpush1.msra.mxu0 0.0
    %1971 = vmatprep.subr.mxu0 0.0
    %1972 = vmatpush1.msra.mxu0 0.0
    %1973 = vmatprep.mubr.f32.mxu0 0.0
    %1974 = vmatmul.mubr.f32.gmra.mrb[0].mxu0 %v1907
    %v1975 = vpop.f32.mrb[0].mxu0
    %v1976 = vadd.f32 0.0, %v1975
    %v1977 = vpop.f32.mrb[0].mxu0
    %v1978 = vadd.f32 0.0, %v1977
    %1979 = vdwg.mxu0
    %v1980 = vadd.f32 %v1208, %v1976
    %v1982 = vrot.slane %v1976, 1
    %1983 = vrot.lane.b32.xlu0 %v1982, 96
    %v1984 = vpop.permute.xlu0 %1983
    %v1986 = vadd.f32 %v1980, %v1984
    %v1987 = vrot.slane %v1976, 2
    %1988 = vrot.lane.b32.xlu0 %v1987, 64
    %v1989 = vpop.permute.xlu0 %1988
    %v1991 = vadd.f32 %v1986, %v1989
    %v1992 = vrot.slane %v1976, 3
    %1993 = vrot.lane.b32.xlu0 %v1992, 32
    %v1994 = vpop.permute.xlu0 %1993
    %v1996 = vadd.f32 %v1991, %v1994
    %v1998 = vrot.slane %v1978, 4
    %v2000 = vadd.f32 %v1996, %v1998
    %v2001 = vrot.slane %v1978, 5
    %2002 = vrot.lane.b32.xlu0 %v2001, 96
    %v2003 = vpop.permute.xlu0 %2002
    %v2005 = vadd.f32 %v2000, %v2003
    %v2006 = vrot.slane %v1978, 6
    %2007 = vrot.lane.b32.xlu0 %v2006, 64
    %v2008 = vpop.permute.xlu0 %2007
    %v2010 = vadd.f32 %v2005, %v2008
    %v2011 = vrot.slane %v1978, 7
    %2012 = vrot.lane.b32.xlu0 %v2011, 32
    %v2013 = vpop.permute.xlu0 %2012
    %v2015 = vadd.f32 %v2010, %v2013
    %v2016 = vld [vmem:[%s13] sm:$0xff]
    %v2017 = vld [vmem:[%s13 + $0x8] sm:$0xff]
    %v2018 = vld [vmem:[%s21] sm:$0xff]
    %v2019 = vld [vmem:[%s21 + $0x8] sm:$0xff]
    %v2020 = vld [vmem:[%s29] sm:$0x1]
    %v2021 = vld [vmem:[%s37] sm:$0x1]
    %v2022 = vld [vmem:[%s45] sm:$0xff]
    %v2023 = vld [vmem:[%s45 + $0x8] sm:$0xff]
    %v2024 = vld [vmem:[%s45 + $0x10] sm:$0xff]
    %v2025 = vld [vmem:[%s45 + $0x18] sm:$0xff]
    %v2026 = vld [vmem:[%s5] sm:$0xff]
    %v2027 = vld [vmem:[%s5 + $0x8] sm:$0xff]
    %2028 = vxpose.xlu0.b32.start [1/16] %v2026, 128
    %2029 = vxpose.xlu0.b32.cont [2/16] %v2027, 128
    %2030 = vxpose.xlu0.b32.cont [3/16] 0.0, 128
    %2031 = vxpose.xlu0.b32.cont [4/16] 0.0, 128
    %2032 = vxpose.xlu0.b32.cont [5/16] 0.0, 128
    %2033 = vxpose.xlu0.b32.cont [6/16] 0.0, 128
    %2034 = vxpose.xlu0.b32.cont [7/16] 0.0, 128
    %2035 = vxpose.xlu0.b32.cont [8/16] 0.0, 128
    %2036 = vxpose.xlu0.b32.cont [9/16] 0.0, 128
    %2037 = vxpose.xlu0.b32.cont [10/16] 0.0, 128
    %2038 = vxpose.xlu0.b32.cont [11/16] 0.0, 128
    %2039 = vxpose.xlu0.b32.cont [12/16] 0.0, 128
    %2040 = vxpose.xlu0.b32.cont [13/16] 0.0, 128
    %2041 = vxpose.xlu0.b32.cont [14/16] 0.0, 128
    %2042 = vxpose.xlu0.b32.cont [15/16] 0.0, 128
    %2043 = vxpose.xlu0.b32.end [16/16] 0.0, 128
    %v2044 = vpop.trf.xlu0
    %v2045 = vpop.trf.xlu0
    %v2046 = vpop.trf.xlu0
    %v2047 = vpop.trf.xlu0
    %v2048 = vpop.trf.xlu0
    %v2049 = vpop.trf.xlu0
    %v2050 = vpop.trf.xlu0
    %v2051 = vpop.trf.xlu0
    %v2052 = vpop.trf.xlu0
    %v2053 = vpop.trf.xlu0
    %v2054 = vpop.trf.xlu0
    %v2055 = vpop.trf.xlu0
    %v2056 = vpop.trf.xlu0
    %v2057 = vpop.trf.xlu0
    %v2058 = vpop.trf.xlu0
    %v2059 = vpop.trf.xlu0
    %v2061 = vsel %vm167, %v2044, 0
    %2063 = vmatprep.subr.mxu0 0.0
    %2064 = vmatpush1.msra.mxu0 %v2016
    %2065 = vmatprep.subr.mxu0 0.0
    %2066 = vmatpush1.msra.mxu0 %v2017
    %2067 = vmatprep.subr.mxu0 0.0
    %2068 = vmatpush1.msra.mxu0 0.0
    %2069 = vmatprep.subr.mxu0 0.0
    %2070 = vmatpush1.msra.mxu0 0.0
    %2071 = vmatprep.subr.mxu0 0.0
    %2072 = vmatpush1.msra.mxu0 0.0
    %2073 = vmatprep.subr.mxu0 0.0
    %2074 = vmatpush1.msra.mxu0 0.0
    %2075 = vmatprep.subr.mxu0 0.0
    %2076 = vmatpush1.msra.mxu0 0.0
    %2077 = vmatprep.subr.mxu0 0.0
    %2078 = vmatpush1.msra.mxu0 0.0
    %2079 = vmatprep.subr.mxu0 0.0
    %2080 = vmatpush1.msra.mxu0 0.0
    %2081 = vmatprep.subr.mxu0 0.0
    %2082 = vmatpush1.msra.mxu0 0.0
    %2083 = vmatprep.subr.mxu0 0.0
    %2084 = vmatpush1.msra.mxu0 0.0
    %2085 = vmatprep.subr.mxu0 0.0
    %2086 = vmatpush1.msra.mxu0 0.0
    %2087 = vmatprep.subr.mxu0 0.0
    %2088 = vmatpush1.msra.mxu0 0.0
    %2089 = vmatprep.subr.mxu0 0.0
    %2090 = vmatpush1.msra.mxu0 0.0
    %2091 = vmatprep.subr.mxu0 0.0
    %2092 = vmatpush1.msra.mxu0 0.0
    %2093 = vmatprep.subr.mxu0 0.0
    %2094 = vmatpush1.msra.mxu0 0.0
    %2095 = vmatprep.subr.mxu0 0.0
    %2096 = vmatpush1.msra.mxu0 0.0
    %2097 = vmatprep.subr.mxu0 0.0
    %2098 = vmatpush1.msra.mxu0 0.0
    %2099 = vmatprep.subr.mxu0 0.0
    %2100 = vmatpush1.msra.mxu0 0.0
    %2101 = vmatprep.subr.mxu0 0.0
    %2102 = vmatpush1.msra.mxu0 0.0
    %2103 = vmatprep.subr.mxu0 0.0
    %2104 = vmatpush1.msra.mxu0 0.0
    %2105 = vmatprep.subr.mxu0 0.0
    %2106 = vmatpush1.msra.mxu0 0.0
    %2107 = vmatprep.subr.mxu0 0.0
    %2108 = vmatpush1.msra.mxu0 0.0
    %2109 = vmatprep.subr.mxu0 0.0
    %2110 = vmatpush1.msra.mxu0 0.0
    %2111 = vmatprep.subr.mxu0 0.0
    %2112 = vmatpush1.msra.mxu0 0.0
    %2113 = vmatprep.subr.mxu0 0.0
    %2114 = vmatpush1.msra.mxu0 0.0
    %2115 = vmatprep.subr.mxu0 0.0
    %2116 = vmatpush1.msra.mxu0 0.0
    %2117 = vmatprep.subr.mxu0 0.0
    %2118 = vmatpush1.msra.mxu0 0.0
    %2119 = vmatprep.subr.mxu0 0.0
    %2120 = vmatpush1.msra.mxu0 0.0
    %2121 = vmatprep.subr.mxu0 0.0
    %2122 = vmatpush1.msra.mxu0 0.0
    %2123 = vmatprep.subr.mxu0 0.0
    %2124 = vmatpush1.msra.mxu0 0.0
    %2125 = vmatprep.subr.mxu0 0.0
    %2126 = vmatpush1.msra.mxu0 0.0
    %2127 = vmatprep.mubr.f32.mxu0 0.0
    %2128 = vmatmul.mubr.f32.gmra.mrb[0].mxu0 %v2061
    %v2129 = vpop.f32.mrb[0].mxu0
    %v2130 = vadd.f32 0.0, %v2129
    %v2131 = vpop.f32.mrb[0].mxu0
    %2132 = vdwg.mxu0
    %v2134 = vlaneseq
    %v2135 = vshrl.u32 %v2134, 7
    %v2136 = vsub.s32 0, %v2135
    %v2137 = vrot.slane %v2020, %v2136
    %v2139 = vmul.f32 %v2130, %v2137
    %v2141 = vlaneseq
    %v2142 = vshrl.u32 %v2141, 7
    %v2143 = vsub.s32 0, %v2142
    %v2144 = vrot.slane %v2021, %v2143
    %v2146 = vadd.f32 %v2139, %v2144
    %v2147 = vsel %vm325, %v2146, -inf
    %2148 = vmax.xlane.f32.xlu0 %v2147
    %v2149 = vpop.xlane.xlu0 %2148
    %v2150 = vsub.f32 %v2146, %v2149
    %v2151 = vmul.f32 %v2150, 1.442695
    %v2152 = vpow.pop %v2151
    %v2153 = vsel %vm325, %v2152, 0.0
    %2154 = vadd.xlane.f32.xlu0 %v2153
    %v2155 = vpop.xlane.xlu0 %2154
    %v2156 = vrcp.pop %v2155
    %v2157 = vmul.f32 %v2152, %v2156
    %v2158 = vsel %vm325, %v2157, 0.0
    %v2159 = vrot.slane %v2158, 4
    %v2160 = vadd.f32 %v2158, %v2159
    %v2161 = vrot.slane %v2160, 2
    %v2162 = vadd.f32 %v2160, %v2161
    %v2163 = vrot.slane %v2162, 1
    %v2164 = vadd.f32 %v2162, %v2163
    %v2166 = vsel %vm325, %v2026, 0
    %v2169 = vsel %vm325, %v2027, 0
    %2171 = vmatprep.subr.mxu0 0.0
    %2172 = vmatpush1.msra.mxu0 %v2157
    %2173 = vmatprep.subr.mxu0 0.0
    %2174 = vmatpush1.msra.mxu0 0.0
    %2175 = vmatprep.subr.mxu0 0.0
    %2176 = vmatpush1.msra.mxu0 0.0
    %2177 = vmatprep.subr.mxu0 0.0
    %2178 = vmatpush1.msra.mxu0 0.0
    %2179 = vmatprep.subr.mxu0 0.0
    %2180 = vmatpush1.msra.mxu0 0.0
    %2181 = vmatprep.subr.mxu0 0.0
    %2182 = vmatpush1.msra.mxu0 0.0
    %2183 = vmatprep.subr.mxu0 0.0
    %2184 = vmatpush1.msra.mxu0 0.0
    %2185 = vmatprep.subr.mxu0 0.0
    %2186 = vmatpush1.msra.mxu0 0.0
    %2187 = vmatprep.subr.mxu0 0.0
    %2188 = vmatpush1.msra.mxu0 0.0
    %2189 = vmatprep.subr.mxu0 0.0
    %2190 = vmatpush1.msra.mxu0 0.0
    %2191 = vmatprep.subr.mxu0 0.0
    %2192 = vmatpush1.msra.mxu0 0.0
    %2193 = vmatprep.subr.mxu0 0.0
    %2194 = vmatpush1.msra.mxu0 0.0
    %2195 = vmatprep.subr.mxu0 0.0
    %2196 = vmatpush1.msra.mxu0 0.0
    %2197 = vmatprep.subr.mxu0 0.0
    %2198 = vmatpush1.msra.mxu0 0.0
    %2199 = vmatprep.subr.mxu0 0.0
    %2200 = vmatpush1.msra.mxu0 0.0
    %2201 = vmatprep.subr.mxu0 0.0
    %2202 = vmatpush1.msra.mxu0 0.0
    %2203 = vmatprep.subr.mxu0 0.0
    %2204 = vmatpush1.msra.mxu0 0.0
    %2205 = vmatprep.subr.mxu0 0.0
    %2206 = vmatpush1.msra.mxu0 0.0
    %2207 = vmatprep.subr.mxu0 0.0
    %2208 = vmatpush1.msra.mxu0 0.0
    %2209 = vmatprep.subr.mxu0 0.0
    %2210 = vmatpush1.msra.mxu0 0.0
    %2211 = vmatprep.subr.mxu0 0.0
    %2212 = vmatpush1.msra.mxu0 0.0
    %2213 = vmatprep.subr.mxu0 0.0
    %2214 = vmatpush1.msra.mxu0 0.0
    %2215 = vmatprep.subr.mxu0 0.0
    %2216 = vmatpush1.msra.mxu0 0.0
    %2217 = vmatprep.subr.mxu0 0.0
    %2218 = vmatpush1.msra.mxu0 0.0
    %2219 = vmatprep.subr.mxu0 0.0
    %2220 = vmatpush1.msra.mxu0 0.0
    %2221 = vmatprep.subr.mxu0 0.0
    %2222 = vmatpush1.msra.mxu0 0.0
    %2223 = vmatprep.subr.mxu0 0.0
    %2224 = vmatpush1.msra.mxu0 0.0
    %2225 = vmatprep.subr.mxu0 0.0
    %2226 = vmatpush1.msra.mxu0 0.0
    %2227 = vmatprep.subr.mxu0 0.0
    %2228 = vmatpush1.msra.mxu0 0.0
    %2229 = vmatprep.subr.mxu0 0.0
    %2230 = vmatpush1.msra.mxu0 0.0
    %2231 = vmatprep.subr.mxu0 0.0
    %2232 = vmatpush1.msra.mxu0 0.0
    %2233 = vmatprep.subr.mxu0 0.0
    %2234 = vmatpush1.msra.mxu0 0.0
    %2235 = vmatprep.mubr.f32.mxu0 0.0
    %2236 = vmatmul.mubr.f32.gmra.mrb[0].mxu0 %v2166
    %v2237 = vpop.f32.mrb[0].mxu0
    %v2238 = vadd.f32 0.0, %v2237
    %v2239 = vpop.f32.mrb[0].mxu0
    %2240 = vmatprep.mubr.f32.mxu0 0.0
    %2241 = vmatmul.mubr.f32.gmra.mrb[0].mxu0 %v2169
    %v2242 = vpop.f32.mrb[0].mxu0
    %v2243 = vadd.f32 0.0, %v2242
    %v2244 = vpop.f32.mrb[0].mxu0
    %2245 = vdwg.mxu0
    %v2246 = vmul.f32 %v2164, %v2018
    %v2247 = vmul.f32 %v2164, %v2019
    %v2248 = vsub.f32 %v2238, %v2246
    %v2249 = vsub.f32 %v2243, %v2247
    %v2250 = vmul.f32 %v2248, %v2248
    %v2251 = vmul.f32 %v2249, %v2249
    %v2252 = vsel %vm325, %v2250, 0.0
    %v2253 = vsel %vm325, %v2251, 0.0
    %v2254 = vadd.f32 %v2252, %v2253
    %v2255 = vrot.slane %v2254, 4
    %v2256 = vadd.f32 %v2254, %v2255
    %v2257 = vrot.slane %v2256, 2
    %v2258 = vadd.f32 %v2256, %v2257
    %v2259 = vrot.slane %v2258, 1
    %v2260 = vadd.f32 %v2258, %v2259
    %v2261 = vmax.f32 %v2260, 1e-24
    %v2262 = vrsqrt.pop %v2261
    %v2263 = vmul.f32 %v2248, %v2262
    %v2264 = vmul.f32 %v2249, %v2262
    %2265 = vxpose.xlu0.b32.start [1/16] %v2263, 128
    %2266 = vxpose.xlu0.b32.cont [2/16] %v2264, 128
    %2267 = vxpose.xlu0.b32.cont [3/16] 0.0, 128
    %2268 = vxpose.xlu0.b32.cont [4/16] 0.0, 128
    %2269 = vxpose.xlu0.b32.cont [5/16] 0.0, 128
    %2270 = vxpose.xlu0.b32.cont [6/16] 0.0, 128
    %2271 = vxpose.xlu0.b32.cont [7/16] 0.0, 128
    %2272 = vxpose.xlu0.b32.cont [8/16] 0.0, 128
    %2273 = vxpose.xlu0.b32.cont [9/16] 0.0, 128
    %2274 = vxpose.xlu0.b32.cont [10/16] 0.0, 128
    %2275 = vxpose.xlu0.b32.cont [11/16] 0.0, 128
    %2276 = vxpose.xlu0.b32.cont [12/16] 0.0, 128
    %2277 = vxpose.xlu0.b32.cont [13/16] 0.0, 128
    %2278 = vxpose.xlu0.b32.cont [14/16] 0.0, 128
    %2279 = vxpose.xlu0.b32.cont [15/16] 0.0, 128
    %2280 = vxpose.xlu0.b32.end [16/16] 0.0, 128
    %v2281 = vpop.trf.xlu0
    %v2282 = vpop.trf.xlu0
    %v2283 = vpop.trf.xlu0
    %v2284 = vpop.trf.xlu0
    %v2285 = vpop.trf.xlu0
    %v2286 = vpop.trf.xlu0
    %v2287 = vpop.trf.xlu0
    %v2288 = vpop.trf.xlu0
    %v2289 = vpop.trf.xlu0
    %v2290 = vpop.trf.xlu0
    %v2291 = vpop.trf.xlu0
    %v2292 = vpop.trf.xlu0
    %v2293 = vpop.trf.xlu0
    %v2294 = vpop.trf.xlu0
    %v2295 = vpop.trf.xlu0
    %v2296 = vpop.trf.xlu0
    %v2298 = vsel %vm167, %v2281, 0
    %2300 = vmatprep.subr.mxu0 %v2023
    %2301 = vmatpush1.msra.mxu0 %v2022
    %2302 = vmatprep.subr.mxu0 %v2025
    %2303 = vmatpush1.msra.mxu0 %v2024
    %2304 = vmatprep.subr.mxu0 0.0
    %2305 = vmatpush1.msra.mxu0 0.0
    %2306 = vmatprep.subr.mxu0 0.0
    %2307 = vmatpush1.msra.mxu0 0.0
    %2308 = vmatprep.subr.mxu0 0.0
    %2309 = vmatpush1.msra.mxu0 0.0
    %2310 = vmatprep.subr.mxu0 0.0
    %2311 = vmatpush1.msra.mxu0 0.0
    %2312 = vmatprep.subr.mxu0 0.0
    %2313 = vmatpush1.msra.mxu0 0.0
    %2314 = vmatprep.subr.mxu0 0.0
    %2315 = vmatpush1.msra.mxu0 0.0
    %2316 = vmatprep.subr.mxu0 0.0
    %2317 = vmatpush1.msra.mxu0 0.0
    %2318 = vmatprep.subr.mxu0 0.0
    %2319 = vmatpush1.msra.mxu0 0.0
    %2320 = vmatprep.subr.mxu0 0.0
    %2321 = vmatpush1.msra.mxu0 0.0
    %2322 = vmatprep.subr.mxu0 0.0
    %2323 = vmatpush1.msra.mxu0 0.0
    %2324 = vmatprep.subr.mxu0 0.0
    %2325 = vmatpush1.msra.mxu0 0.0
    %2326 = vmatprep.subr.mxu0 0.0
    %2327 = vmatpush1.msra.mxu0 0.0
    %2328 = vmatprep.subr.mxu0 0.0
    %2329 = vmatpush1.msra.mxu0 0.0
    %2330 = vmatprep.subr.mxu0 0.0
    %2331 = vmatpush1.msra.mxu0 0.0
    %2332 = vmatprep.subr.mxu0 0.0
    %2333 = vmatpush1.msra.mxu0 0.0
    %2334 = vmatprep.subr.mxu0 0.0
    %2335 = vmatpush1.msra.mxu0 0.0
    %2336 = vmatprep.subr.mxu0 0.0
    %2337 = vmatpush1.msra.mxu0 0.0
    %2338 = vmatprep.subr.mxu0 0.0
    %2339 = vmatpush1.msra.mxu0 0.0
    %2340 = vmatprep.subr.mxu0 0.0
    %2341 = vmatpush1.msra.mxu0 0.0
    %2342 = vmatprep.subr.mxu0 0.0
    %2343 = vmatpush1.msra.mxu0 0.0
    %2344 = vmatprep.subr.mxu0 0.0
    %2345 = vmatpush1.msra.mxu0 0.0
    %2346 = vmatprep.subr.mxu0 0.0
    %2347 = vmatpush1.msra.mxu0 0.0
    %2348 = vmatprep.subr.mxu0 0.0
    %2349 = vmatpush1.msra.mxu0 0.0
    %2350 = vmatprep.subr.mxu0 0.0
    %2351 = vmatpush1.msra.mxu0 0.0
    %2352 = vmatprep.subr.mxu0 0.0
    %2353 = vmatpush1.msra.mxu0 0.0
    %2354 = vmatprep.subr.mxu0 0.0
    %2355 = vmatpush1.msra.mxu0 0.0
    %2356 = vmatprep.subr.mxu0 0.0
    %2357 = vmatpush1.msra.mxu0 0.0
    %2358 = vmatprep.subr.mxu0 0.0
    %2359 = vmatpush1.msra.mxu0 0.0
    %2360 = vmatprep.subr.mxu0 0.0
    %2361 = vmatpush1.msra.mxu0 0.0
    %2362 = vmatprep.subr.mxu0 0.0
    %2363 = vmatpush1.msra.mxu0 0.0
    %2364 = vmatprep.mubr.f32.mxu0 0.0
    %2365 = vmatmul.mubr.f32.gmra.mrb[0].mxu0 %v2298
    %v2366 = vpop.f32.mrb[0].mxu0
    %v2367 = vadd.f32 0.0, %v2366
    %v2368 = vpop.f32.mrb[0].mxu0
    %v2369 = vadd.f32 0.0, %v2368
    %2370 = vdwg.mxu0
    %v2371 = vadd.f32 %v1622, %v2367
    %v2373 = vrot.slane %v2367, 1
    %2374 = vrot.lane.b32.xlu0 %v2373, 96
    %v2375 = vpop.permute.xlu0 %2374
    %v2377 = vadd.f32 %v2371, %v2375
    %v2378 = vrot.slane %v2367, 2
    %2379 = vrot.lane.b32.xlu0 %v2378, 64
    %v2380 = vpop.permute.xlu0 %2379
    %v2382 = vadd.f32 %v2377, %v2380
    %v2383 = vrot.slane %v2367, 3
    %2384 = vrot.lane.b32.xlu0 %v2383, 32
    %v2385 = vpop.permute.xlu0 %2384
    %v2387 = vadd.f32 %v2382, %v2385
    %v2389 = vrot.slane %v2369, 4
    %v2391 = vadd.f32 %v2387, %v2389
    %v2392 = vrot.slane %v2369, 5
    %2393 = vrot.lane.b32.xlu0 %v2392, 96
    %v2394 = vpop.permute.xlu0 %2393
    %v2396 = vadd.f32 %v2391, %v2394
    %v2397 = vrot.slane %v2369, 6
    %2398 = vrot.lane.b32.xlu0 %v2397, 64
    %v2399 = vpop.permute.xlu0 %2398
    %v2401 = vadd.f32 %v2396, %v2399
    %v2402 = vrot.slane %v2369, 7
    %2403 = vrot.lane.b32.xlu0 %v2402, 32
    %v2404 = vpop.permute.xlu0 %2403
    %v2406 = vadd.f32 %v2401, %v2404
    %s2407 = scalar_lea.vmem %s5, 16
    %v2408 = vld [vmem:[%s2407] sm:$0xff]
    %v2409 = vld [vmem:[%s2407 + $0x8] sm:$0xff]
    %2410 = vxpose.xlu0.b32.start [1/16] %v2408, 128
    %2411 = vxpose.xlu0.b32.cont [2/16] %v2409, 128
    %2412 = vxpose.xlu0.b32.cont [3/16] 0.0, 128
    %2413 = vxpose.xlu0.b32.cont [4/16] 0.0, 128
    %2414 = vxpose.xlu0.b32.cont [5/16] 0.0, 128
    %2415 = vxpose.xlu0.b32.cont [6/16] 0.0, 128
    %2416 = vxpose.xlu0.b32.cont [7/16] 0.0, 128
    %2417 = vxpose.xlu0.b32.cont [8/16] 0.0, 128
    %2418 = vxpose.xlu0.b32.cont [9/16] 0.0, 128
    %2419 = vxpose.xlu0.b32.cont [10/16] 0.0, 128
    %2420 = vxpose.xlu0.b32.cont [11/16] 0.0, 128
    %2421 = vxpose.xlu0.b32.cont [12/16] 0.0, 128
    %2422 = vxpose.xlu0.b32.cont [13/16] 0.0, 128
    %2423 = vxpose.xlu0.b32.cont [14/16] 0.0, 128
    %2424 = vxpose.xlu0.b32.cont [15/16] 0.0, 128
    %2425 = vxpose.xlu0.b32.end [16/16] 0.0, 128
    %v2426 = vpop.trf.xlu0
    %v2427 = vpop.trf.xlu0
    %v2428 = vpop.trf.xlu0
    %v2429 = vpop.trf.xlu0
    %v2430 = vpop.trf.xlu0
    %v2431 = vpop.trf.xlu0
    %v2432 = vpop.trf.xlu0
    %v2433 = vpop.trf.xlu0
    %v2434 = vpop.trf.xlu0
    %v2435 = vpop.trf.xlu0
    %v2436 = vpop.trf.xlu0
    %v2437 = vpop.trf.xlu0
    %v2438 = vpop.trf.xlu0
    %v2439 = vpop.trf.xlu0
    %v2440 = vpop.trf.xlu0
    %v2441 = vpop.trf.xlu0
    %v2443 = vsel %vm167, %v2426, 0
    %2445 = vmatprep.subr.mxu0 0.0
    %2446 = vmatpush1.msra.mxu0 %v2016
    %2447 = vmatprep.subr.mxu0 0.0
    %2448 = vmatpush1.msra.mxu0 %v2017
    %2449 = vmatprep.subr.mxu0 0.0
    %2450 = vmatpush1.msra.mxu0 0.0
    %2451 = vmatprep.subr.mxu0 0.0
    %2452 = vmatpush1.msra.mxu0 0.0
    %2453 = vmatprep.subr.mxu0 0.0
    %2454 = vmatpush1.msra.mxu0 0.0
    %2455 = vmatprep.subr.mxu0 0.0
    %2456 = vmatpush1.msra.mxu0 0.0
    %2457 = vmatprep.subr.mxu0 0.0
    %2458 = vmatpush1.msra.mxu0 0.0
    %2459 = vmatprep.subr.mxu0 0.0
    %2460 = vmatpush1.msra.mxu0 0.0
    %2461 = vmatprep.subr.mxu0 0.0
    %2462 = vmatpush1.msra.mxu0 0.0
    %2463 = vmatprep.subr.mxu0 0.0
    %2464 = vmatpush1.msra.mxu0 0.0
    %2465 = vmatprep.subr.mxu0 0.0
    %2466 = vmatpush1.msra.mxu0 0.0
    %2467 = vmatprep.subr.mxu0 0.0
    %2468 = vmatpush1.msra.mxu0 0.0
    %2469 = vmatprep.subr.mxu0 0.0
    %2470 = vmatpush1.msra.mxu0 0.0
    %2471 = vmatprep.subr.mxu0 0.0
    %2472 = vmatpush1.msra.mxu0 0.0
    %2473 = vmatprep.subr.mxu0 0.0
    %2474 = vmatpush1.msra.mxu0 0.0
    %2475 = vmatprep.subr.mxu0 0.0
    %2476 = vmatpush1.msra.mxu0 0.0
    %2477 = vmatprep.subr.mxu0 0.0
    %2478 = vmatpush1.msra.mxu0 0.0
    %2479 = vmatprep.subr.mxu0 0.0
    %2480 = vmatpush1.msra.mxu0 0.0
    %2481 = vmatprep.subr.mxu0 0.0
    %2482 = vmatpush1.msra.mxu0 0.0
    %2483 = vmatprep.subr.mxu0 0.0
    %2484 = vmatpush1.msra.mxu0 0.0
    %2485 = vmatprep.subr.mxu0 0.0
    %2486 = vmatpush1.msra.mxu0 0.0
    %2487 = vmatprep.subr.mxu0 0.0
    %2488 = vmatpush1.msra.mxu0 0.0
    %2489 = vmatprep.subr.mxu0 0.0
    %2490 = vmatpush1.msra.mxu0 0.0
    %2491 = vmatprep.subr.mxu0 0.0
    %2492 = vmatpush1.msra.mxu0 0.0
    %2493 = vmatprep.subr.mxu0 0.0
    %2494 = vmatpush1.msra.mxu0 0.0
    %2495 = vmatprep.subr.mxu0 0.0
    %2496 = vmatpush1.msra.mxu0 0.0
    %2497 = vmatprep.subr.mxu0 0.0
    %2498 = vmatpush1.msra.mxu0 0.0
    %2499 = vmatprep.subr.mxu0 0.0
    %2500 = vmatpush1.msra.mxu0 0.0
    %2501 = vmatprep.subr.mxu0 0.0
    %2502 = vmatpush1.msra.mxu0 0.0
    %2503 = vmatprep.subr.mxu0 0.0
    %2504 = vmatpush1.msra.mxu0 0.0
    %2505 = vmatprep.subr.mxu0 0.0
    %2506 = vmatpush1.msra.mxu0 0.0
    %2507 = vmatprep.subr.mxu0 0.0
    %2508 = vmatpush1.msra.mxu0 0.0
    %2509 = vmatprep.mubr.f32.mxu0 0.0
    %2510 = vmatmul.mubr.f32.gmra.mrb[0].mxu0 %v2443
    %v2511 = vpop.f32.mrb[0].mxu0
    %v2512 = vadd.f32 0.0, %v2511
    %v2513 = vpop.f32.mrb[0].mxu0
    %2514 = vdwg.mxu0
    %v2515 = vmul.f32 %v2512, %v2137
    %v2516 = vadd.f32 %v2515, %v2144
    %v2517 = vsel %vm325, %v2516, -inf
    %2518 = vmax.xlane.f32.xlu0 %v2517
    %v2519 = vpop.xlane.xlu0 %2518
    %v2520 = vsub.f32 %v2516, %v2519
    %v2521 = vmul.f32 %v2520, 1.442695
    %v2522 = vpow.pop %v2521
    %v2523 = vsel %vm325, %v2522, 0.0
    %2524 = vadd.xlane.f32.xlu0 %v2523
    %v2525 = vpop.xlane.xlu0 %2524
    %v2526 = vrcp.pop %v2525
    %v2527 = vmul.f32 %v2522, %v2526
    %v2528 = vsel %vm325, %v2527, 0.0
    %v2529 = vrot.slane %v2528, 4
    %v2530 = vadd.f32 %v2528, %v2529
    %v2531 = vrot.slane %v2530, 2
    %v2532 = vadd.f32 %v2530, %v2531
    %v2533 = vrot.slane %v2532, 1
    %v2534 = vadd.f32 %v2532, %v2533
    %v2536 = vsel %vm325, %v2408, 0
    %v2539 = vsel %vm325, %v2409, 0
    %2541 = vmatprep.subr.mxu0 0.0
    %2542 = vmatpush1.msra.mxu0 %v2527
    %2543 = vmatprep.subr.mxu0 0.0
    %2544 = vmatpush1.msra.mxu0 0.0
    %2545 = vmatprep.subr.mxu0 0.0
    %2546 = vmatpush1.msra.mxu0 0.0
    %2547 = vmatprep.subr.mxu0 0.0
    %2548 = vmatpush1.msra.mxu0 0.0
    %2549 = vmatprep.subr.mxu0 0.0
    %2550 = vmatpush1.msra.mxu0 0.0
    %2551 = vmatprep.subr.mxu0 0.0
    %2552 = vmatpush1.msra.mxu0 0.0
    %2553 = vmatprep.subr.mxu0 0.0
    %2554 = vmatpush1.msra.mxu0 0.0
    %2555 = vmatprep.subr.mxu0 0.0
    %2556 = vmatpush1.msra.mxu0 0.0
    %2557 = vmatprep.subr.mxu0 0.0
    %2558 = vmatpush1.msra.mxu0 0.0
    %2559 = vmatprep.subr.mxu0 0.0
    %2560 = vmatpush1.msra.mxu0 0.0
    %2561 = vmatprep.subr.mxu0 0.0
    %2562 = vmatpush1.msra.mxu0 0.0
    %2563 = vmatprep.subr.mxu0 0.0
    %2564 = vmatpush1.msra.mxu0 0.0
    %2565 = vmatprep.subr.mxu0 0.0
    %2566 = vmatpush1.msra.mxu0 0.0
    %2567 = vmatprep.subr.mxu0 0.0
    %2568 = vmatpush1.msra.mxu0 0.0
    %2569 = vmatprep.subr.mxu0 0.0
    %2570 = vmatpush1.msra.mxu0 0.0
    %2571 = vmatprep.subr.mxu0 0.0
    %2572 = vmatpush1.msra.mxu0 0.0
    %2573 = vmatprep.subr.mxu0 0.0
    %2574 = vmatpush1.msra.mxu0 0.0
    %2575 = vmatprep.subr.mxu0 0.0
    %2576 = vmatpush1.msra.mxu0 0.0
    %2577 = vmatprep.subr.mxu0 0.0
    %2578 = vmatpush1.msra.mxu0 0.0
    %2579 = vmatprep.subr.mxu0 0.0
    %2580 = vmatpush1.msra.mxu0 0.0
    %2581 = vmatprep.subr.mxu0 0.0
    %2582 = vmatpush1.msra.mxu0 0.0
    %2583 = vmatprep.subr.mxu0 0.0
    %2584 = vmatpush1.msra.mxu0 0.0
    %2585 = vmatprep.subr.mxu0 0.0
    %2586 = vmatpush1.msra.mxu0 0.0
    %2587 = vmatprep.subr.mxu0 0.0
    %2588 = vmatpush1.msra.mxu0 0.0
    %2589 = vmatprep.subr.mxu0 0.0
    %2590 = vmatpush1.msra.mxu0 0.0
    %2591 = vmatprep.subr.mxu0 0.0
    %2592 = vmatpush1.msra.mxu0 0.0
    %2593 = vmatprep.subr.mxu0 0.0
    %2594 = vmatpush1.msra.mxu0 0.0
    %2595 = vmatprep.subr.mxu0 0.0
    %2596 = vmatpush1.msra.mxu0 0.0
    %2597 = vmatprep.subr.mxu0 0.0
    %2598 = vmatpush1.msra.mxu0 0.0
    %2599 = vmatprep.subr.mxu0 0.0
    %2600 = vmatpush1.msra.mxu0 0.0
    %2601 = vmatprep.subr.mxu0 0.0
    %2602 = vmatpush1.msra.mxu0 0.0
    %2603 = vmatprep.subr.mxu0 0.0
    %2604 = vmatpush1.msra.mxu0 0.0
    %2605 = vmatprep.mubr.f32.mxu0 0.0
    %2606 = vmatmul.mubr.f32.gmra.mrb[0].mxu0 %v2536
    %v2607 = vpop.f32.mrb[0].mxu0
    %v2608 = vadd.f32 0.0, %v2607
    %v2609 = vpop.f32.mrb[0].mxu0
    %2610 = vmatprep.mubr.f32.mxu0 0.0
    %2611 = vmatmul.mubr.f32.gmra.mrb[0].mxu0 %v2539
    %v2612 = vpop.f32.mrb[0].mxu0
    %v2613 = vadd.f32 0.0, %v2612
    %v2614 = vpop.f32.mrb[0].mxu0
    %2615 = vdwg.mxu0
    %v2616 = vmul.f32 %v2534, %v2018
    %v2617 = vmul.f32 %v2534, %v2019
    %v2618 = vsub.f32 %v2608, %v2616
    %v2619 = vsub.f32 %v2613, %v2617
    %v2620 = vmul.f32 %v2618, %v2618
    %v2621 = vmul.f32 %v2619, %v2619
    %v2622 = vsel %vm325, %v2620, 0.0
    %v2623 = vsel %vm325, %v2621, 0.0
    %v2624 = vadd.f32 %v2622, %v2623
    %v2625 = vrot.slane %v2624, 4
    %v2626 = vadd.f32 %v2624, %v2625
    %v2627 = vrot.slane %v2626, 2
    %v2628 = vadd.f32 %v2626, %v2627
    %v2629 = vrot.slane %v2628, 1
    %v2630 = vadd.f32 %v2628, %v2629
    %v2631 = vmax.f32 %v2630, 1e-24
    %v2632 = vrsqrt.pop %v2631
    %v2633 = vmul.f32 %v2618, %v2632
    %v2634 = vmul.f32 %v2619, %v2632
    %2635 = vxpose.xlu0.b32.start [1/16] %v2633, 128
    %2636 = vxpose.xlu0.b32.cont [2/16] %v2634, 128
    %2637 = vxpose.xlu0.b32.cont [3/16] 0.0, 128
    %2638 = vxpose.xlu0.b32.cont [4/16] 0.0, 128
    %2639 = vxpose.xlu0.b32.cont [5/16] 0.0, 128
    %2640 = vxpose.xlu0.b32.cont [6/16] 0.0, 128
    %2641 = vxpose.xlu0.b32.cont [7/16] 0.0, 128
    %2642 = vxpose.xlu0.b32.cont [8/16] 0.0, 128
    %2643 = vxpose.xlu0.b32.cont [9/16] 0.0, 128
    %2644 = vxpose.xlu0.b32.cont [10/16] 0.0, 128
    %2645 = vxpose.xlu0.b32.cont [11/16] 0.0, 128
    %2646 = vxpose.xlu0.b32.cont [12/16] 0.0, 128
    %2647 = vxpose.xlu0.b32.cont [13/16] 0.0, 128
    %2648 = vxpose.xlu0.b32.cont [14/16] 0.0, 128
    %2649 = vxpose.xlu0.b32.cont [15/16] 0.0, 128
    %2650 = vxpose.xlu0.b32.end [16/16] 0.0, 128
    %v2651 = vpop.trf.xlu0
    %v2652 = vpop.trf.xlu0
    %v2653 = vpop.trf.xlu0
    %v2654 = vpop.trf.xlu0
    %v2655 = vpop.trf.xlu0
    %v2656 = vpop.trf.xlu0
    %v2657 = vpop.trf.xlu0
    %v2658 = vpop.trf.xlu0
    %v2659 = vpop.trf.xlu0
    %v2660 = vpop.trf.xlu0
    %v2661 = vpop.trf.xlu0
    %v2662 = vpop.trf.xlu0
    %v2663 = vpop.trf.xlu0
    %v2664 = vpop.trf.xlu0
    %v2665 = vpop.trf.xlu0
    %v2666 = vpop.trf.xlu0
    %v2668 = vsel %vm167, %v2651, 0
    %2670 = vmatprep.subr.mxu0 %v2023
    %2671 = vmatpush1.msra.mxu0 %v2022
    %2672 = vmatprep.subr.mxu0 %v2025
    %2673 = vmatpush1.msra.mxu0 %v2024
    %2674 = vmatprep.subr.mxu0 0.0
    %2675 = vmatpush1.msra.mxu0 0.0
    %2676 = vmatprep.subr.mxu0 0.0
    %2677 = vmatpush1.msra.mxu0 0.0
    %2678 = vmatprep.subr.mxu0 0.0
    %2679 = vmatpush1.msra.mxu0 0.0
    %2680 = vmatprep.subr.mxu0 0.0
    %2681 = vmatpush1.msra.mxu0 0.0
    %2682 = vmatprep.subr.mxu0 0.0
    %2683 = vmatpush1.msra.mxu0 0.0
    %2684 = vmatprep.subr.mxu0 0.0
    %2685 = vmatpush1.msra.mxu0 0.0
    %2686 = vmatprep.subr.mxu0 0.0
    %2687 = vmatpush1.msra.mxu0 0.0
    %2688 = vmatprep.subr.mxu0 0.0
    %2689 = vmatpush1.msra.mxu0 0.0
    %2690 = vmatprep.subr.mxu0 0.0
    %2691 = vmatpush1.msra.mxu0 0.0
    %2692 = vmatprep.subr.mxu0 0.0
    %2693 = vmatpush1.msra.mxu0 0.0
    %2694 = vmatprep.subr.mxu0 0.0
    %2695 = vmatpush1.msra.mxu0 0.0
    %2696 = vmatprep.subr.mxu0 0.0
    %2697 = vmatpush1.msra.mxu0 0.0
    %2698 = vmatprep.subr.mxu0 0.0
    %2699 = vmatpush1.msra.mxu0 0.0
    %2700 = vmatprep.subr.mxu0 0.0
    %2701 = vmatpush1.msra.mxu0 0.0
    %2702 = vmatprep.subr.mxu0 0.0
    %2703 = vmatpush1.msra.mxu0 0.0
    %2704 = vmatprep.subr.mxu0 0.0
    %2705 = vmatpush1.msra.mxu0 0.0
    %2706 = vmatprep.subr.mxu0 0.0
    %2707 = vmatpush1.msra.mxu0 0.0
    %2708 = vmatprep.subr.mxu0 0.0
    %2709 = vmatpush1.msra.mxu0 0.0
    %2710 = vmatprep.subr.mxu0 0.0
    %2711 = vmatpush1.msra.mxu0 0.0
    %2712 = vmatprep.subr.mxu0 0.0
    %2713 = vmatpush1.msra.mxu0 0.0
    %2714 = vmatprep.subr.mxu0 0.0
    %2715 = vmatpush1.msra.mxu0 0.0
    %2716 = vmatprep.subr.mxu0 0.0
    %2717 = vmatpush1.msra.mxu0 0.0
    %2718 = vmatprep.subr.mxu0 0.0
    %2719 = vmatpush1.msra.mxu0 0.0
    %2720 = vmatprep.subr.mxu0 0.0
    %2721 = vmatpush1.msra.mxu0 0.0
    %2722 = vmatprep.subr.mxu0 0.0
    %2723 = vmatpush1.msra.mxu0 0.0
    %2724 = vmatprep.subr.mxu0 0.0
    %2725 = vmatpush1.msra.mxu0 0.0
    %2726 = vmatprep.subr.mxu0 0.0
    %2727 = vmatpush1.msra.mxu0 0.0
    %2728 = vmatprep.subr.mxu0 0.0
    %2729 = vmatpush1.msra.mxu0 0.0
    %2730 = vmatprep.subr.mxu0 0.0
    %2731 = vmatpush1.msra.mxu0 0.0
    %2732 = vmatprep.subr.mxu0 0.0
    %2733 = vmatpush1.msra.mxu0 0.0
    %2734 = vmatprep.mubr.f32.mxu0 0.0
    %2735 = vmatmul.mubr.f32.gmra.mrb[0].mxu0 %v2668
    %v2736 = vpop.f32.mrb[0].mxu0
    %v2737 = vadd.f32 0.0, %v2736
    %v2738 = vpop.f32.mrb[0].mxu0
    %v2739 = vadd.f32 0.0, %v2738
    %2740 = vdwg.mxu0
    %v2741 = vadd.f32 %v2015, %v2737
    %v2743 = vrot.slane %v2737, 1
    %2744 = vrot.lane.b32.xlu0 %v2743, 96
    %v2745 = vpop.permute.xlu0 %2744
    %v2747 = vadd.f32 %v2741, %v2745
    %v2748 = vrot.slane %v2737, 2
    %2749 = vrot.lane.b32.xlu0 %v2748, 64
    %v2750 = vpop.permute.xlu0 %2749
    %v2752 = vadd.f32 %v2747, %v2750
    %v2753 = vrot.slane %v2737, 3
    %2754 = vrot.lane.b32.xlu0 %v2753, 32
    %v2755 = vpop.permute.xlu0 %2754
    %v2757 = vadd.f32 %v2752, %v2755
    %v2759 = vrot.slane %v2739, 4
    %v2761 = vadd.f32 %v2757, %v2759
    %v2762 = vrot.slane %v2739, 5
    %2763 = vrot.lane.b32.xlu0 %v2762, 96
    %v2764 = vpop.permute.xlu0 %2763
    %v2766 = vadd.f32 %v2761, %v2764
    %v2767 = vrot.slane %v2739, 6
    %2768 = vrot.lane.b32.xlu0 %v2767, 64
    %v2769 = vpop.permute.xlu0 %2768
    %v2771 = vadd.f32 %v2766, %v2769
    %v2772 = vrot.slane %v2739, 7
    %2773 = vrot.lane.b32.xlu0 %v2772, 32
    %v2774 = vpop.permute.xlu0 %2773
    %v2776 = vadd.f32 %v2771, %v2774
    %v2777 = vld [vmem:[%s15] sm:$0xff]
    %v2778 = vld [vmem:[%s15 + $0x8] sm:$0xff]
    %v2779 = vld [vmem:[%s23] sm:$0xff]
    %v2780 = vld [vmem:[%s23 + $0x8] sm:$0xff]
    %v2781 = vld [vmem:[%s31] sm:$0x1]
    %v2782 = vld [vmem:[%s39] sm:$0x1]
    %v2783 = vld [vmem:[%s47] sm:$0xff]
    %v2784 = vld [vmem:[%s47 + $0x8] sm:$0xff]
    %v2785 = vld [vmem:[%s47 + $0x10] sm:$0xff]
    %v2786 = vld [vmem:[%s47 + $0x18] sm:$0xff]
    %v2787 = vld [vmem:[%s7] sm:$0xff]
    %v2788 = vld [vmem:[%s7 + $0x8] sm:$0xff]
    %2789 = vxpose.xlu0.b32.start [1/16] %v2787, 128
    %2790 = vxpose.xlu0.b32.cont [2/16] %v2788, 128
    %2791 = vxpose.xlu0.b32.cont [3/16] 0.0, 128
    %2792 = vxpose.xlu0.b32.cont [4/16] 0.0, 128
    %2793 = vxpose.xlu0.b32.cont [5/16] 0.0, 128
    %2794 = vxpose.xlu0.b32.cont [6/16] 0.0, 128
    %2795 = vxpose.xlu0.b32.cont [7/16] 0.0, 128
    %2796 = vxpose.xlu0.b32.cont [8/16] 0.0, 128
    %2797 = vxpose.xlu0.b32.cont [9/16] 0.0, 128
    %2798 = vxpose.xlu0.b32.cont [10/16] 0.0, 128
    %2799 = vxpose.xlu0.b32.cont [11/16] 0.0, 128
    %2800 = vxpose.xlu0.b32.cont [12/16] 0.0, 128
    %2801 = vxpose.xlu0.b32.cont [13/16] 0.0, 128
    %2802 = vxpose.xlu0.b32.cont [14/16] 0.0, 128
    %2803 = vxpose.xlu0.b32.cont [15/16] 0.0, 128
    %2804 = vxpose.xlu0.b32.end [16/16] 0.0, 128
    %v2805 = vpop.trf.xlu0
    %v2806 = vpop.trf.xlu0
    %v2807 = vpop.trf.xlu0
    %v2808 = vpop.trf.xlu0
    %v2809 = vpop.trf.xlu0
    %v2810 = vpop.trf.xlu0
    %v2811 = vpop.trf.xlu0
    %v2812 = vpop.trf.xlu0
    %v2813 = vpop.trf.xlu0
    %v2814 = vpop.trf.xlu0
    %v2815 = vpop.trf.xlu0
    %v2816 = vpop.trf.xlu0
    %v2817 = vpop.trf.xlu0
    %v2818 = vpop.trf.xlu0
    %v2819 = vpop.trf.xlu0
    %v2820 = vpop.trf.xlu0
    %v2822 = vsel %vm167, %v2805, 0
    %2824 = vmatprep.subr.mxu0 0.0
    %2825 = vmatpush1.msra.mxu0 %v2777
    %2826 = vmatprep.subr.mxu0 0.0
    %2827 = vmatpush1.msra.mxu0 %v2778
    %2828 = vmatprep.subr.mxu0 0.0
    %2829 = vmatpush1.msra.mxu0 0.0
    %2830 = vmatprep.subr.mxu0 0.0
    %2831 = vmatpush1.msra.mxu0 0.0
    %2832 = vmatprep.subr.mxu0 0.0
    %2833 = vmatpush1.msra.mxu0 0.0
    %2834 = vmatprep.subr.mxu0 0.0
    %2835 = vmatpush1.msra.mxu0 0.0
    %2836 = vmatprep.subr.mxu0 0.0
    %2837 = vmatpush1.msra.mxu0 0.0
    %2838 = vmatprep.subr.mxu0 0.0
    %2839 = vmatpush1.msra.mxu0 0.0
    %2840 = vmatprep.subr.mxu0 0.0
    %2841 = vmatpush1.msra.mxu0 0.0
    %2842 = vmatprep.subr.mxu0 0.0
    %2843 = vmatpush1.msra.mxu0 0.0
    %2844 = vmatprep.subr.mxu0 0.0
    %2845 = vmatpush1.msra.mxu0 0.0
    %2846 = vmatprep.subr.mxu0 0.0
    %2847 = vmatpush1.msra.mxu0 0.0
    %2848 = vmatprep.subr.mxu0 0.0
    %2849 = vmatpush1.msra.mxu0 0.0
    %2850 = vmatprep.subr.mxu0 0.0
    %2851 = vmatpush1.msra.mxu0 0.0
    %2852 = vmatprep.subr.mxu0 0.0
    %2853 = vmatpush1.msra.mxu0 0.0
    %2854 = vmatprep.subr.mxu0 0.0
    %2855 = vmatpush1.msra.mxu0 0.0
    %2856 = vmatprep.subr.mxu0 0.0
    %2857 = vmatpush1.msra.mxu0 0.0
    %2858 = vmatprep.subr.mxu0 0.0
    %2859 = vmatpush1.msra.mxu0 0.0
    %2860 = vmatprep.subr.mxu0 0.0
    %2861 = vmatpush1.msra.mxu0 0.0
    %2862 = vmatprep.subr.mxu0 0.0
    %2863 = vmatpush1.msra.mxu0 0.0
    %2864 = vmatprep.subr.mxu0 0.0
    %2865 = vmatpush1.msra.mxu0 0.0
    %2866 = vmatprep.subr.mxu0 0.0
    %2867 = vmatpush1.msra.mxu0 0.0
    %2868 = vmatprep.subr.mxu0 0.0
    %2869 = vmatpush1.msra.mxu0 0.0
    %2870 = vmatprep.subr.mxu0 0.0
    %2871 = vmatpush1.msra.mxu0 0.0
    %2872 = vmatprep.subr.mxu0 0.0
    %2873 = vmatpush1.msra.mxu0 0.0
    %2874 = vmatprep.subr.mxu0 0.0
    %2875 = vmatpush1.msra.mxu0 0.0
    %2876 = vmatprep.subr.mxu0 0.0
    %2877 = vmatpush1.msra.mxu0 0.0
    %2878 = vmatprep.subr.mxu0 0.0
    %2879 = vmatpush1.msra.mxu0 0.0
    %2880 = vmatprep.subr.mxu0 0.0
    %2881 = vmatpush1.msra.mxu0 0.0
    %2882 = vmatprep.subr.mxu0 0.0
    %2883 = vmatpush1.msra.mxu0 0.0
    %2884 = vmatprep.subr.mxu0 0.0
    %2885 = vmatpush1.msra.mxu0 0.0
    %2886 = vmatprep.subr.mxu0 0.0
    %2887 = vmatpush1.msra.mxu0 0.0
    %2888 = vmatprep.mubr.f32.mxu0 0.0
    %2889 = vmatmul.mubr.f32.gmra.mrb[0].mxu0 %v2822
    %v2890 = vpop.f32.mrb[0].mxu0
    %v2891 = vadd.f32 0.0, %v2890
    %v2892 = vpop.f32.mrb[0].mxu0
    %2893 = vdwg.mxu0
    %v2895 = vlaneseq
    %v2896 = vshrl.u32 %v2895, 7
    %v2897 = vsub.s32 0, %v2896
    %v2898 = vrot.slane %v2781, %v2897
    %v2900 = vmul.f32 %v2891, %v2898
    %v2902 = vlaneseq
    %v2903 = vshrl.u32 %v2902, 7
    %v2904 = vsub.s32 0, %v2903
    %v2905 = vrot.slane %v2782, %v2904
    %v2907 = vadd.f32 %v2900, %v2905
    %vm2908 = vcmask 60416
    %v2909 = vsel %vm2908, %v2907, -inf
    %2910 = vmax.xlane.f32.xlu0 %v2909
    %v2911 = vpop.xlane.xlu0 %2910
    %v2912 = vsub.f32 %v2907, %v2911
    %v2913 = vmul.f32 %v2912, 1.442695
    %v2914 = vpow.pop %v2913
    %v2915 = vsel %vm2908, %v2914, 0.0
    %2916 = vadd.xlane.f32.xlu0 %v2915
    %v2917 = vpop.xlane.xlu0 %2916
    %v2918 = vrcp.pop %v2917
    %v2919 = vmul.f32 %v2914, %v2918
    %v2920 = vsel %vm2908, %v2919, 0.0
    %v2921 = vrot.slane %v2920, 4
    %v2922 = vadd.f32 %v2920, %v2921
    %v2923 = vrot.slane %v2922, 2
    %v2924 = vadd.f32 %v2922, %v2923
    %v2925 = vrot.slane %v2924, 1
    %v2926 = vadd.f32 %v2924, %v2925
    %vm2927 = vcmask 31744
    %v2929 = vsel %vm2927, %v2787, 0
    %v2932 = vsel %vm2927, %v2788, 0
    %vm2934 = vcmask 1043456
    %v2936 = vsel %vm2934, %v2919, 0
    %2938 = vmatprep.subr.mxu0 0.0
    %2939 = vmatpush1.msra.mxu0 %v2936
    %2940 = vmatprep.subr.mxu0 0.0
    %2941 = vmatpush1.msra.mxu0 0.0
    %2942 = vmatprep.subr.mxu0 0.0
    %2943 = vmatpush1.msra.mxu0 0.0
    %2944 = vmatprep.subr.mxu0 0.0
    %2945 = vmatpush1.msra.mxu0 0.0
    %2946 = vmatprep.subr.mxu0 0.0
    %2947 = vmatpush1.msra.mxu0 0.0
    %2948 = vmatprep.subr.mxu0 0.0
    %2949 = vmatpush1.msra.mxu0 0.0
    %2950 = vmatprep.subr.mxu0 0.0
    %2951 = vmatpush1.msra.mxu0 0.0
    %2952 = vmatprep.subr.mxu0 0.0
    %2953 = vmatpush1.msra.mxu0 0.0
    %2954 = vmatprep.subr.mxu0 0.0
    %2955 = vmatpush1.msra.mxu0 0.0
    %2956 = vmatprep.subr.mxu0 0.0
    %2957 = vmatpush1.msra.mxu0 0.0
    %2958 = vmatprep.subr.mxu0 0.0
    %2959 = vmatpush1.msra.mxu0 0.0
    %2960 = vmatprep.subr.mxu0 0.0
    %2961 = vmatpush1.msra.mxu0 0.0
    %2962 = vmatprep.subr.mxu0 0.0
    %2963 = vmatpush1.msra.mxu0 0.0
    %2964 = vmatprep.subr.mxu0 0.0
    %2965 = vmatpush1.msra.mxu0 0.0
    %2966 = vmatprep.subr.mxu0 0.0
    %2967 = vmatpush1.msra.mxu0 0.0
    %2968 = vmatprep.subr.mxu0 0.0
    %2969 = vmatpush1.msra.mxu0 0.0
    %2970 = vmatprep.subr.mxu0 0.0
    %2971 = vmatpush1.msra.mxu0 0.0
    %2972 = vmatprep.subr.mxu0 0.0
    %2973 = vmatpush1.msra.mxu0 0.0
    %2974 = vmatprep.subr.mxu0 0.0
    %2975 = vmatpush1.msra.mxu0 0.0
    %2976 = vmatprep.subr.mxu0 0.0
    %2977 = vmatpush1.msra.mxu0 0.0
    %2978 = vmatprep.subr.mxu0 0.0
    %2979 = vmatpush1.msra.mxu0 0.0
    %2980 = vmatprep.subr.mxu0 0.0
    %2981 = vmatpush1.msra.mxu0 0.0
    %2982 = vmatprep.subr.mxu0 0.0
    %2983 = vmatpush1.msra.mxu0 0.0
    %2984 = vmatprep.subr.mxu0 0.0
    %2985 = vmatpush1.msra.mxu0 0.0
    %2986 = vmatprep.subr.mxu0 0.0
    %2987 = vmatpush1.msra.mxu0 0.0
    %2988 = vmatprep.subr.mxu0 0.0
    %2989 = vmatpush1.msra.mxu0 0.0
    %2990 = vmatprep.subr.mxu0 0.0
    %2991 = vmatpush1.msra.mxu0 0.0
    %2992 = vmatprep.subr.mxu0 0.0
    %2993 = vmatpush1.msra.mxu0 0.0
    %2994 = vmatprep.subr.mxu0 0.0
    %2995 = vmatpush1.msra.mxu0 0.0
    %2996 = vmatprep.subr.mxu0 0.0
    %2997 = vmatpush1.msra.mxu0 0.0
    %2998 = vmatprep.subr.mxu0 0.0
    %2999 = vmatpush1.msra.mxu0 0.0
    %3000 = vmatprep.subr.mxu0 0.0
    %3001 = vmatpush1.msra.mxu0 0.0
    %3002 = vmatprep.mubr.f32.mxu0 0.0
    %3003 = vmatmul.mubr.f32.gmra.mrb[0].mxu0 %v2929
    %v3004 = vpop.f32.mrb[0].mxu0
    %v3005 = vadd.f32 0.0, %v3004
    %v3006 = vpop.f32.mrb[0].mxu0
    %3007 = vmatprep.mubr.f32.mxu0 0.0
    %3008 = vmatmul.mubr.f32.gmra.mrb[0].mxu0 %v2932
    %v3009 = vpop.f32.mrb[0].mxu0
    %v3010 = vadd.f32 0.0, %v3009
    %v3011 = vpop.f32.mrb[0].mxu0
    %3012 = vdwg.mxu0
    %v3013 = vmul.f32 %v2926, %v2779
    %v3014 = vmul.f32 %v2926, %v2780
    %v3015 = vsub.f32 %v3005, %v3013
    %v3016 = vsub.f32 %v3010, %v3014
    %v3017 = vmul.f32 %v3015, %v3015
    %v3018 = vmul.f32 %v3016, %v3016
    %v3019 = vsel %vm325, %v3017, 0.0
    %v3020 = vsel %vm325, %v3018, 0.0
    %v3021 = vadd.f32 %v3019, %v3020
    %v3022 = vrot.slane %v3021, 4
    %v3023 = vadd.f32 %v3021, %v3022
    %v3024 = vrot.slane %v3023, 2
    %v3025 = vadd.f32 %v3023, %v3024
    %v3026 = vrot.slane %v3025, 1
    %v3027 = vadd.f32 %v3025, %v3026
    %v3028 = vmax.f32 %v3027, 1e-24
    %v3029 = vrsqrt.pop %v3028
    %v3030 = vmul.f32 %v3015, %v3029
    %v3031 = vmul.f32 %v3016, %v3029
    %3032 = vxpose.xlu0.b32.start [1/16] %v3030, 128
    %3033 = vxpose.xlu0.b32.cont [2/16] %v3031, 128
    %3034 = vxpose.xlu0.b32.cont [3/16] 0.0, 128
    %3035 = vxpose.xlu0.b32.cont [4/16] 0.0, 128
    %3036 = vxpose.xlu0.b32.cont [5/16] 0.0, 128
    %3037 = vxpose.xlu0.b32.cont [6/16] 0.0, 128
    %3038 = vxpose.xlu0.b32.cont [7/16] 0.0, 128
    %3039 = vxpose.xlu0.b32.cont [8/16] 0.0, 128
    %3040 = vxpose.xlu0.b32.cont [9/16] 0.0, 128
    %3041 = vxpose.xlu0.b32.cont [10/16] 0.0, 128
    %3042 = vxpose.xlu0.b32.cont [11/16] 0.0, 128
    %3043 = vxpose.xlu0.b32.cont [12/16] 0.0, 128
    %3044 = vxpose.xlu0.b32.cont [13/16] 0.0, 128
    %3045 = vxpose.xlu0.b32.cont [14/16] 0.0, 128
    %3046 = vxpose.xlu0.b32.cont [15/16] 0.0, 128
    %3047 = vxpose.xlu0.b32.end [16/16] 0.0, 128
    %v3048 = vpop.trf.xlu0
    %v3049 = vpop.trf.xlu0
    %v3050 = vpop.trf.xlu0
    %v3051 = vpop.trf.xlu0
    %v3052 = vpop.trf.xlu0
    %v3053 = vpop.trf.xlu0
    %v3054 = vpop.trf.xlu0
    %v3055 = vpop.trf.xlu0
    %v3056 = vpop.trf.xlu0
    %v3057 = vpop.trf.xlu0
    %v3058 = vpop.trf.xlu0
    %v3059 = vpop.trf.xlu0
    %v3060 = vpop.trf.xlu0
    %v3061 = vpop.trf.xlu0
    %v3062 = vpop.trf.xlu0
    %v3063 = vpop.trf.xlu0
    %v3065 = vsel %vm167, %v3048, 0
    %3067 = vmatprep.subr.mxu0 %v2784
    %3068 = vmatpush1.msra.mxu0 %v2783
    %3069 = vmatprep.subr.mxu0 %v2786
    %3070 = vmatpush1.msra.mxu0 %v2785
    %3071 = vmatprep.subr.mxu0 0.0
    %3072 = vmatpush1.msra.mxu0 0.0
    %3073 = vmatprep.subr.mxu0 0.0
    %3074 = vmatpush1.msra.mxu0 0.0
    %3075 = vmatprep.subr.mxu0 0.0
    %3076 = vmatpush1.msra.mxu0 0.0
    %3077 = vmatprep.subr.mxu0 0.0
    %3078 = vmatpush1.msra.mxu0 0.0
    %3079 = vmatprep.subr.mxu0 0.0
    %3080 = vmatpush1.msra.mxu0 0.0
    %3081 = vmatprep.subr.mxu0 0.0
    %3082 = vmatpush1.msra.mxu0 0.0
    %3083 = vmatprep.subr.mxu0 0.0
    %3084 = vmatpush1.msra.mxu0 0.0
    %3085 = vmatprep.subr.mxu0 0.0
    %3086 = vmatpush1.msra.mxu0 0.0
    %3087 = vmatprep.subr.mxu0 0.0
    %3088 = vmatpush1.msra.mxu0 0.0
    %3089 = vmatprep.subr.mxu0 0.0
    %3090 = vmatpush1.msra.mxu0 0.0
    %3091 = vmatprep.subr.mxu0 0.0
    %3092 = vmatpush1.msra.mxu0 0.0
    %3093 = vmatprep.subr.mxu0 0.0
    %3094 = vmatpush1.msra.mxu0 0.0
    %3095 = vmatprep.subr.mxu0 0.0
    %3096 = vmatpush1.msra.mxu0 0.0
    %3097 = vmatprep.subr.mxu0 0.0
    %3098 = vmatpush1.msra.mxu0 0.0
    %3099 = vmatprep.subr.mxu0 0.0
    %3100 = vmatpush1.msra.mxu0 0.0
    %3101 = vmatprep.subr.mxu0 0.0
    %3102 = vmatpush1.msra.mxu0 0.0
    %3103 = vmatprep.subr.mxu0 0.0
    %3104 = vmatpush1.msra.mxu0 0.0
    %3105 = vmatprep.subr.mxu0 0.0
    %3106 = vmatpush1.msra.mxu0 0.0
    %3107 = vmatprep.subr.mxu0 0.0
    %3108 = vmatpush1.msra.mxu0 0.0
    %3109 = vmatprep.subr.mxu0 0.0
    %3110 = vmatpush1.msra.mxu0 0.0
    %3111 = vmatprep.subr.mxu0 0.0
    %3112 = vmatpush1.msra.mxu0 0.0
    %3113 = vmatprep.subr.mxu0 0.0
    %3114 = vmatpush1.msra.mxu0 0.0
    %3115 = vmatprep.subr.mxu0 0.0
    %3116 = vmatpush1.msra.mxu0 0.0
    %3117 = vmatprep.subr.mxu0 0.0
    %3118 = vmatpush1.msra.mxu0 0.0
    %3119 = vmatprep.subr.mxu0 0.0
    %3120 = vmatpush1.msra.mxu0 0.0
    %3121 = vmatprep.subr.mxu0 0.0
    %3122 = vmatpush1.msra.mxu0 0.0
    %3123 = vmatprep.subr.mxu0 0.0
    %3124 = vmatpush1.msra.mxu0 0.0
    %3125 = vmatprep.subr.mxu0 0.0
    %3126 = vmatpush1.msra.mxu0 0.0
    %3127 = vmatprep.subr.mxu0 0.0
    %3128 = vmatpush1.msra.mxu0 0.0
    %3129 = vmatprep.subr.mxu0 0.0
    %3130 = vmatpush1.msra.mxu0 0.0
    %3131 = vmatprep.mubr.f32.mxu0 0.0
    %3132 = vmatmul.mubr.f32.gmra.mrb[0].mxu0 %v3065
    %v3133 = vpop.f32.mrb[0].mxu0
    %v3134 = vadd.f32 0.0, %v3133
    %v3135 = vpop.f32.mrb[0].mxu0
    %v3136 = vadd.f32 0.0, %v3135
    %3137 = vdwg.mxu0
    %v3138 = vadd.f32 %v2406, %v3134
    %v3140 = vrot.slane %v3134, 1
    %3141 = vrot.lane.b32.xlu0 %v3140, 96
    %v3142 = vpop.permute.xlu0 %3141
    %v3144 = vadd.f32 %v3138, %v3142
    %v3145 = vrot.slane %v3134, 2
    %3146 = vrot.lane.b32.xlu0 %v3145, 64
    %v3147 = vpop.permute.xlu0 %3146
    %v3149 = vadd.f32 %v3144, %v3147
    %v3150 = vrot.slane %v3134, 3
    %3151 = vrot.lane.b32.xlu0 %v3150, 32
    %v3152 = vpop.permute.xlu0 %3151
    %v3154 = vadd.f32 %v3149, %v3152
    %v3156 = vrot.slane %v3136, 4
    %v3158 = vadd.f32 %v3154, %v3156
    %v3159 = vrot.slane %v3136, 5
    %3160 = vrot.lane.b32.xlu0 %v3159, 96
    %v3161 = vpop.permute.xlu0 %3160
    %v3163 = vadd.f32 %v3158, %v3161
    %v3164 = vrot.slane %v3136, 6
    %3165 = vrot.lane.b32.xlu0 %v3164, 64
    %v3166 = vpop.permute.xlu0 %3165
    %v3168 = vadd.f32 %v3163, %v3166
    %v3169 = vrot.slane %v3136, 7
    %3170 = vrot.lane.b32.xlu0 %v3169, 32
    %v3171 = vpop.permute.xlu0 %3170
    %v3173 = vadd.f32 %v3168, %v3171
    %s3174 = scalar_lea.vmem %s7, 16
    %v3175 = vld [vmem:[%s3174] sm:$0xff]
    %v3176 = vld [vmem:[%s3174 + $0x8] sm:$0xff]
    %3177 = vxpose.xlu0.b32.start [1/16] %v3175, 128
    %3178 = vxpose.xlu0.b32.cont [2/16] %v3176, 128
    %3179 = vxpose.xlu0.b32.cont [3/16] 0.0, 128
    %3180 = vxpose.xlu0.b32.cont [4/16] 0.0, 128
    %3181 = vxpose.xlu0.b32.cont [5/16] 0.0, 128
    %3182 = vxpose.xlu0.b32.cont [6/16] 0.0, 128
    %3183 = vxpose.xlu0.b32.cont [7/16] 0.0, 128
    %3184 = vxpose.xlu0.b32.cont [8/16] 0.0, 128
    %3185 = vxpose.xlu0.b32.cont [9/16] 0.0, 128
    %3186 = vxpose.xlu0.b32.cont [10/16] 0.0, 128
    %3187 = vxpose.xlu0.b32.cont [11/16] 0.0, 128
    %3188 = vxpose.xlu0.b32.cont [12/16] 0.0, 128
    %3189 = vxpose.xlu0.b32.cont [13/16] 0.0, 128
    %3190 = vxpose.xlu0.b32.cont [14/16] 0.0, 128
    %3191 = vxpose.xlu0.b32.cont [15/16] 0.0, 128
    %3192 = vxpose.xlu0.b32.end [16/16] 0.0, 128
    %v3193 = vpop.trf.xlu0
    %v3194 = vpop.trf.xlu0
    %v3195 = vpop.trf.xlu0
    %v3196 = vpop.trf.xlu0
    %v3197 = vpop.trf.xlu0
    %v3198 = vpop.trf.xlu0
    %v3199 = vpop.trf.xlu0
    %v3200 = vpop.trf.xlu0
    %v3201 = vpop.trf.xlu0
    %v3202 = vpop.trf.xlu0
    %v3203 = vpop.trf.xlu0
    %v3204 = vpop.trf.xlu0
    %v3205 = vpop.trf.xlu0
    %v3206 = vpop.trf.xlu0
    %v3207 = vpop.trf.xlu0
    %v3208 = vpop.trf.xlu0
    %v3210 = vsel %vm167, %v3193, 0
    %3212 = vmatprep.subr.mxu0 0.0
    %3213 = vmatpush1.msra.mxu0 %v2777
    %3214 = vmatprep.subr.mxu0 0.0
    %3215 = vmatpush1.msra.mxu0 %v2778
    %3216 = vmatprep.subr.mxu0 0.0
    %3217 = vmatpush1.msra.mxu0 0.0
    %3218 = vmatprep.subr.mxu0 0.0
    %3219 = vmatpush1.msra.mxu0 0.0
    %3220 = vmatprep.subr.mxu0 0.0
    %3221 = vmatpush1.msra.mxu0 0.0
    %3222 = vmatprep.subr.mxu0 0.0
    %3223 = vmatpush1.msra.mxu0 0.0
    %3224 = vmatprep.subr.mxu0 0.0
    %3225 = vmatpush1.msra.mxu0 0.0
    %3226 = vmatprep.subr.mxu0 0.0
    %3227 = vmatpush1.msra.mxu0 0.0
    %3228 = vmatprep.subr.mxu0 0.0
    %3229 = vmatpush1.msra.mxu0 0.0
    %3230 = vmatprep.subr.mxu0 0.0
    %3231 = vmatpush1.msra.mxu0 0.0
    %3232 = vmatprep.subr.mxu0 0.0
    %3233 = vmatpush1.msra.mxu0 0.0
    %3234 = vmatprep.subr.mxu0 0.0
    %3235 = vmatpush1.msra.mxu0 0.0
    %3236 = vmatprep.subr.mxu0 0.0
    %3237 = vmatpush1.msra.mxu0 0.0
    %3238 = vmatprep.subr.mxu0 0.0
    %3239 = vmatpush1.msra.mxu0 0.0
    %3240 = vmatprep.subr.mxu0 0.0
    %3241 = vmatpush1.msra.mxu0 0.0
    %3242 = vmatprep.subr.mxu0 0.0
    %3243 = vmatpush1.msra.mxu0 0.0
    %3244 = vmatprep.subr.mxu0 0.0
    %3245 = vmatpush1.msra.mxu0 0.0
    %3246 = vmatprep.subr.mxu0 0.0
    %3247 = vmatpush1.msra.mxu0 0.0
    %3248 = vmatprep.subr.mxu0 0.0
    %3249 = vmatpush1.msra.mxu0 0.0
    %3250 = vmatprep.subr.mxu0 0.0
    %3251 = vmatpush1.msra.mxu0 0.0
    %3252 = vmatprep.subr.mxu0 0.0
    %3253 = vmatpush1.msra.mxu0 0.0
    %3254 = vmatprep.subr.mxu0 0.0
    %3255 = vmatpush1.msra.mxu0 0.0
    %3256 = vmatprep.subr.mxu0 0.0
    %3257 = vmatpush1.msra.mxu0 0.0
    %3258 = vmatprep.subr.mxu0 0.0
    %3259 = vmatpush1.msra.mxu0 0.0
    %3260 = vmatprep.subr.mxu0 0.0
    %3261 = vmatpush1.msra.mxu0 0.0
    %3262 = vmatprep.subr.mxu0 0.0
    %3263 = vmatpush1.msra.mxu0 0.0
    %3264 = vmatprep.subr.mxu0 0.0
    %3265 = vmatpush1.msra.mxu0 0.0
    %3266 = vmatprep.subr.mxu0 0.0
    %3267 = vmatpush1.msra.mxu0 0.0
    %3268 = vmatprep.subr.mxu0 0.0
    %3269 = vmatpush1.msra.mxu0 0.0
    %3270 = vmatprep.subr.mxu0 0.0
    %3271 = vmatpush1.msra.mxu0 0.0
    %3272 = vmatprep.subr.mxu0 0.0
    %3273 = vmatpush1.msra.mxu0 0.0
    %3274 = vmatprep.subr.mxu0 0.0
    %3275 = vmatpush1.msra.mxu0 0.0
    %3276 = vmatprep.mubr.f32.mxu0 0.0
    %3277 = vmatmul.mubr.f32.gmra.mrb[0].mxu0 %v3210
    %v3278 = vpop.f32.mrb[0].mxu0
    %v3279 = vadd.f32 0.0, %v3278
    %v3280 = vpop.f32.mrb[0].mxu0
    %3281 = vdwg.mxu0
    %v3282 = vmul.f32 %v3279, %v2898
    %v3283 = vadd.f32 %v3282, %v2905
    %v3284 = vsel %vm2908, %v3283, -inf
    %3285 = vmax.xlane.f32.xlu0 %v3284
    %v3286 = vpop.xlane.xlu0 %3285
    %v3287 = vsub.f32 %v3283, %v3286
    %v3288 = vmul.f32 %v3287, 1.442695
    %v3289 = vpow.pop %v3288
    %v3290 = vsel %vm2908, %v3289, 0.0
    %3291 = vadd.xlane.f32.xlu0 %v3290
    %v3292 = vpop.xlane.xlu0 %3291
    %v3293 = vrcp.pop %v3292
    %v3294 = vmul.f32 %v3289, %v3293
    %v3295 = vsel %vm2908, %v3294, 0.0
    %v3296 = vrot.slane %v3295, 4
    %v3297 = vadd.f32 %v3295, %v3296
    %v3298 = vrot.slane %v3297, 2
    %v3299 = vadd.f32 %v3297, %v3298
    %v3300 = vrot.slane %v3299, 1
    %v3301 = vadd.f32 %v3299, %v3300
    %v3303 = vsel %vm2927, %v3175, 0
    %v3306 = vsel %vm2927, %v3176, 0
    %v3309 = vsel %vm2934, %v3294, 0
    %3311 = vmatprep.subr.mxu0 0.0
    %3312 = vmatpush1.msra.mxu0 %v3309
    %3313 = vmatprep.subr.mxu0 0.0
    %3314 = vmatpush1.msra.mxu0 0.0
    %3315 = vmatprep.subr.mxu0 0.0
    %3316 = vmatpush1.msra.mxu0 0.0
    %3317 = vmatprep.subr.mxu0 0.0
    %3318 = vmatpush1.msra.mxu0 0.0
    %3319 = vmatprep.subr.mxu0 0.0
    %3320 = vmatpush1.msra.mxu0 0.0
    %3321 = vmatprep.subr.mxu0 0.0
    %3322 = vmatpush1.msra.mxu0 0.0
    %3323 = vmatprep.subr.mxu0 0.0
    %3324 = vmatpush1.msra.mxu0 0.0
    %3325 = vmatprep.subr.mxu0 0.0
    %3326 = vmatpush1.msra.mxu0 0.0
    %3327 = vmatprep.subr.mxu0 0.0
    %3328 = vmatpush1.msra.mxu0 0.0
    %3329 = vmatprep.subr.mxu0 0.0
    %3330 = vmatpush1.msra.mxu0 0.0
    %3331 = vmatprep.subr.mxu0 0.0
    %3332 = vmatpush1.msra.mxu0 0.0
    %3333 = vmatprep.subr.mxu0 0.0
    %3334 = vmatpush1.msra.mxu0 0.0
    %3335 = vmatprep.subr.mxu0 0.0
    %3336 = vmatpush1.msra.mxu0 0.0
    %3337 = vmatprep.subr.mxu0 0.0
    %3338 = vmatpush1.msra.mxu0 0.0
    %3339 = vmatprep.subr.mxu0 0.0
    %3340 = vmatpush1.msra.mxu0 0.0
    %3341 = vmatprep.subr.mxu0 0.0
    %3342 = vmatpush1.msra.mxu0 0.0
    %3343 = vmatprep.subr.mxu0 0.0
    %3344 = vmatpush1.msra.mxu0 0.0
    %3345 = vmatprep.subr.mxu0 0.0
    %3346 = vmatpush1.msra.mxu0 0.0
    %3347 = vmatprep.subr.mxu0 0.0
    %3348 = vmatpush1.msra.mxu0 0.0
    %3349 = vmatprep.subr.mxu0 0.0
    %3350 = vmatpush1.msra.mxu0 0.0
    %3351 = vmatprep.subr.mxu0 0.0
    %3352 = vmatpush1.msra.mxu0 0.0
    %3353 = vmatprep.subr.mxu0 0.0
    %3354 = vmatpush1.msra.mxu0 0.0
    %3355 = vmatprep.subr.mxu0 0.0
    %3356 = vmatpush1.msra.mxu0 0.0
    %3357 = vmatprep.subr.mxu0 0.0
    %3358 = vmatpush1.msra.mxu0 0.0
    %3359 = vmatprep.subr.mxu0 0.0
    %3360 = vmatpush1.msra.mxu0 0.0
    %3361 = vmatprep.subr.mxu0 0.0
    %3362 = vmatpush1.msra.mxu0 0.0
    %3363 = vmatprep.subr.mxu0 0.0
    %3364 = vmatpush1.msra.mxu0 0.0
    %3365 = vmatprep.subr.mxu0 0.0
    %3366 = vmatpush1.msra.mxu0 0.0
    %3367 = vmatprep.subr.mxu0 0.0
    %3368 = vmatpush1.msra.mxu0 0.0
    %3369 = vmatprep.subr.mxu0 0.0
    %3370 = vmatpush1.msra.mxu0 0.0
    %3371 = vmatprep.subr.mxu0 0.0
    %3372 = vmatpush1.msra.mxu0 0.0
    %3373 = vmatprep.subr.mxu0 0.0
    %3374 = vmatpush1.msra.mxu0 0.0
    %3375 = vmatprep.mubr.f32.mxu0 0.0
    %3376 = vmatmul.mubr.f32.gmra.mrb[0].mxu0 %v3303
    %v3377 = vpop.f32.mrb[0].mxu0
    %v3378 = vadd.f32 0.0, %v3377
    %v3379 = vpop.f32.mrb[0].mxu0
    %3380 = vmatprep.mubr.f32.mxu0 0.0
    %3381 = vmatmul.mubr.f32.gmra.mrb[0].mxu0 %v3306
    %v3382 = vpop.f32.mrb[0].mxu0
    %v3383 = vadd.f32 0.0, %v3382
    %v3384 = vpop.f32.mrb[0].mxu0
    %3385 = vdwg.mxu0
    %v3386 = vmul.f32 %v3301, %v2779
    %v3387 = vmul.f32 %v3301, %v2780
    %v3388 = vsub.f32 %v3378, %v3386
    %v3389 = vsub.f32 %v3383, %v3387
    %v3390 = vmul.f32 %v3388, %v3388
    %v3391 = vmul.f32 %v3389, %v3389
    %v3392 = vsel %vm325, %v3390, 0.0
    %v3393 = vsel %vm325, %v3391, 0.0
    %v3394 = vadd.f32 %v3392, %v3393
    %v3395 = vrot.slane %v3394, 4
    %v3396 = vadd.f32 %v3394, %v3395
    %v3397 = vrot.slane %v3396, 2
    %v3398 = vadd.f32 %v3396, %v3397
    %v3399 = vrot.slane %v3398, 1
    %v3400 = vadd.f32 %v3398, %v3399
    %v3401 = vmax.f32 %v3400, 1e-24
    %v3402 = vrsqrt.pop %v3401
    %v3403 = vmul.f32 %v3388, %v3402
    %v3404 = vmul.f32 %v3389, %v3402
    %3405 = vxpose.xlu0.b32.start [1/16] %v3403, 128
    %3406 = vxpose.xlu0.b32.cont [2/16] %v3404, 128
    %3407 = vxpose.xlu0.b32.cont [3/16] 0.0, 128
    %3408 = vxpose.xlu0.b32.cont [4/16] 0.0, 128
    %3409 = vxpose.xlu0.b32.cont [5/16] 0.0, 128
    %3410 = vxpose.xlu0.b32.cont [6/16] 0.0, 128
    %3411 = vxpose.xlu0.b32.cont [7/16] 0.0, 128
    %3412 = vxpose.xlu0.b32.cont [8/16] 0.0, 128
    %3413 = vxpose.xlu0.b32.cont [9/16] 0.0, 128
    %3414 = vxpose.xlu0.b32.cont [10/16] 0.0, 128
    %3415 = vxpose.xlu0.b32.cont [11/16] 0.0, 128
    %3416 = vxpose.xlu0.b32.cont [12/16] 0.0, 128
    %3417 = vxpose.xlu0.b32.cont [13/16] 0.0, 128
    %3418 = vxpose.xlu0.b32.cont [14/16] 0.0, 128
    %3419 = vxpose.xlu0.b32.cont [15/16] 0.0, 128
    %3420 = vxpose.xlu0.b32.end [16/16] 0.0, 128
    %v3421 = vpop.trf.xlu0
    %v3422 = vpop.trf.xlu0
    %v3423 = vpop.trf.xlu0
    %v3424 = vpop.trf.xlu0
    %v3425 = vpop.trf.xlu0
    %v3426 = vpop.trf.xlu0
    %v3427 = vpop.trf.xlu0
    %v3428 = vpop.trf.xlu0
    %v3429 = vpop.trf.xlu0
    %v3430 = vpop.trf.xlu0
    %v3431 = vpop.trf.xlu0
    %v3432 = vpop.trf.xlu0
    %v3433 = vpop.trf.xlu0
    %v3434 = vpop.trf.xlu0
    %v3435 = vpop.trf.xlu0
    %v3436 = vpop.trf.xlu0
    %v3438 = vsel %vm167, %v3421, 0
    %3440 = vmatprep.subr.mxu0 %v2784
    %3441 = vmatpush1.msra.mxu0 %v2783
    %3442 = vmatprep.subr.mxu0 %v2786
    %3443 = vmatpush1.msra.mxu0 %v2785
    %3444 = vmatprep.subr.mxu0 0.0
    %3445 = vmatpush1.msra.mxu0 0.0
    %3446 = vmatprep.subr.mxu0 0.0
    %3447 = vmatpush1.msra.mxu0 0.0
    %3448 = vmatprep.subr.mxu0 0.0
    %3449 = vmatpush1.msra.mxu0 0.0
    %3450 = vmatprep.subr.mxu0 0.0
    %3451 = vmatpush1.msra.mxu0 0.0
    %3452 = vmatprep.subr.mxu0 0.0
    %3453 = vmatpush1.msra.mxu0 0.0
    %3454 = vmatprep.subr.mxu0 0.0
    %3455 = vmatpush1.msra.mxu0 0.0
    %3456 = vmatprep.subr.mxu0 0.0
    %3457 = vmatpush1.msra.mxu0 0.0
    %3458 = vmatprep.subr.mxu0 0.0
    %3459 = vmatpush1.msra.mxu0 0.0
    %3460 = vmatprep.subr.mxu0 0.0
    %3461 = vmatpush1.msra.mxu0 0.0
    %3462 = vmatprep.subr.mxu0 0.0
    %3463 = vmatpush1.msra.mxu0 0.0
    %3464 = vmatprep.subr.mxu0 0.0
    %3465 = vmatpush1.msra.mxu0 0.0
    %3466 = vmatprep.subr.mxu0 0.0
    %3467 = vmatpush1.msra.mxu0 0.0
    %3468 = vmatprep.subr.mxu0 0.0
    %3469 = vmatpush1.msra.mxu0 0.0
    %3470 = vmatprep.subr.mxu0 0.0
    %3471 = vmatpush1.msra.mxu0 0.0
    %3472 = vmatprep.subr.mxu0 0.0
    %3473 = vmatpush1.msra.mxu0 0.0
    %3474 = vmatprep.subr.mxu0 0.0
    %3475 = vmatpush1.msra.mxu0 0.0
    %3476 = vmatprep.subr.mxu0 0.0
    %3477 = vmatpush1.msra.mxu0 0.0
    %3478 = vmatprep.subr.mxu0 0.0
    %3479 = vmatpush1.msra.mxu0 0.0
    %3480 = vmatprep.subr.mxu0 0.0
    %3481 = vmatpush1.msra.mxu0 0.0
    %3482 = vmatprep.subr.mxu0 0.0
    %3483 = vmatpush1.msra.mxu0 0.0
    %3484 = vmatprep.subr.mxu0 0.0
    %3485 = vmatpush1.msra.mxu0 0.0
    %3486 = vmatprep.subr.mxu0 0.0
    %3487 = vmatpush1.msra.mxu0 0.0
    %3488 = vmatprep.subr.mxu0 0.0
    %3489 = vmatpush1.msra.mxu0 0.0
    %3490 = vmatprep.subr.mxu0 0.0
    %3491 = vmatpush1.msra.mxu0 0.0
    %3492 = vmatprep.subr.mxu0 0.0
    %3493 = vmatpush1.msra.mxu0 0.0
    %3494 = vmatprep.subr.mxu0 0.0
    %3495 = vmatpush1.msra.mxu0 0.0
    %3496 = vmatprep.subr.mxu0 0.0
    %3497 = vmatpush1.msra.mxu0 0.0
    %3498 = vmatprep.subr.mxu0 0.0
    %3499 = vmatpush1.msra.mxu0 0.0
    %3500 = vmatprep.subr.mxu0 0.0
    %3501 = vmatpush1.msra.mxu0 0.0
    %3502 = vmatprep.subr.mxu0 0.0
    %3503 = vmatpush1.msra.mxu0 0.0
    %3504 = vmatprep.mubr.f32.mxu0 0.0
    %3505 = vmatmul.mubr.f32.gmra.mrb[0].mxu0 %v3438
    %v3506 = vpop.f32.mrb[0].mxu0
    %v3507 = vadd.f32 0.0, %v3506
    %v3508 = vpop.f32.mrb[0].mxu0
    %v3509 = vadd.f32 0.0, %v3508
    %3510 = vdwg.mxu0
    %v3511 = vadd.f32 %v2776, %v3507
    %v3513 = vrot.slane %v3507, 1
    %3514 = vrot.lane.b32.xlu0 %v3513, 96
    %v3515 = vpop.permute.xlu0 %3514
    %v3517 = vadd.f32 %v3511, %v3515
    %v3518 = vrot.slane %v3507, 2
    %3519 = vrot.lane.b32.xlu0 %v3518, 64
    %v3520 = vpop.permute.xlu0 %3519
    %v3522 = vadd.f32 %v3517, %v3520
    %v3523 = vrot.slane %v3507, 3
    %3524 = vrot.lane.b32.xlu0 %v3523, 32
    %v3525 = vpop.permute.xlu0 %3524
    %v3527 = vadd.f32 %v3522, %v3525
    %v3529 = vrot.slane %v3509, 4
    %v3531 = vadd.f32 %v3527, %v3529
    %v3532 = vrot.slane %v3509, 5
    %3533 = vrot.lane.b32.xlu0 %v3532, 96
    %v3534 = vpop.permute.xlu0 %3533
    %v3536 = vadd.f32 %v3531, %v3534
    %v3537 = vrot.slane %v3509, 6
    %3538 = vrot.lane.b32.xlu0 %v3537, 64
    %v3539 = vpop.permute.xlu0 %3538
    %v3541 = vadd.f32 %v3536, %v3539
    %v3542 = vrot.slane %v3509, 7
    %3543 = vrot.lane.b32.xlu0 %v3542, 32
    %v3544 = vpop.permute.xlu0 %3543
    %v3546 = vadd.f32 %v3541, %v3544
    %v3548 = vrot.slane %v3546, 7
    %vm3550 = vcmask 1040384
    %v3551 = vsel %vm3550, %v3173, %v3548
    %v3552 = vld [vmem:[%s49] sm:$0x1]
    %v3554 = vlaneseq
    %v3555 = vshrl.u32 %v3554, 7
    %v3556 = vsub.s32 0, %v3555
    %v3557 = vrot.slane %v3552, %v3556
    %v3559 = vmul.f32 %v3551, %v3557
    %v3560 = vld [vmem:[%s51] sm:$0x1]
    %v3562 = vlaneseq
    %v3563 = vshrl.u32 %v3562, 7
    %v3564 = vsub.s32 0, %v3563
    %v3565 = vrot.slane %v3560, %v3564
    %v3567 = vadd.f32 %v3559, %v3565
    %v3568 = vld [vmem:[%s53] sm:$0xff]
    %v3569 = vld [vmem:[%s53 + $0x8] sm:$0xff]
    %v3570 = vld [vmem:[%s53 + $0x10] sm:$0xff]
    %v3571 = vld [vmem:[%s53 + $0x18] sm:$0xff]
    %vm3572 = vcmask 261120
    %v3574 = vsel %vm3572, %v3567, 0
    %3576 = vmatprep.subr.mxu0 0.0
    %3577 = vmatpush1.msra.mxu0 %v3568
    %3578 = vmatprep.subr.mxu0 0.0
    %3579 = vmatpush1.msra.mxu0 %v3569
    %3580 = vmatprep.subr.mxu0 0.0
    %3581 = vmatpush1.msra.mxu0 %v3570
    %3582 = vmatprep.subr.mxu0 0.0
    %3583 = vmatpush1.msra.mxu0 %v3571
    %3584 = vmatprep.subr.mxu0 0.0
    %3585 = vmatpush1.msra.mxu0 0.0
    %3586 = vmatprep.subr.mxu0 0.0
    %3587 = vmatpush1.msra.mxu0 0.0
    %3588 = vmatprep.subr.mxu0 0.0
    %3589 = vmatpush1.msra.mxu0 0.0
    %3590 = vmatprep.subr.mxu0 0.0
    %3591 = vmatpush1.msra.mxu0 0.0
    %3592 = vmatprep.subr.mxu0 0.0
    %3593 = vmatpush1.msra.mxu0 0.0
    %3594 = vmatprep.subr.mxu0 0.0
    %3595 = vmatpush1.msra.mxu0 0.0
    %3596 = vmatprep.subr.mxu0 0.0
    %3597 = vmatpush1.msra.mxu0 0.0
    %3598 = vmatprep.subr.mxu0 0.0
    %3599 = vmatpush1.msra.mxu0 0.0
    %3600 = vmatprep.subr.mxu0 0.0
    %3601 = vmatpush1.msra.mxu0 0.0
    %3602 = vmatprep.subr.mxu0 0.0
    %3603 = vmatpush1.msra.mxu0 0.0
    %3604 = vmatprep.subr.mxu0 0.0
    %3605 = vmatpush1.msra.mxu0 0.0
    %3606 = vmatprep.subr.mxu0 0.0
    %3607 = vmatpush1.msra.mxu0 0.0
    %3608 = vmatprep.subr.mxu0 0.0
    %3609 = vmatpush1.msra.mxu0 0.0
    %3610 = vmatprep.subr.mxu0 0.0
    %3611 = vmatpush1.msra.mxu0 0.0
    %3612 = vmatprep.subr.mxu0 0.0
    %3613 = vmatpush1.msra.mxu0 0.0
    %3614 = vmatprep.subr.mxu0 0.0
    %3615 = vmatpush1.msra.mxu0 0.0
    %3616 = vmatprep.subr.mxu0 0.0
    %3617 = vmatpush1.msra.mxu0 0.0
    %3618 = vmatprep.subr.mxu0 0.0
    %3619 = vmatpush1.msra.mxu0 0.0
    %3620 = vmatprep.subr.mxu0 0.0
    %3621 = vmatpush1.msra.mxu0 0.0
    %3622 = vmatprep.subr.mxu0 0.0
    %3623 = vmatpush1.msra.mxu0 0.0
    %3624 = vmatprep.subr.mxu0 0.0
    %3625 = vmatpush1.msra.mxu0 0.0
    %3626 = vmatprep.subr.mxu0 0.0
    %3627 = vmatpush1.msra.mxu0 0.0
    %3628 = vmatprep.subr.mxu0 0.0
    %3629 = vmatpush1.msra.mxu0 0.0
    %3630 = vmatprep.subr.mxu0 0.0
    %3631 = vmatpush1.msra.mxu0 0.0
    %3632 = vmatprep.subr.mxu0 0.0
    %3633 = vmatpush1.msra.mxu0 0.0
    %3634 = vmatprep.subr.mxu0 0.0
    %3635 = vmatpush1.msra.mxu0 0.0
    %3636 = vmatprep.subr.mxu0 0.0
    %3637 = vmatpush1.msra.mxu0 0.0
    %3638 = vmatprep.subr.mxu0 0.0
    %3639 = vmatpush1.msra.mxu0 0.0
    %3640 = vmatprep.mubr.f32.mxu0 0.0
    %3641 = vmatmul.mubr.f32.gmra.mrb[0].mxu0 %v3574
    %v3642 = vpop.f32.mrb[0].mxu0
    %v3643 = vadd.f32 0.0, %v3642
    %v3644 = vpop.f32.mrb[0].mxu0
    %3645 = vdwg.mxu0
    %v3646 = vld [vmem:[%s55] sm:$0x1]
    %v3648 = vlaneseq
    %v3649 = vshrl.u32 %v3648, 7
    %v3650 = vsub.s32 0, %v3649
    %v3651 = vrot.slane %v3646, %v3650
    %v3653 = vmul.f32 %v3643, %v3651
    %v3654 = vld [vmem:[%s57] sm:$0x1]
    %v3656 = vlaneseq
    %v3657 = vshrl.u32 %v3656, 7
    %v3658 = vsub.s32 0, %v3657
    %v3659 = vrot.slane %v3654, %v3658
    %v3661 = vadd.f32 %v3653, %v3659
    %v3662 = vxor.u32 %v3661, 2147483648
    %v3663 = vmul.f32 %v3662, 1.442695
    %v3664 = vpow.pop %v3663
    %v3665 = vadd.f32 %v3664, 1.0
    %v3666 = vrcp.pop %v3665
    %v3667 = vmul.f32 1.0, %v3666
    %v3668 = vmul.f32 %v3567, %v3667
    %vm3669 = vcmask 254976
    %3670 = vst.msk [vmem:[#allocation2] sm:$0x3] %vm3669, %v3668
    // Predicated region
    $region118: #{spatial_pyramid_netvlad.1} parent=1 // pred_check
      _
    $region119: #{spatial_pyramid_netvlad.1} parent=1 // pred_check_branch
      %3672 = sbr.rel (0) target = $region121
    $region120: #{spatial_pyramid_netvlad.1} parent=1 // pred_region
      %s3674 = ssub.s32 32, 32
      %3675 = vsyncadd [#allocation3], %s3674
      %s3677 = sshll.u32 [#allocation2], 4
      %s3678 = int_to_ptr.vmem [resolvable:$true] %s3677
      %3680 = dma.vmem_to_hbm [thread:$0]  %s3678, 32, %s59, [#allocation3]
    $region121: #{spatial_pyramid_netvlad.1} parent=1 // pred_fallthru
      _
    // Predicated region
    $region122: #{spatial_pyramid_netvlad.1} parent=1 // pred_check
      _
    $region123: #{spatial_pyramid_netvlad.1} parent=1 // pred_check_branch
      %3682 = sbr.rel (0) target = $region125
    $region124: #{spatial_pyramid_netvlad.1} parent=1 // pred_region
      %3683 = dma.done [#allocation3], 32
    $region125: #{spatial_pyramid_netvlad.1} parent=1 // pred_fallthru
      _
    %3684 = vsyncpa [#allocation3], 1

</llo_original>
